<compile_context>
chip_gen: v7x
topology: tpu7x:2x2x1
jax: 0.10.0
libtpu: 0.0.40
codegen_flags: <defaults>
</compile_context>

<pallas_src>
import functools
import numpy as np
import jax
import jax.numpy as jnp
from jax.experimental import pallas as pl
from jax.experimental.pallas import tpu as pltpu


# ----------------------------------------------------------------------------
# Fused Generator kernel
# ----------------------------------------------------------------------------

def generator_kernel(
    # ---- inputs (whole arrays, VMEM-resident) ----
    newx_ref, m_ref, demo_ref, score_ref,
    g_w1a_ref, g_w1b_ref, g_b1_ref, g_w2_ref, g_b2_ref, g_w3_ref, g_b3_ref,
    u1_ref, u2_ref, u3_ref,
    hg_wg_ref, hg_wd_ref, hg_b_ref,
    w_lstm_ref, b_lstm_ref, w_cls_ref, b_cls_ref,
    # ---- outputs ----
    gprob_ref, inew_ref, ench_ref, dech_ref, cls_ref,
    # ---- scratch ----
    xh_ref, agg_ref,
    *, T, N, Dim, latDim, fo, H, HP, P):
    f32 = jnp.float32

    # ---------------- GAIN generator MLP, batched over all T*N rows ---------
    x = newx_ref[...]                                  # (T*N, Dim)
    mm = m_ref[...]                                    # (T*N, Dim)
    h1 = jnp.maximum(
        jnp.dot(x, g_w1a_ref[...], preferred_element_type=f32)
        + jnp.dot(mm, g_w1b_ref[...], preferred_element_type=f32)
        + g_b1_ref[...], 0.0)
    h2 = jnp.maximum(
        jnp.dot(h1, g_w2_ref[...], preferred_element_type=f32)
        + g_b2_ref[...], 0.0)
    g_prob = jax.nn.sigmoid(
        jnp.dot(h2, g_w3_ref[...], preferred_element_type=f32) + g_b3_ref[...])
    gprob_ref[...] = g_prob
    inew = x * mm + g_prob * (1.0 - mm)                # imputed input (T*N, Dim)
    inew_ref[...] = inew

    # ---------------- Temporal attention -> sparse (N, N) A_p ---------------
    # a[t*N+n] = <inew[t*N+n, :], U1>  : one MXU matmul (no XLU lane reduce).
    a_col = jax.lax.dot_general(inew, u1_ref[...], (((1,), (1,)), ((), ())),
                                preferred_element_type=f32)        # (T*N, 1)
    u2 = u2_ref[...]                                   # (T, Dim)
    u3 = u3_ref[...]                                   # (T, 1)
    lhs = jnp.zeros((N, Dim), f32)
    rhs = jnp.zeros((N, Dim), f32)
    for t in range(T):                                 # T=5, static unroll, VPU
        blk = inew[t * N:(t + 1) * N, :]
        lhs = lhs + a_col[t * N:(t + 1) * N, :] * u2[t:t + 1, :]
        rhs = rhs + blk * u3[t:t + 1, :]
    prod = jax.nn.sigmoid(
        jax.lax.dot_general(lhs, rhs, (((1,), (1,)), ((), ())),
                            preferred_element_type=f32))           # (N, N)
    e = jax.nn.softmax(prod, axis=1)
    thresh = jnp.mean(e, keepdims=True) / 0.6          # global mean (reference)
    a_p = jnp.where(e < thresh, jnp.zeros_like(e), e)

    # ---------------- hgcn hoisted out of the recurrence, batched over T ----
    # TODO(synk): train_hgcn source unavailable; A_p-weighted graph conv +
    # demographic projection placeholder (hoist is valid since latDim <= Dim,
    # so the per-step hgcn input never depends on the recurrent state).
    for t in range(T):
        agg_ref[t * N:(t + 1) * N, :] = jnp.dot(
            a_p, inew[t * N:(t + 1) * N, :], preferred_element_type=f32)
    hg_all = jnp.maximum(
        jnp.dot(agg_ref[...], hg_wg_ref[...], preferred_element_type=f32)
        + jnp.dot(demo_ref[...], hg_wd_ref[...], preferred_element_type=f32)
        + hg_b_ref[...], 0.0)                          # (T*N, latDim)

    # ---------------- fused LSTM cell ---------------------------------------
    # xh_ref = [ x_pad (HP lanes) | h_pad (HP lanes) ].  One matmul produces
    # all 4 gates; each gate slice is 128-lane aligned.  Padded rows/cols of
    # W and b are zero, so padded state lanes stay exactly 0 all the way.
    def lstm_step(c):
        gates = (jnp.dot(xh_ref[...], w_lstm_ref[...],
                         preferred_element_type=f32) + b_lstm_ref[...])
        i_g = jax.nn.sigmoid(gates[:, 0 * HP:1 * HP])
        f_g = jax.nn.sigmoid(gates[:, 1 * HP:2 * HP])
        g_g = jnp.tanh(gates[:, 2 * HP:3 * HP])
        o_g = jax.nn.sigmoid(gates[:, 3 * HP:4 * HP])
        c_new = f_g * c + i_g * g_g
        h_new = o_g * jnp.tanh(c_new)
        return h_new, c_new

    xh_ref[...] = jnp.zeros((N, 2 * HP), f32)          # zero pad lanes + h0
    c = jnp.zeros((N, HP), f32)

    # encoder step 0
    xh_ref[:, 0:latDim] = hg_all[0:N, :]
    xh_ref[:, latDim:H] = score_ref[0:N, :]
    h, c = lstm_step(c)
    ench_ref[0:N, :] = h
    xh_ref[:, HP:2 * HP] = h

    # encoder steps 1 .. T-1 (statically unrolled; tiny trip count)
    for i in range(1, T):
        score_true = score_ref[i * N:(i + 1) * N, :]               # (N, fo)
        # HardCalculateLayer: use predicted score where the true one is -5
        score_t = jnp.where(score_true == -5.0, h[:, latDim:H], score_true)
        xh_ref[:, 0:latDim] = hg_all[i * N:(i + 1) * N, :]
        xh_ref[:, latDim:H] = score_t
        h, c = lstm_step(c)
        xh_ref[:, HP:2 * HP] = h
        if i != T - 1:
            ench_ref[i * N:(i + 1) * N, :] = h

    # decoder: feed previous hidden output back as the next input
    for p_i in range(P):
        xh_ref[:, 0:HP] = h
        xh_ref[:, HP:2 * HP] = h
        h, c = lstm_step(c)
        dech_ref[p_i * N:(p_i + 1) * N, :] = h

    # classifier on the final decoder output (W_cls rows zero-padded to HP)
    cls_ref[...] = (jnp.dot(h, w_cls_ref[...], preferred_element_type=f32)
                    + b_cls_ref[...])


# ----------------------------------------------------------------------------
# Parameter construction (deterministic, xavier_init-style scale)
# ----------------------------------------------------------------------------

def xavier(key, shape):
    in_dim = shape[0]
    std = 1.0 / np.sqrt(in_dim / 2.0)
    return jax.random.normal(key, shape, dtype=jnp.float32) * std


def init_params(key, Dim, latDim, features_out, T_att=5, labels=3, HP=128):
    ks = jax.random.split(key, 16)
    H = latDim + features_out          # logical recurrent hidden size
    assert H <= HP

    # GAIN first layer split so the kernel never needs concat([x, m]).
    W1 = xavier(ks[0], (Dim * 2, Dim))

    # Fused, lane-padded LSTM weight:
    #   rows [0:H]        -> x-part input features
    #   rows [HP:HP+H]    -> h-part input features
    #   gate g occupies columns [g*HP, g*HP+H); everything else is zero so the
    #   padded state lanes stay exactly zero through the recurrence.
    wih = xavier(ks[8], (4, H, H)) * 0.3
    whh = xavier(ks[9], (4, H, H)) * 0.3
    w_lstm = jnp.zeros((2 * HP, 4 * HP), jnp.float32)
    for g in range(4):
        w_lstm = w_lstm.at[0:H, g * HP:g * HP + H].set(wih[g])
        w_lstm = w_lstm.at[HP:HP + H, g * HP:g * HP + H].set(whh[g])
    b_lstm = jnp.zeros((1, 4 * HP), jnp.float32)

    # classifier Linear(latDim + 5, labels), rows zero-padded to HP
    w_cls = xavier(ks[10], (latDim + 5, labels))
    w_cls_pad = jnp.zeros((HP, labels), jnp.float32).at[:latDim + 5, :].set(w_cls)

    params = {
        "G_W1a": W1[:Dim], "G_W1b": W1[Dim:],
        "G_b1": jnp.zeros((1, Dim), jnp.float32),
        "G_W2": xavier(ks[1], (Dim, Dim)),
        "G_b2": jnp.zeros((1, Dim), jnp.float32),
        "G_W3": xavier(ks[2], (Dim, Dim)),
        "G_b3": jnp.zeros((1, Dim), jnp.float32),
        # Temporal attention (U1:(Dim,), U2:(5,Dim), U3:(5,)) stored 2-D
        "U1": xavier(ks[3], (Dim,)).reshape(1, Dim),
        "U2": xavier(ks[4], (T_att, Dim)),
        "U3": xavier(ks[5], (T_att,)).reshape(T_att, 1),
        # hgcn placeholder
        "HG_Wg": xavier(ks[6], (Dim, latDim)),
        "HG_Wd": xavier(ks[7], (features_out, latDim)),
        "HG_b": jnp.zeros((1, latDim), jnp.float32),
        # fused, padded LSTM + classifier
        "W_lstm": w_lstm, "b_lstm": b_lstm,
        "W_cls": w_cls_pad, "b_cls": jnp.zeros((1, labels), jnp.float32),
    }
    return params


# ----------------------------------------------------------------------------
# Generator forward: single fused pallas_call + cheap XLA reshapes/slices
# ----------------------------------------------------------------------------

def generator_forward(params, new_x, m, X_demo, X_score, X_missing_mask,
                      pred_length=3, view_num=2):
    # X_missing_mask is accepted (module signature) but — exactly as in the
    # reference forward math — it never affects the result, so it is NOT
    # wired into the kernel (no dead DMA).
    T, N, Dim = new_x.shape
    fo = X_score.shape[-1]
    latDim = params["HG_Wg"].shape[1]
    H = latDim + fo
    HP = params["W_lstm"].shape[0] // 2
    labels = params["W_cls"].shape[1]
    assert latDim == Dim, "hgcn hoist / input_temp slicing assumes latDim == Dim"
    assert H <= HP

    f32 = jnp.float32
    newx2d = new_x.reshape(T * N, Dim).astype(f32)
    m2d = m.reshape(T * N, Dim).astype(f32)
    demo2d = X_demo.reshape(T * N, fo).astype(f32)
    score2d = X_score.reshape(T * N, fo).astype(f32)

    kernel = functools.partial(
        generator_kernel, T=T, N=N, Dim=Dim, latDim=latDim, fo=fo, H=H, HP=HP,
        P=pred_length)

    vmem = pl.BlockSpec(memory_space=pltpu.MemorySpace.VMEM)
    outs = pl.pallas_call(
        kernel,
        out_shape=(
            jax.ShapeDtypeStruct((T * N, Dim), f32),            # G_prob
            jax.ShapeDtypeStruct((T * N, Dim), f32),            # input_new
            jax.ShapeDtypeStruct(((T - 1) * N, HP), f32),       # encoder h (padded)
            jax.ShapeDtypeStruct((pred_length * N, HP), f32),   # decoder h (padded)
            jax.ShapeDtypeStruct((N, labels), f32),             # class_out
        ),
        in_specs=[vmem] * 21,
        out_specs=(vmem,) * 5,
        scratch_shapes=[pltpu.VMEM((N, 2 * HP), f32),           # [x_pad | h_pad]
                        pltpu.VMEM((T * N, Dim), f32)],         # A_p @ x, all T
    )(newx2d, m2d, demo2d, score2d,
      params["G_W1a"], params["G_W1b"], params["G_b1"],
      params["G_W2"], params["G_b2"], params["G_W3"], params["G_b3"],
      params["U1"], params["U2"], params["U3"],
      params["HG_Wg"], params["HG_Wd"], params["HG_b"],
      params["W_lstm"], params["b_lstm"], params["W_cls"], params["b_cls"])

    gprob2d, inew2d, ench2d, dech2d, class_out = outs
    G_prob = gprob2d.reshape(T, N, Dim)
    input_new = inew2d.reshape(T, N, Dim)
    latent_temp = jnp.concatenate([input_new, X_score.astype(f32)], axis=2)
    encoder_outputs = ench2d.reshape(T - 1, N, HP)[:, :, :H]
    encoder_t5 = encoder_outputs[T - 2:T - 1]
    dec_h = dech2d.reshape(pred_length, N, HP)
    if view_num == 2:
        decoder_outputs_out = [dec_h[:, :, latDim + i:latDim + i + 1]
                               for i in range(fo)]
    else:
        decoder_outputs_out = [dec_h[:, :, Dim + i:Dim + i + 1]
                               for i in range(fo)]
    return (G_prob, latent_temp, encoder_outputs, decoder_outputs_out,
            class_out, encoder_t5)


# ----------------------------------------------------------------------------
# Main
# ----------------------------------------------------------------------------

if __name__ == "__main__":
    # Small, shape-consistent configuration (latDim == Dim so the reference
    # slicing [:, :, :latDim] is coherent; features_out == 5 matches the
    # classifier input latDim + 5).
    Dim = 32
    latDim = 32
    features_out = 5
    T = 5              # seq_num == attention T_dim == 5
    N = 8
    pred_length = 3
    view_num = 2
    labels = 3

    params = init_params(jax.random.PRNGKey(0), Dim, latDim, features_out,
                         T_att=T, labels=labels, HP=128)

    kin = jax.random.split(jax.random.PRNGKey(1), 6)
    new_x = jax.random.normal(kin[0], (T, N, Dim), dtype=jnp.float32)
    m = (jax.random.uniform(kin[1], (T, N, Dim)) > 0.5).astype(jnp.float32)
    X_demo = jax.random.normal(kin[2], (T, N, features_out), dtype=jnp.float32)
    X_score = jax.random.normal(kin[3], (T, N, features_out), dtype=jnp.float32)
    # mark some scores as "missing" (-5) to exercise HardCalculateLayer
    X_score = jnp.where(jax.random.uniform(kin[4], (T, N, features_out)) < 0.3,
                        jnp.float32(-5.0), X_score)
    X_missing_mask = (jax.random.uniform(kin[5], (N, T)) > 0.5).astype(jnp.float32)

    fwd = jax.jit(functools.partial(generator_forward,
                                    pred_length=pred_length, view_num=view_num))
    out = fwd(params, new_x, m, X_demo, X_score, X_missing_mask)
    out = jax.block_until_ready(out)

    (G_prob, latent_temp, encoder_outputs, decoder_outputs_out,
     class_out, encoder_t5) = out
    assert G_prob.shape == (T, N, Dim)
    assert latent_temp.shape == (T, N, Dim + features_out)
    assert encoder_outputs.shape == (T - 1, N, latDim + features_out)
    assert len(decoder_outputs_out) == features_out
    assert decoder_outputs_out[0].shape == (pred_length, N, 1)
    assert class_out.shape == (N, labels)
    assert encoder_t5.shape == (1, N, latDim + features_out)
    assert all(bool(jnp.all(jnp.isfinite(v))) for v in
               [G_prob, latent_temp, encoder_outputs, class_out, encoder_t5])
    assert all(bool(jnp.all(jnp.isfinite(v))) for v in decoder_outputs_out)

    print("KERNEL_OK")
</pallas_src>

<mosaic_0001>
module attributes {stable_mosaic.version = 11 : i64} {
  func.func @generator_kernel(%arg0: memref<40x32xf32, #tpu.memory_space<vmem>>, %arg1: memref<40x32xf32, #tpu.memory_space<vmem>>, %arg2: memref<40x5xf32, #tpu.memory_space<vmem>>, %arg3: memref<40x5xf32, #tpu.memory_space<vmem>>, %arg4: memref<32x32xf32, #tpu.memory_space<vmem>>, %arg5: memref<32x32xf32, #tpu.memory_space<vmem>>, %arg6: memref<1x32xf32, #tpu.memory_space<vmem>>, %arg7: memref<32x32xf32, #tpu.memory_space<vmem>>, %arg8: memref<1x32xf32, #tpu.memory_space<vmem>>, %arg9: memref<32x32xf32, #tpu.memory_space<vmem>>, %arg10: memref<1x32xf32, #tpu.memory_space<vmem>>, %arg11: memref<1x32xf32, #tpu.memory_space<vmem>>, %arg12: memref<5x32xf32, #tpu.memory_space<vmem>>, %arg13: memref<5x1xf32, #tpu.memory_space<vmem>>, %arg14: memref<32x32xf32, #tpu.memory_space<vmem>>, %arg15: memref<5x32xf32, #tpu.memory_space<vmem>>, %arg16: memref<1x32xf32, #tpu.memory_space<vmem>>, %arg17: memref<256x512xf32, #tpu.memory_space<vmem>>, %arg18: memref<1x512xf32, #tpu.memory_space<vmem>>, %arg19: memref<128x3xf32, #tpu.memory_space<vmem>>, %arg20: memref<1x3xf32, #tpu.memory_space<vmem>>, %arg21: memref<40x32xf32, #tpu.memory_space<vmem>>, %arg22: memref<40x32xf32, #tpu.memory_space<vmem>>, %arg23: memref<32x128xf32, #tpu.memory_space<vmem>>, %arg24: memref<24x128xf32, #tpu.memory_space<vmem>>, %arg25: memref<8x3xf32, #tpu.memory_space<vmem>>, %arg26: memref<8x256xf32, #tpu.memory_space<vmem>>, %arg27: memref<40x32xf32, #tpu.memory_space<vmem>>) attributes {dimension_semantics = [], scalar_prefetch = 0 : i64, scratch_operands = 2 : i64, tpu.core_type = #tpu.core_type<tc>} {
    %c0 = arith.constant 0 : index
    %c0_0 = arith.constant 0 : index
    %0 = vector.load %arg0[%c0, %c0_0] : memref<40x32xf32, #tpu.memory_space<vmem>>, vector<40x32xf32>
    %c0_1 = arith.constant 0 : index
    %c0_2 = arith.constant 0 : index
    %1 = vector.load %arg1[%c0_1, %c0_2] : memref<40x32xf32, #tpu.memory_space<vmem>>, vector<40x32xf32>
    %c0_3 = arith.constant 0 : index
    %c0_4 = arith.constant 0 : index
    %2 = vector.load %arg4[%c0_3, %c0_4] : memref<32x32xf32, #tpu.memory_space<vmem>>, vector<32x32xf32>
    %cst = arith.constant dense<0.000000e+00> : vector<40x32xf32>
    %3 = tpu.matmul %0, %2, %cst {dimension_numbers = #tpu.dot_dimension_numbers<[1], [0], [0], [1], [0, 0, 1, 1], [], []>} : vector<40x32xf32>, vector<32x32xf32>, vector<40x32xf32> -> vector<40x32xf32>
    %c0_5 = arith.constant 0 : index
    %c0_6 = arith.constant 0 : index
    %4 = vector.load %arg5[%c0_5, %c0_6] : memref<32x32xf32, #tpu.memory_space<vmem>>, vector<32x32xf32>
    %cst_7 = arith.constant dense<0.000000e+00> : vector<40x32xf32>
    %5 = tpu.matmul %1, %4, %cst_7 {dimension_numbers = #tpu.dot_dimension_numbers<[1], [0], [0], [1], [0, 0, 1, 1], [], []>} : vector<40x32xf32>, vector<32x32xf32>, vector<40x32xf32> -> vector<40x32xf32>
    %6 = arith.addf %3, %5 : vector<40x32xf32>
    %c0_8 = arith.constant 0 : index
    %c0_9 = arith.constant 0 : index
    %7 = vector.load %arg6[%c0_8, %c0_9] : memref<1x32xf32, #tpu.memory_space<vmem>>, vector<1x32xf32>
    %8 = vector.broadcast %7 : vector<1x32xf32> to vector<40x32xf32>
    %9 = arith.addf %6, %8 : vector<40x32xf32>
    %cst_10 = arith.constant 0.000000e+00 : f32
    %10 = vector.broadcast %cst_10 : f32 to vector<40x32xf32>
    %11 = arith.maximumf %9, %10 : vector<40x32xf32>
    %c0_11 = arith.constant 0 : index
    %c0_12 = arith.constant 0 : index
    %12 = vector.load %arg7[%c0_11, %c0_12] : memref<32x32xf32, #tpu.memory_space<vmem>>, vector<32x32xf32>
    %cst_13 = arith.constant dense<0.000000e+00> : vector<40x32xf32>
    %13 = tpu.matmul %11, %12, %cst_13 {dimension_numbers = #tpu.dot_dimension_numbers<[1], [0], [0], [1], [0, 0, 1, 1], [], []>} : vector<40x32xf32>, vector<32x32xf32>, vector<40x32xf32> -> vector<40x32xf32>
    %c0_14 = arith.constant 0 : index
    %c0_15 = arith.constant 0 : index
    %14 = vector.load %arg8[%c0_14, %c0_15] : memref<1x32xf32, #tpu.memory_space<vmem>>, vector<1x32xf32>
    %15 = vector.broadcast %14 : vector<1x32xf32> to vector<40x32xf32>
    %16 = arith.addf %13, %15 : vector<40x32xf32>
    %cst_16 = arith.constant 0.000000e+00 : f32
    %17 = vector.broadcast %cst_16 : f32 to vector<40x32xf32>
    %18 = arith.maximumf %16, %17 : vector<40x32xf32>
    %c0_17 = arith.constant 0 : index
    %c0_18 = arith.constant 0 : index
    %19 = vector.load %arg9[%c0_17, %c0_18] : memref<32x32xf32, #tpu.memory_space<vmem>>, vector<32x32xf32>
    %cst_19 = arith.constant dense<0.000000e+00> : vector<40x32xf32>
    %20 = tpu.matmul %18, %19, %cst_19 {dimension_numbers = #tpu.dot_dimension_numbers<[1], [0], [0], [1], [0, 0, 1, 1], [], []>} : vector<40x32xf32>, vector<32x32xf32>, vector<40x32xf32> -> vector<40x32xf32>
    %c0_20 = arith.constant 0 : index
    %c0_21 = arith.constant 0 : index
    %21 = vector.load %arg10[%c0_20, %c0_21] : memref<1x32xf32, #tpu.memory_space<vmem>>, vector<1x32xf32>
    %22 = vector.broadcast %21 : vector<1x32xf32> to vector<40x32xf32>
    %23 = arith.addf %20, %22 : vector<40x32xf32>
    %24 = arith.negf %23 : vector<40x32xf32>
    %25 = math.exp %24 : vector<40x32xf32>
    %cst_22 = arith.constant 1.000000e+00 : f32
    %26 = vector.broadcast %cst_22 : f32 to vector<40x32xf32>
    %27 = arith.addf %26, %25 : vector<40x32xf32>
    %28 = arith.divf %26, %27 : vector<40x32xf32>
    %c0_23 = arith.constant 0 : index
    %c0_24 = arith.constant 0 : index
    %29 = vector.load %arg21[%c0_23, %c0_24] : memref<40x32xf32, #tpu.memory_space<vmem>>, vector<40x32xf32>
    tpu.vector_store %arg21[%c0_23, %c0_24], %28 {strides = array<i32>} : memref<40x32xf32, #tpu.memory_space<vmem>>, vector<40x32xf32>,
    %30 = arith.mulf %0, %1 : vector<40x32xf32>
    %cst_25 = arith.constant 1.000000e+00 : f32
    %31 = vector.broadcast %cst_25 : f32 to vector<40x32xf32>
    %32 = arith.subf %31, %1 : vector<40x32xf32>
    %33 = arith.mulf %28, %32 : vector<40x32xf32>
    %34 = arith.addf %30, %33 : vector<40x32xf32>
    %c0_26 = arith.constant 0 : index
    %c0_27 = arith.constant 0 : index
    %35 = vector.load %arg22[%c0_26, %c0_27] : memref<40x32xf32, #tpu.memory_space<vmem>>, vector<40x32xf32>
    tpu.vector_store %arg22[%c0_26, %c0_27], %34 {strides = array<i32>} : memref<40x32xf32, #tpu.memory_space<vmem>>, vector<40x32xf32>,
    %c0_28 = arith.constant 0 : index
    %c0_29 = arith.constant 0 : index
    %36 = vector.load %arg11[%c0_28, %c0_29] : memref<1x32xf32, #tpu.memory_space<vmem>>, vector<1x32xf32>
    %cst_30 = arith.constant dense<0.000000e+00> : vector<40x1xf32>
    %37 = tpu.matmul %34, %36, %cst_30 {dimension_numbers = #tpu.dot_dimension_numbers<[1], [1], [0], [0], [0, 0, 1, 0], [], []>} : vector<40x32xf32>, vector<1x32xf32>, vector<40x1xf32> -> vector<40x1xf32>
    %c0_31 = arith.constant 0 : index
    %c0_32 = arith.constant 0 : index
    %38 = vector.load %arg12[%c0_31, %c0_32] : memref<5x32xf32, #tpu.memory_space<vmem>>, vector<5x32xf32>
    %c0_33 = arith.constant 0 : index
    %c0_34 = arith.constant 0 : index
    %39 = vector.load %arg13[%c0_33, %c0_34] : memref<5x1xf32, #tpu.memory_space<vmem>>, vector<5x1xf32>
    %cst_35 = arith.constant 0.000000e+00 : f32
    %40 = vector.broadcast %cst_35 : f32 to vector<8x32xf32>
    %cst_36 = arith.constant 0.000000e+00 : f32
    %41 = vector.broadcast %cst_36 : f32 to vector<8x32xf32>
    %42 = vector.extract_strided_slice %34 {offsets = [0, 0], sizes = [8, 32], strides = [1, 1]} : vector<40x32xf32> to vector<8x32xf32>
    %43 = vector.extract_strided_slice %37 {offsets = [0, 0], sizes = [8, 1], strides = [1, 1]} : vector<40x1xf32> to vector<8x1xf32>
    %44 = vector.extract_strided_slice %38 {offsets = [0, 0], sizes = [1, 32], strides = [1, 1]} : vector<5x32xf32> to vector<1x32xf32>
    %45 = vector.broadcast %43 : vector<8x1xf32> to vector<8x32xf32>
    %46 = vector.broadcast %44 : vector<1x32xf32> to vector<8x32xf32>
    %47 = arith.mulf %45, %46 : vector<8x32xf32>
    %48 = arith.addf %40, %47 : vector<8x32xf32>
    %49 = vector.extract_strided_slice %39 {offsets = [0, 0], sizes = [1, 1], strides = [1, 1]} : vector<5x1xf32> to vector<1x1xf32>
    %50 = vector.broadcast %49 : vector<1x1xf32> to vector<8x32xf32>
    %51 = arith.mulf %42, %50 : vector<8x32xf32>
    %52 = arith.addf %41, %51 : vector<8x32xf32>
    %53 = vector.extract_strided_slice %34 {offsets = [8, 0], sizes = [8, 32], strides = [1, 1]} : vector<40x32xf32> to vector<8x32xf32>
    %54 = vector.extract_strided_slice %37 {offsets = [8, 0], sizes = [8, 1], strides = [1, 1]} : vector<40x1xf32> to vector<8x1xf32>
    %55 = vector.extract_strided_slice %38 {offsets = [1, 0], sizes = [1, 32], strides = [1, 1]} : vector<5x32xf32> to vector<1x32xf32>
    %56 = vector.broadcast %54 : vector<8x1xf32> to vector<8x32xf32>
    %57 = vector.broadcast %55 : vector<1x32xf32> to vector<8x32xf32>
    %58 = arith.mulf %56, %57 : vector<8x32xf32>
    %59 = arith.addf %48, %58 : vector<8x32xf32>
    %60 = vector.extract_strided_slice %39 {offsets = [1, 0], sizes = [1, 1], strides = [1, 1]} : vector<5x1xf32> to vector<1x1xf32>
    %61 = vector.broadcast %60 : vector<1x1xf32> to vector<8x32xf32>
    %62 = arith.mulf %53, %61 : vector<8x32xf32>
    %63 = arith.addf %52, %62 : vector<8x32xf32>
    %64 = vector.extract_strided_slice %34 {offsets = [16, 0], sizes = [8, 32], strides = [1, 1]} : vector<40x32xf32> to vector<8x32xf32>
    %65 = vector.extract_strided_slice %37 {offsets = [16, 0], sizes = [8, 1], strides = [1, 1]} : vector<40x1xf32> to vector<8x1xf32>
    %66 = vector.extract_strided_slice %38 {offsets = [2, 0], sizes = [1, 32], strides = [1, 1]} : vector<5x32xf32> to vector<1x32xf32>
    %67 = vector.broadcast %65 : vector<8x1xf32> to vector<8x32xf32>
    %68 = vector.broadcast %66 : vector<1x32xf32> to vector<8x32xf32>
    %69 = arith.mulf %67, %68 : vector<8x32xf32>
    %70 = arith.addf %59, %69 : vector<8x32xf32>
    %71 = vector.extract_strided_slice %39 {offsets = [2, 0], sizes = [1, 1], strides = [1, 1]} : vector<5x1xf32> to vector<1x1xf32>
    %72 = vector.broadcast %71 : vector<1x1xf32> to vector<8x32xf32>
    %73 = arith.mulf %64, %72 : vector<8x32xf32>
    %74 = arith.addf %63, %73 : vector<8x32xf32>
    %75 = vector.extract_strided_slice %34 {offsets = [24, 0], sizes = [8, 32], strides = [1, 1]} : vector<40x32xf32> to vector<8x32xf32>
    %76 = vector.extract_strided_slice %37 {offsets = [24, 0], sizes = [8, 1], strides = [1, 1]} : vector<40x1xf32> to vector<8x1xf32>
    %77 = vector.extract_strided_slice %38 {offsets = [3, 0], sizes = [1, 32], strides = [1, 1]} : vector<5x32xf32> to vector<1x32xf32>
    %78 = vector.broadcast %76 : vector<8x1xf32> to vector<8x32xf32>
    %79 = vector.broadcast %77 : vector<1x32xf32> to vector<8x32xf32>
    %80 = arith.mulf %78, %79 : vector<8x32xf32>
    %81 = arith.addf %70, %80 : vector<8x32xf32>
    %82 = vector.extract_strided_slice %39 {offsets = [3, 0], sizes = [1, 1], strides = [1, 1]} : vector<5x1xf32> to vector<1x1xf32>
    %83 = vector.broadcast %82 : vector<1x1xf32> to vector<8x32xf32>
    %84 = arith.mulf %75, %83 : vector<8x32xf32>
    %85 = arith.addf %74, %84 : vector<8x32xf32>
    %86 = vector.extract_strided_slice %34 {offsets = [32, 0], sizes = [8, 32], strides = [1, 1]} : vector<40x32xf32> to vector<8x32xf32>
    %87 = vector.extract_strided_slice %37 {offsets = [32, 0], sizes = [8, 1], strides = [1, 1]} : vector<40x1xf32> to vector<8x1xf32>
    %88 = vector.extract_strided_slice %38 {offsets = [4, 0], sizes = [1, 32], strides = [1, 1]} : vector<5x32xf32> to vector<1x32xf32>
    %89 = vector.broadcast %87 : vector<8x1xf32> to vector<8x32xf32>
    %90 = vector.broadcast %88 : vector<1x32xf32> to vector<8x32xf32>
    %91 = arith.mulf %89, %90 : vector<8x32xf32>
    %92 = arith.addf %81, %91 : vector<8x32xf32>
    %93 = vector.extract_strided_slice %39 {offsets = [4, 0], sizes = [1, 1], strides = [1, 1]} : vector<5x1xf32> to vector<1x1xf32>
    %94 = vector.broadcast %93 : vector<1x1xf32> to vector<8x32xf32>
    %95 = arith.mulf %86, %94 : vector<8x32xf32>
    %96 = arith.addf %85, %95 : vector<8x32xf32>
    %cst_37 = arith.constant dense<0.000000e+00> : vector<8x8xf32>
    %97 = tpu.matmul %92, %96, %cst_37 {dimension_numbers = #tpu.dot_dimension_numbers<[1], [1], [0], [0], [0, 0, 1, 0], [], []>} : vector<8x32xf32>, vector<8x32xf32>, vector<8x8xf32> -> vector<8x8xf32>
    %98 = arith.negf %97 : vector<8x8xf32>
    %99 = math.exp %98 : vector<8x8xf32>
    %cst_38 = arith.constant 1.000000e+00 : f32
    %100 = vector.broadcast %cst_38 : f32 to vector<8x8xf32>
    %101 = arith.addf %100, %99 : vector<8x8xf32>
    %102 = arith.divf %100, %101 : vector<8x8xf32>
    %cst_39 = arith.constant dense<0xFF800000> : vector<8xf32>
    %103 = vector.multi_reduction <maximumf>, %102, %cst_39 [1] : vector<8x8xf32> to vector<8xf32>
    %cst_40 = arith.constant 0xFF800000 : f32
    %104 = vector.broadcast %cst_40 : f32 to vector<8xf32>
    %105 = arith.maximumf %104, %103 : vector<8xf32>
    %106 = vector.shape_cast %105 : vector<8xf32> to vector<8x1xf32>
    %107 = vector.broadcast %106 : vector<8x1xf32> to vector<8x8xf32>
    %108 = arith.subf %102, %107 : vector<8x8xf32>
    %109 = math.exp %108 : vector<8x8xf32>
    %cst_41 = arith.constant dense<0.000000e+00> : vector<8xf32>
    %110 = vector.multi_reduction <add>, %109, %cst_41 [1] : vector<8x8xf32> to vector<8xf32>
    %111 = vector.shape_cast %110 : vector<8xf32> to vector<8x1xf32>
    %112 = vector.broadcast %111 : vector<8x1xf32> to vector<8x8xf32>
    %113 = arith.divf %109, %112 : vector<8x8xf32>
    %114 = vector.shape_cast %113 : vector<8x8xf32> to vector<1x8x8xf32>
    %cst_42 = arith.constant dense<0.000000e+00> : vector<1xf32>
    %115 = vector.multi_reduction <add>, %114, %cst_42 [1, 2] : vector<1x8x8xf32> to vector<1xf32>
    %116 = vector.shape_cast %115 : vector<1xf32> to vector<1x1x1xf32>
    %117 = vector.extract %116[0, 0, 0] : f32 from vector<1x1x1xf32>
    %118 = vector.broadcast %117 : f32 to vector<1x1xf32>
    %cst_43 = arith.constant 6.400000e+01 : f32
    %119 = vector.broadcast %cst_43 : f32 to vector<1x1xf32>
    %120 = arith.divf %118, %119 : vector<1x1xf32>
    %cst_44 = arith.constant 6.000000e-01 : f32
    %121 = vector.broadcast %cst_44 : f32 to vector<1x1xf32>
    %122 = arith.divf %120, %121 : vector<1x1xf32>
    %123 = vector.broadcast %122 : vector<1x1xf32> to vector<8x8xf32>
    %124 = arith.cmpf olt, %113, %123 : vector<8x8xf32>
    %cst_45 = arith.constant 0.000000e+00 : f32
    %125 = vector.broadcast %cst_45 : f32 to vector<8x8xf32>
    %126 = arith.select %124, %125, %113 : vector<8x8xi1>, vector<8x8xf32>
    %127 = vector.extract_strided_slice %34 {offsets = [0, 0], sizes = [8, 32], strides = [1, 1]} : vector<40x32xf32> to vector<8x32xf32>
    %cst_46 = arith.constant dense<0.000000e+00> : vector<8x32xf32>
    %128 = tpu.matmul %126, %127, %cst_46 {dimension_numbers = #tpu.dot_dimension_numbers<[1], [0], [0], [1], [0, 0, 1, 1], [], []>} : vector<8x8xf32>, vector<8x32xf32>, vector<8x32xf32> -> vector<8x32xf32>
    %c0_47 = arith.constant 0 : index
    %c0_48 = arith.constant 0 : index
    %129 = vector.load %arg27[%c0_47, %c0_48] : memref<40x32xf32, #tpu.memory_space<vmem>>, vector<8x32xf32>
    tpu.vector_store %arg27[%c0_47, %c0_48], %128 {strides = array<i32>} : memref<40x32xf32, #tpu.memory_space<vmem>>, vector<8x32xf32>,
    %130 = vector.extract_strided_slice %34 {offsets = [8, 0], sizes = [8, 32], strides = [1, 1]} : vector<40x32xf32> to vector<8x32xf32>
    %cst_49 = arith.constant dense<0.000000e+00> : vector<8x32xf32>
    %131 = tpu.matmul %126, %130, %cst_49 {dimension_numbers = #tpu.dot_dimension_numbers<[1], [0], [0], [1], [0, 0, 1, 1], [], []>} : vector<8x8xf32>, vector<8x32xf32>, vector<8x32xf32> -> vector<8x32xf32>
    %c8 = arith.constant 8 : index
    %c0_50 = arith.constant 0 : index
    %132 = vector.load %arg27[%c8, %c0_50] : memref<40x32xf32, #tpu.memory_space<vmem>>, vector<8x32xf32>
    tpu.vector_store %arg27[%c8, %c0_50], %131 {strides = array<i32>} : memref<40x32xf32, #tpu.memory_space<vmem>>, vector<8x32xf32>,
    %133 = vector.extract_strided_slice %34 {offsets = [16, 0], sizes = [8, 32], strides = [1, 1]} : vector<40x32xf32> to vector<8x32xf32>
    %cst_51 = arith.constant dense<0.000000e+00> : vector<8x32xf32>
    %134 = tpu.matmul %126, %133, %cst_51 {dimension_numbers = #tpu.dot_dimension_numbers<[1], [0], [0], [1], [0, 0, 1, 1], [], []>} : vector<8x8xf32>, vector<8x32xf32>, vector<8x32xf32> -> vector<8x32xf32>
    %c16 = arith.constant 16 : index
    %c0_52 = arith.constant 0 : index
    %135 = vector.load %arg27[%c16, %c0_52] : memref<40x32xf32, #tpu.memory_space<vmem>>, vector<8x32xf32>
    tpu.vector_store %arg27[%c16, %c0_52], %134 {strides = array<i32>} : memref<40x32xf32, #tpu.memory_space<vmem>>, vector<8x32xf32>,
    %136 = vector.extract_strided_slice %34 {offsets = [24, 0], sizes = [8, 32], strides = [1, 1]} : vector<40x32xf32> to vector<8x32xf32>
    %cst_53 = arith.constant dense<0.000000e+00> : vector<8x32xf32>
    %137 = tpu.matmul %126, %136, %cst_53 {dimension_numbers = #tpu.dot_dimension_numbers<[1], [0], [0], [1], [0, 0, 1, 1], [], []>} : vector<8x8xf32>, vector<8x32xf32>, vector<8x32xf32> -> vector<8x32xf32>
    %c24 = arith.constant 24 : index
    %c0_54 = arith.constant 0 : index
    %138 = vector.load %arg27[%c24, %c0_54] : memref<40x32xf32, #tpu.memory_space<vmem>>, vector<8x32xf32>
    tpu.vector_store %arg27[%c24, %c0_54], %137 {strides = array<i32>} : memref<40x32xf32, #tpu.memory_space<vmem>>, vector<8x32xf32>,
    %139 = vector.extract_strided_slice %34 {offsets = [32, 0], sizes = [8, 32], strides = [1, 1]} : vector<40x32xf32> to vector<8x32xf32>
    %cst_55 = arith.constant dense<0.000000e+00> : vector<8x32xf32>
    %140 = tpu.matmul %126, %139, %cst_55 {dimension_numbers = #tpu.dot_dimension_numbers<[1], [0], [0], [1], [0, 0, 1, 1], [], []>} : vector<8x8xf32>, vector<8x32xf32>, vector<8x32xf32> -> vector<8x32xf32>
    %c32 = arith.constant 32 : index
    %c0_56 = arith.constant 0 : index
    %141 = vector.load %arg27[%c32, %c0_56] : memref<40x32xf32, #tpu.memory_space<vmem>>, vector<8x32xf32>
    tpu.vector_store %arg27[%c32, %c0_56], %140 {strides = array<i32>} : memref<40x32xf32, #tpu.memory_space<vmem>>, vector<8x32xf32>,
    %c0_57 = arith.constant 0 : index
    %c0_58 = arith.constant 0 : index
    %142 = vector.load %arg27[%c0_57, %c0_58] : memref<40x32xf32, #tpu.memory_space<vmem>>, vector<40x32xf32>
    %c0_59 = arith.constant 0 : index
    %c0_60 = arith.constant 0 : index
    %143 = vector.load %arg14[%c0_59, %c0_60] : memref<32x32xf32, #tpu.memory_space<vmem>>, vector<32x32xf32>
    %cst_61 = arith.constant dense<0.000000e+00> : vector<40x32xf32>
    %144 = tpu.matmul %142, %143, %cst_61 {dimension_numbers = #tpu.dot_dimension_numbers<[1], [0], [0], [1], [0, 0, 1, 1], [], []>} : vector<40x32xf32>, vector<32x32xf32>, vector<40x32xf32> -> vector<40x32xf32>
    %c0_62 = arith.constant 0 : index
    %c0_63 = arith.constant 0 : index
    %145 = vector.load %arg2[%c0_62, %c0_63] : memref<40x5xf32, #tpu.memory_space<vmem>>, vector<40x5xf32>
    %c0_64 = arith.constant 0 : index
    %c0_65 = arith.constant 0 : index
    %146 = vector.load %arg15[%c0_64, %c0_65] : memref<5x32xf32, #tpu.memory_space<vmem>>, vector<5x32xf32>
    %cst_66 = arith.constant dense<0.000000e+00> : vector<40x32xf32>
    %147 = tpu.matmul %145, %146, %cst_66 {dimension_numbers = #tpu.dot_dimension_numbers<[1], [0], [0], [1], [0, 0, 1, 1], [], []>} : vector<40x5xf32>, vector<5x32xf32>, vector<40x32xf32> -> vector<40x32xf32>
    %148 = arith.addf %144, %147 : vector<40x32xf32>
    %c0_67 = arith.constant 0 : index
    %c0_68 = arith.constant 0 : index
    %149 = vector.load %arg16[%c0_67, %c0_68] : memref<1x32xf32, #tpu.memory_space<vmem>>, vector<1x32xf32>
    %150 = vector.broadcast %149 : vector<1x32xf32> to vector<40x32xf32>
    %151 = arith.addf %148, %150 : vector<40x32xf32>
    %cst_69 = arith.constant 0.000000e+00 : f32
    %152 = vector.broadcast %cst_69 : f32 to vector<40x32xf32>
    %153 = arith.maximumf %151, %152 : vector<40x32xf32>
    %cst_70 = arith.constant 0.000000e+00 : f32
    %154 = vector.broadcast %cst_70 : f32 to vector<8x256xf32>
    %c0_71 = arith.constant 0 : index
    %c0_72 = arith.constant 0 : index
    %155 = vector.load %arg26[%c0_71, %c0_72] : memref<8x256xf32, #tpu.memory_space<vmem>>, vector<8x256xf32>
    tpu.vector_store %arg26[%c0_71, %c0_72], %154 {strides = array<i32>} : memref<8x256xf32, #tpu.memory_space<vmem>>, vector<8x256xf32>,
    %cst_73 = arith.constant 0.000000e+00 : f32
    %156 = vector.broadcast %cst_73 : f32 to vector<8x128xf32>
    %157 = vector.extract_strided_slice %153 {offsets = [0, 0], sizes = [8, 32], strides = [1, 1]} : vector<40x32xf32> to vector<8x32xf32>
    %c0_74 = arith.constant 0 : index
    %c0_75 = arith.constant 0 : index
    %158 = vector.load %arg26[%c0_74, %c0_75] : memref<8x256xf32, #tpu.memory_space<vmem>>, vector<8x32xf32>
    tpu.vector_store %arg26[%c0_74, %c0_75], %157 {strides = array<i32>} : memref<8x256xf32, #tpu.memory_space<vmem>>, vector<8x32xf32>,
    %c0_76 = arith.constant 0 : index
    %c0_77 = arith.constant 0 : index
    %159 = vector.load %arg3[%c0_76, %c0_77] : memref<40x5xf32, #tpu.memory_space<vmem>>, vector<8x5xf32>
    %c0_78 = arith.constant 0 : index
    %c32_79 = arith.constant 32 : index
    %160 = vector.load %arg26[%c0_78, %c32_79] : memref<8x256xf32, #tpu.memory_space<vmem>>, vector<8x5xf32>
    tpu.vector_store %arg26[%c0_78, %c32_79], %159 {strides = array<i32>} : memref<8x256xf32, #tpu.memory_space<vmem>>, vector<8x5xf32>,
    %c0_80 = arith.constant 0 : index
    %c0_81 = arith.constant 0 : index
    %161 = vector.load %arg26[%c0_80, %c0_81] : memref<8x256xf32, #tpu.memory_space<vmem>>, vector<8x256xf32>
    %c0_82 = arith.constant 0 : index
    %c0_83 = arith.constant 0 : index
    %162 = vector.load %arg17[%c0_82, %c0_83] : memref<256x512xf32, #tpu.memory_space<vmem>>, vector<256x512xf32>
    %cst_84 = arith.constant dense<0.000000e+00> : vector<8x512xf32>
    %163 = tpu.matmul %161, %162, %cst_84 {dimension_numbers = #tpu.dot_dimension_numbers<[1], [0], [0], [1], [0, 0, 1, 1], [], []>} : vector<8x256xf32>, vector<256x512xf32>, vector<8x512xf32> -> vector<8x512xf32>
    %c0_85 = arith.constant 0 : index
    %c0_86 = arith.constant 0 : index
    %164 = vector.load %arg18[%c0_85, %c0_86] : memref<1x512xf32, #tpu.memory_space<vmem>>, vector<1x512xf32>
    %165 = vector.broadcast %164 : vector<1x512xf32> to vector<8x512xf32>
    %166 = arith.addf %163, %165 : vector<8x512xf32>
    %167 = vector.extract_strided_slice %166 {offsets = [0, 0], sizes = [8, 128], strides = [1, 1]} : vector<8x512xf32> to vector<8x128xf32>
    %168 = arith.negf %167 : vector<8x128xf32>
    %169 = math.exp %168 : vector<8x128xf32>
    %cst_87 = arith.constant 1.000000e+00 : f32
    %170 = vector.broadcast %cst_87 : f32 to vector<8x128xf32>
    %171 = arith.addf %170, %169 : vector<8x128xf32>
    %172 = arith.divf %170, %171 : vector<8x128xf32>
    %173 = vector.extract_strided_slice %166 {offsets = [0, 128], sizes = [8, 128], strides = [1, 1]} : vector<8x512xf32> to vector<8x128xf32>
    %174 = arith.negf %173 : vector<8x128xf32>
    %175 = math.exp %174 : vector<8x128xf32>
    %cst_88 = arith.constant 1.000000e+00 : f32
    %176 = vector.broadcast %cst_88 : f32 to vector<8x128xf32>
    %177 = arith.addf %176, %175 : vector<8x128xf32>
    %178 = arith.divf %176, %177 : vector<8x128xf32>
    %179 = vector.extract_strided_slice %166 {offsets = [0, 256], sizes = [8, 128], strides = [1, 1]} : vector<8x512xf32> to vector<8x128xf32>
    %180 = math.tanh %179 : vector<8x128xf32>
    %181 = vector.extract_strided_slice %166 {offsets = [0, 384], sizes = [8, 128], strides = [1, 1]} : vector<8x512xf32> to vector<8x128xf32>
    %182 = arith.negf %181 : vector<8x128xf32>
    %183 = math.exp %182 : vector<8x128xf32>
    %cst_89 = arith.constant 1.000000e+00 : f32
    %184 = vector.broadcast %cst_89 : f32 to vector<8x128xf32>
    %185 = arith.addf %184, %183 : vector<8x128xf32>
    %186 = arith.divf %184, %185 : vector<8x128xf32>
    %187 = arith.mulf %178, %156 : vector<8x128xf32>
    %188 = arith.mulf %172, %180 : vector<8x128xf32>
    %189 = arith.addf %187, %188 : vector<8x128xf32>
    %190 = math.tanh %189 : vector<8x128xf32>
    %191 = arith.mulf %186, %190 : vector<8x128xf32>
    %c0_90 = arith.constant 0 : index
    %c0_91 = arith.constant 0 : index
    %192 = vector.load %arg23[%c0_90, %c0_91] : memref<32x128xf32, #tpu.memory_space<vmem>>, vector<8x128xf32>
    tpu.vector_store %arg23[%c0_90, %c0_91], %191 {strides = array<i32>} : memref<32x128xf32, #tpu.memory_space<vmem>>, vector<8x128xf32>,
    %c0_92 = arith.constant 0 : index
    %c128 = arith.constant 128 : index
    %193 = vector.load %arg26[%c0_92, %c128] : memref<8x256xf32, #tpu.memory_space<vmem>>, vector<8x128xf32>
    tpu.vector_store %arg26[%c0_92, %c128], %191 {strides = array<i32>} : memref<8x256xf32, #tpu.memory_space<vmem>>, vector<8x128xf32>,
    %c8_93 = arith.constant 8 : index
    %c0_94 = arith.constant 0 : index
    %194 = vector.load %arg3[%c8_93, %c0_94] : memref<40x5xf32, #tpu.memory_space<vmem>>, vector<8x5xf32>
    %cst_95 = arith.constant -5.000000e+00 : f32
    %195 = vector.broadcast %cst_95 : f32 to vector<8x5xf32>
    %196 = arith.cmpf oeq, %194, %195 : vector<8x5xf32>
    %197 = vector.extract_strided_slice %191 {offsets = [0, 32], sizes = [8, 5], strides = [1, 1]} : vector<8x128xf32> to vector<8x5xf32>
    %198 = arith.select %196, %197, %194 : vector<8x5xi1>, vector<8x5xf32>
    %199 = vector.extract_strided_slice %153 {offsets = [8, 0], sizes = [8, 32], strides = [1, 1]} : vector<40x32xf32> to vector<8x32xf32>
    %c0_96 = arith.constant 0 : index
    %c0_97 = arith.constant 0 : index
    %200 = vector.load %arg26[%c0_96, %c0_97] : memref<8x256xf32, #tpu.memory_space<vmem>>, vector<8x32xf32>
    tpu.vector_store %arg26[%c0_96, %c0_97], %199 {strides = array<i32>} : memref<8x256xf32, #tpu.memory_space<vmem>>, vector<8x32xf32>,
    %c0_98 = arith.constant 0 : index
    %c32_99 = arith.constant 32 : index
    %201 = vector.load %arg26[%c0_98, %c32_99] : memref<8x256xf32, #tpu.memory_space<vmem>>, vector<8x5xf32>
    tpu.vector_store %arg26[%c0_98, %c32_99], %198 {strides = array<i32>} : memref<8x256xf32, #tpu.memory_space<vmem>>, vector<8x5xf32>,
    %c0_100 = arith.constant 0 : index
    %c0_101 = arith.constant 0 : index
    %202 = vector.load %arg26[%c0_100, %c0_101] : memref<8x256xf32, #tpu.memory_space<vmem>>, vector<8x256xf32>
    %c0_102 = arith.constant 0 : index
    %c0_103 = arith.constant 0 : index
    %203 = vector.load %arg17[%c0_102, %c0_103] : memref<256x512xf32, #tpu.memory_space<vmem>>, vector<256x512xf32>
    %cst_104 = arith.constant dense<0.000000e+00> : vector<8x512xf32>
    %204 = tpu.matmul %202, %203, %cst_104 {dimension_numbers = #tpu.dot_dimension_numbers<[1], [0], [0], [1], [0, 0, 1, 1], [], []>} : vector<8x256xf32>, vector<256x512xf32>, vector<8x512xf32> -> vector<8x512xf32>
    %c0_105 = arith.constant 0 : index
    %c0_106 = arith.constant 0 : index
    %205 = vector.load %arg18[%c0_105, %c0_106] : memref<1x512xf32, #tpu.memory_space<vmem>>, vector<1x512xf32>
    %206 = vector.broadcast %205 : vector<1x512xf32> to vector<8x512xf32>
    %207 = arith.addf %204, %206 : vector<8x512xf32>
    %208 = vector.extract_strided_slice %207 {offsets = [0, 0], sizes = [8, 128], strides = [1, 1]} : vector<8x512xf32> to vector<8x128xf32>
    %209 = arith.negf %208 : vector<8x128xf32>
    %210 = math.exp %209 : vector<8x128xf32>
    %cst_107 = arith.constant 1.000000e+00 : f32
    %211 = vector.broadcast %cst_107 : f32 to vector<8x128xf32>
    %212 = arith.addf %211, %210 : vector<8x128xf32>
    %213 = arith.divf %211, %212 : vector<8x128xf32>
    %214 = vector.extract_strided_slice %207 {offsets = [0, 128], sizes = [8, 128], strides = [1, 1]} : vector<8x512xf32> to vector<8x128xf32>
    %215 = arith.negf %214 : vector<8x128xf32>
    %216 = math.exp %215 : vector<8x128xf32>
    %cst_108 = arith.constant 1.000000e+00 : f32
    %217 = vector.broadcast %cst_108 : f32 to vector<8x128xf32>
    %218 = arith.addf %217, %216 : vector<8x128xf32>
    %219 = arith.divf %217, %218 : vector<8x128xf32>
    %220 = vector.extract_strided_slice %207 {offsets = [0, 256], sizes = [8, 128], strides = [1, 1]} : vector<8x512xf32> to vector<8x128xf32>
    %221 = math.tanh %220 : vector<8x128xf32>
    %222 = vector.extract_strided_slice %207 {offsets = [0, 384], sizes = [8, 128], strides = [1, 1]} : vector<8x512xf32> to vector<8x128xf32>
    %223 = arith.negf %222 : vector<8x128xf32>
    %224 = math.exp %223 : vector<8x128xf32>
    %cst_109 = arith.constant 1.000000e+00 : f32
    %225 = vector.broadcast %cst_109 : f32 to vector<8x128xf32>
    %226 = arith.addf %225, %224 : vector<8x128xf32>
    %227 = arith.divf %225, %226 : vector<8x128xf32>
    %228 = arith.mulf %219, %189 : vector<8x128xf32>
    %229 = arith.mulf %213, %221 : vector<8x128xf32>
    %230 = arith.addf %228, %229 : vector<8x128xf32>
    %231 = math.tanh %230 : vector<8x128xf32>
    %232 = arith.mulf %227, %231 : vector<8x128xf32>
    %c0_110 = arith.constant 0 : index
    %c128_111 = arith.constant 128 : index
    %233 = vector.load %arg26[%c0_110, %c128_111] : memref<8x256xf32, #tpu.memory_space<vmem>>, vector<8x128xf32>
    tpu.vector_store %arg26[%c0_110, %c128_111], %232 {strides = array<i32>} : memref<8x256xf32, #tpu.memory_space<vmem>>, vector<8x128xf32>,
    %c8_112 = arith.constant 8 : index
    %c0_113 = arith.constant 0 : index
    %234 = vector.load %arg23[%c8_112, %c0_113] : memref<32x128xf32, #tpu.memory_space<vmem>>, vector<8x128xf32>
    tpu.vector_store %arg23[%c8_112, %c0_113], %232 {strides = array<i32>} : memref<32x128xf32, #tpu.memory_space<vmem>>, vector<8x128xf32>,
    %c16_114 = arith.constant 16 : index
    %c0_115 = arith.constant 0 : index
    %235 = vector.load %arg3[%c16_114, %c0_115] : memref<40x5xf32, #tpu.memory_space<vmem>>, vector<8x5xf32>
    %cst_116 = arith.constant -5.000000e+00 : f32
    %236 = vector.broadcast %cst_116 : f32 to vector<8x5xf32>
    %237 = arith.cmpf oeq, %235, %236 : vector<8x5xf32>
    %238 = vector.extract_strided_slice %232 {offsets = [0, 32], sizes = [8, 5], strides = [1, 1]} : vector<8x128xf32> to vector<8x5xf32>
    %239 = arith.select %237, %238, %235 : vector<8x5xi1>, vector<8x5xf32>
    %240 = vector.extract_strided_slice %153 {offsets = [16, 0], sizes = [8, 32], strides = [1, 1]} : vector<40x32xf32> to vector<8x32xf32>
    %c0_117 = arith.constant 0 : index
    %c0_118 = arith.constant 0 : index
    %241 = vector.load %arg26[%c0_117, %c0_118] : memref<8x256xf32, #tpu.memory_space<vmem>>, vector<8x32xf32>
    tpu.vector_store %arg26[%c0_117, %c0_118], %240 {strides = array<i32>} : memref<8x256xf32, #tpu.memory_space<vmem>>, vector<8x32xf32>,
    %c0_119 = arith.constant 0 : index
    %c32_120 = arith.constant 32 : index
    %242 = vector.load %arg26[%c0_119, %c32_120] : memref<8x256xf32, #tpu.memory_space<vmem>>, vector<8x5xf32>
    tpu.vector_store %arg26[%c0_119, %c32_120], %239 {strides = array<i32>} : memref<8x256xf32, #tpu.memory_space<vmem>>, vector<8x5xf32>,
    %c0_121 = arith.constant 0 : index
    %c0_122 = arith.constant 0 : index
    %243 = vector.load %arg26[%c0_121, %c0_122] : memref<8x256xf32, #tpu.memory_space<vmem>>, vector<8x256xf32>
    %c0_123 = arith.constant 0 : index
    %c0_124 = arith.constant 0 : index
    %244 = vector.load %arg17[%c0_123, %c0_124] : memref<256x512xf32, #tpu.memory_space<vmem>>, vector<256x512xf32>
    %cst_125 = arith.constant dense<0.000000e+00> : vector<8x512xf32>
    %245 = tpu.matmul %243, %244, %cst_125 {dimension_numbers = #tpu.dot_dimension_numbers<[1], [0], [0], [1], [0, 0, 1, 1], [], []>} : vector<8x256xf32>, vector<256x512xf32>, vector<8x512xf32> -> vector<8x512xf32>
    %c0_126 = arith.constant 0 : index
    %c0_127 = arith.constant 0 : index
    %246 = vector.load %arg18[%c0_126, %c0_127] : memref<1x512xf32, #tpu.memory_space<vmem>>, vector<1x512xf32>
    %247 = vector.broadcast %246 : vector<1x512xf32> to vector<8x512xf32>
    %248 = arith.addf %245, %247 : vector<8x512xf32>
    %249 = vector.extract_strided_slice %248 {offsets = [0, 0], sizes = [8, 128], strides = [1, 1]} : vector<8x512xf32> to vector<8x128xf32>
    %250 = arith.negf %249 : vector<8x128xf32>
    %251 = math.exp %250 : vector<8x128xf32>
    %cst_128 = arith.constant 1.000000e+00 : f32
    %252 = vector.broadcast %cst_128 : f32 to vector<8x128xf32>
    %253 = arith.addf %252, %251 : vector<8x128xf32>
    %254 = arith.divf %252, %253 : vector<8x128xf32>
    %255 = vector.extract_strided_slice %248 {offsets = [0, 128], sizes = [8, 128], strides = [1, 1]} : vector<8x512xf32> to vector<8x128xf32>
    %256 = arith.negf %255 : vector<8x128xf32>
    %257 = math.exp %256 : vector<8x128xf32>
    %cst_129 = arith.constant 1.000000e+00 : f32
    %258 = vector.broadcast %cst_129 : f32 to vector<8x128xf32>
    %259 = arith.addf %258, %257 : vector<8x128xf32>
    %260 = arith.divf %258, %259 : vector<8x128xf32>
    %261 = vector.extract_strided_slice %248 {offsets = [0, 256], sizes = [8, 128], strides = [1, 1]} : vector<8x512xf32> to vector<8x128xf32>
    %262 = math.tanh %261 : vector<8x128xf32>
    %263 = vector.extract_strided_slice %248 {offsets = [0, 384], sizes = [8, 128], strides = [1, 1]} : vector<8x512xf32> to vector<8x128xf32>
    %264 = arith.negf %263 : vector<8x128xf32>
    %265 = math.exp %264 : vector<8x128xf32>
    %cst_130 = arith.constant 1.000000e+00 : f32
    %266 = vector.broadcast %cst_130 : f32 to vector<8x128xf32>
    %267 = arith.addf %266, %265 : vector<8x128xf32>
    %268 = arith.divf %266, %267 : vector<8x128xf32>
    %269 = arith.mulf %260, %230 : vector<8x128xf32>
    %270 = arith.mulf %254, %262 : vector<8x128xf32>
    %271 = arith.addf %269, %270 : vector<8x128xf32>
    %272 = math.tanh %271 : vector<8x128xf32>
    %273 = arith.mulf %268, %272 : vector<8x128xf32>
    %c0_131 = arith.constant 0 : index
    %c128_132 = arith.constant 128 : index
    %274 = vector.load %arg26[%c0_131, %c128_132] : memref<8x256xf32, #tpu.memory_space<vmem>>, vector<8x128xf32>
    tpu.vector_store %arg26[%c0_131, %c128_132], %273 {strides = array<i32>} : memref<8x256xf32, #tpu.memory_space<vmem>>, vector<8x128xf32>,
    %c16_133 = arith.constant 16 : index
    %c0_134 = arith.constant 0 : index
    %275 = vector.load %arg23[%c16_133, %c0_134] : memref<32x128xf32, #tpu.memory_space<vmem>>, vector<8x128xf32>
    tpu.vector_store %arg23[%c16_133, %c0_134], %273 {strides = array<i32>} : memref<32x128xf32, #tpu.memory_space<vmem>>, vector<8x128xf32>,
    %c24_135 = arith.constant 24 : index
    %c0_136 = arith.constant 0 : index
    %276 = vector.load %arg3[%c24_135, %c0_136] : memref<40x5xf32, #tpu.memory_space<vmem>>, vector<8x5xf32>
    %cst_137 = arith.constant -5.000000e+00 : f32
    %277 = vector.broadcast %cst_137 : f32 to vector<8x5xf32>
    %278 = arith.cmpf oeq, %276, %277 : vector<8x5xf32>
    %279 = vector.extract_strided_slice %273 {offsets = [0, 32], sizes = [8, 5], strides = [1, 1]} : vector<8x128xf32> to vector<8x5xf32>
    %280 = arith.select %278, %279, %276 : vector<8x5xi1>, vector<8x5xf32>
    %281 = vector.extract_strided_slice %153 {offsets = [24, 0], sizes = [8, 32], strides = [1, 1]} : vector<40x32xf32> to vector<8x32xf32>
    %c0_138 = arith.constant 0 : index
    %c0_139 = arith.constant 0 : index
    %282 = vector.load %arg26[%c0_138, %c0_139] : memref<8x256xf32, #tpu.memory_space<vmem>>, vector<8x32xf32>
    tpu.vector_store %arg26[%c0_138, %c0_139], %281 {strides = array<i32>} : memref<8x256xf32, #tpu.memory_space<vmem>>, vector<8x32xf32>,
    %c0_140 = arith.constant 0 : index
    %c32_141 = arith.constant 32 : index
    %283 = vector.load %arg26[%c0_140, %c32_141] : memref<8x256xf32, #tpu.memory_space<vmem>>, vector<8x5xf32>
    tpu.vector_store %arg26[%c0_140, %c32_141], %280 {strides = array<i32>} : memref<8x256xf32, #tpu.memory_space<vmem>>, vector<8x5xf32>,
    %c0_142 = arith.constant 0 : index
    %c0_143 = arith.constant 0 : index
    %284 = vector.load %arg26[%c0_142, %c0_143] : memref<8x256xf32, #tpu.memory_space<vmem>>, vector<8x256xf32>
    %c0_144 = arith.constant 0 : index
    %c0_145 = arith.constant 0 : index
    %285 = vector.load %arg17[%c0_144, %c0_145] : memref<256x512xf32, #tpu.memory_space<vmem>>, vector<256x512xf32>
    %cst_146 = arith.constant dense<0.000000e+00> : vector<8x512xf32>
    %286 = tpu.matmul %284, %285, %cst_146 {dimension_numbers = #tpu.dot_dimension_numbers<[1], [0], [0], [1], [0, 0, 1, 1], [], []>} : vector<8x256xf32>, vector<256x512xf32>, vector<8x512xf32> -> vector<8x512xf32>
    %c0_147 = arith.constant 0 : index
    %c0_148 = arith.constant 0 : index
    %287 = vector.load %arg18[%c0_147, %c0_148] : memref<1x512xf32, #tpu.memory_space<vmem>>, vector<1x512xf32>
    %288 = vector.broadcast %287 : vector<1x512xf32> to vector<8x512xf32>
    %289 = arith.addf %286, %288 : vector<8x512xf32>
    %290 = vector.extract_strided_slice %289 {offsets = [0, 0], sizes = [8, 128], strides = [1, 1]} : vector<8x512xf32> to vector<8x128xf32>
    %291 = arith.negf %290 : vector<8x128xf32>
    %292 = math.exp %291 : vector<8x128xf32>
    %cst_149 = arith.constant 1.000000e+00 : f32
    %293 = vector.broadcast %cst_149 : f32 to vector<8x128xf32>
    %294 = arith.addf %293, %292 : vector<8x128xf32>
    %295 = arith.divf %293, %294 : vector<8x128xf32>
    %296 = vector.extract_strided_slice %289 {offsets = [0, 128], sizes = [8, 128], strides = [1, 1]} : vector<8x512xf32> to vector<8x128xf32>
    %297 = arith.negf %296 : vector<8x128xf32>
    %298 = math.exp %297 : vector<8x128xf32>
    %cst_150 = arith.constant 1.000000e+00 : f32
    %299 = vector.broadcast %cst_150 : f32 to vector<8x128xf32>
    %300 = arith.addf %299, %298 : vector<8x128xf32>
    %301 = arith.divf %299, %300 : vector<8x128xf32>
    %302 = vector.extract_strided_slice %289 {offsets = [0, 256], sizes = [8, 128], strides = [1, 1]} : vector<8x512xf32> to vector<8x128xf32>
    %303 = math.tanh %302 : vector<8x128xf32>
    %304 = vector.extract_strided_slice %289 {offsets = [0, 384], sizes = [8, 128], strides = [1, 1]} : vector<8x512xf32> to vector<8x128xf32>
    %305 = arith.negf %304 : vector<8x128xf32>
    %306 = math.exp %305 : vector<8x128xf32>
    %cst_151 = arith.constant 1.000000e+00 : f32
    %307 = vector.broadcast %cst_151 : f32 to vector<8x128xf32>
    %308 = arith.addf %307, %306 : vector<8x128xf32>
    %309 = arith.divf %307, %308 : vector<8x128xf32>
    %310 = arith.mulf %301, %271 : vector<8x128xf32>
    %311 = arith.mulf %295, %303 : vector<8x128xf32>
    %312 = arith.addf %310, %311 : vector<8x128xf32>
    %313 = math.tanh %312 : vector<8x128xf32>
    %314 = arith.mulf %309, %313 : vector<8x128xf32>
    %c0_152 = arith.constant 0 : index
    %c128_153 = arith.constant 128 : index
    %315 = vector.load %arg26[%c0_152, %c128_153] : memref<8x256xf32, #tpu.memory_space<vmem>>, vector<8x128xf32>
    tpu.vector_store %arg26[%c0_152, %c128_153], %314 {strides = array<i32>} : memref<8x256xf32, #tpu.memory_space<vmem>>, vector<8x128xf32>,
    %c24_154 = arith.constant 24 : index
    %c0_155 = arith.constant 0 : index
    %316 = vector.load %arg23[%c24_154, %c0_155] : memref<32x128xf32, #tpu.memory_space<vmem>>, vector<8x128xf32>
    tpu.vector_store %arg23[%c24_154, %c0_155], %314 {strides = array<i32>} : memref<32x128xf32, #tpu.memory_space<vmem>>, vector<8x128xf32>,
    %c32_156 = arith.constant 32 : index
    %c0_157 = arith.constant 0 : index
    %317 = vector.load %arg3[%c32_156, %c0_157] : memref<40x5xf32, #tpu.memory_space<vmem>>, vector<8x5xf32>
    %cst_158 = arith.constant -5.000000e+00 : f32
    %318 = vector.broadcast %cst_158 : f32 to vector<8x5xf32>
    %319 = arith.cmpf oeq, %317, %318 : vector<8x5xf32>
    %320 = vector.extract_strided_slice %314 {offsets = [0, 32], sizes = [8, 5], strides = [1, 1]} : vector<8x128xf32> to vector<8x5xf32>
    %321 = arith.select %319, %320, %317 : vector<8x5xi1>, vector<8x5xf32>
    %322 = vector.extract_strided_slice %153 {offsets = [32, 0], sizes = [8, 32], strides = [1, 1]} : vector<40x32xf32> to vector<8x32xf32>
    %c0_159 = arith.constant 0 : index
    %c0_160 = arith.constant 0 : index
    %323 = vector.load %arg26[%c0_159, %c0_160] : memref<8x256xf32, #tpu.memory_space<vmem>>, vector<8x32xf32>
    tpu.vector_store %arg26[%c0_159, %c0_160], %322 {strides = array<i32>} : memref<8x256xf32, #tpu.memory_space<vmem>>, vector<8x32xf32>,
    %c0_161 = arith.constant 0 : index
    %c32_162 = arith.constant 32 : index
    %324 = vector.load %arg26[%c0_161, %c32_162] : memref<8x256xf32, #tpu.memory_space<vmem>>, vector<8x5xf32>
    tpu.vector_store %arg26[%c0_161, %c32_162], %321 {strides = array<i32>} : memref<8x256xf32, #tpu.memory_space<vmem>>, vector<8x5xf32>,
    %c0_163 = arith.constant 0 : index
    %c0_164 = arith.constant 0 : index
    %325 = vector.load %arg26[%c0_163, %c0_164] : memref<8x256xf32, #tpu.memory_space<vmem>>, vector<8x256xf32>
    %c0_165 = arith.constant 0 : index
    %c0_166 = arith.constant 0 : index
    %326 = vector.load %arg17[%c0_165, %c0_166] : memref<256x512xf32, #tpu.memory_space<vmem>>, vector<256x512xf32>
    %cst_167 = arith.constant dense<0.000000e+00> : vector<8x512xf32>
    %327 = tpu.matmul %325, %326, %cst_167 {dimension_numbers = #tpu.dot_dimension_numbers<[1], [0], [0], [1], [0, 0, 1, 1], [], []>} : vector<8x256xf32>, vector<256x512xf32>, vector<8x512xf32> -> vector<8x512xf32>
    %c0_168 = arith.constant 0 : index
    %c0_169 = arith.constant 0 : index
    %328 = vector.load %arg18[%c0_168, %c0_169] : memref<1x512xf32, #tpu.memory_space<vmem>>, vector<1x512xf32>
    %329 = vector.broadcast %328 : vector<1x512xf32> to vector<8x512xf32>
    %330 = arith.addf %327, %329 : vector<8x512xf32>
    %331 = vector.extract_strided_slice %330 {offsets = [0, 0], sizes = [8, 128], strides = [1, 1]} : vector<8x512xf32> to vector<8x128xf32>
    %332 = arith.negf %331 : vector<8x128xf32>
    %333 = math.exp %332 : vector<8x128xf32>
    %cst_170 = arith.constant 1.000000e+00 : f32
    %334 = vector.broadcast %cst_170 : f32 to vector<8x128xf32>
    %335 = arith.addf %334, %333 : vector<8x128xf32>
    %336 = arith.divf %334, %335 : vector<8x128xf32>
    %337 = vector.extract_strided_slice %330 {offsets = [0, 128], sizes = [8, 128], strides = [1, 1]} : vector<8x512xf32> to vector<8x128xf32>
    %338 = arith.negf %337 : vector<8x128xf32>
    %339 = math.exp %338 : vector<8x128xf32>
    %cst_171 = arith.constant 1.000000e+00 : f32
    %340 = vector.broadcast %cst_171 : f32 to vector<8x128xf32>
    %341 = arith.addf %340, %339 : vector<8x128xf32>
    %342 = arith.divf %340, %341 : vector<8x128xf32>
    %343 = vector.extract_strided_slice %330 {offsets = [0, 256], sizes = [8, 128], strides = [1, 1]} : vector<8x512xf32> to vector<8x128xf32>
    %344 = math.tanh %343 : vector<8x128xf32>
    %345 = vector.extract_strided_slice %330 {offsets = [0, 384], sizes = [8, 128], strides = [1, 1]} : vector<8x512xf32> to vector<8x128xf32>
    %346 = arith.negf %345 : vector<8x128xf32>
    %347 = math.exp %346 : vector<8x128xf32>
    %cst_172 = arith.constant 1.000000e+00 : f32
    %348 = vector.broadcast %cst_172 : f32 to vector<8x128xf32>
    %349 = arith.addf %348, %347 : vector<8x128xf32>
    %350 = arith.divf %348, %349 : vector<8x128xf32>
    %351 = arith.mulf %342, %312 : vector<8x128xf32>
    %352 = arith.mulf %336, %344 : vector<8x128xf32>
    %353 = arith.addf %351, %352 : vector<8x128xf32>
    %354 = math.tanh %353 : vector<8x128xf32>
    %355 = arith.mulf %350, %354 : vector<8x128xf32>
    %c0_173 = arith.constant 0 : index
    %c128_174 = arith.constant 128 : index
    %356 = vector.load %arg26[%c0_173, %c128_174] : memref<8x256xf32, #tpu.memory_space<vmem>>, vector<8x128xf32>
    tpu.vector_store %arg26[%c0_173, %c128_174], %355 {strides = array<i32>} : memref<8x256xf32, #tpu.memory_space<vmem>>, vector<8x128xf32>,
    %c0_175 = arith.constant 0 : index
    %c0_176 = arith.constant 0 : index
    %357 = vector.load %arg26[%c0_175, %c0_176] : memref<8x256xf32, #tpu.memory_space<vmem>>, vector<8x128xf32>
    tpu.vector_store %arg26[%c0_175, %c0_176], %355 {strides = array<i32>} : memref<8x256xf32, #tpu.memory_space<vmem>>, vector<8x128xf32>,
    %c0_177 = arith.constant 0 : index
    %c128_178 = arith.constant 128 : index
    %358 = vector.load %arg26[%c0_177, %c128_178] : memref<8x256xf32, #tpu.memory_space<vmem>>, vector<8x128xf32>
    tpu.vector_store %arg26[%c0_177, %c128_178], %355 {strides = array<i32>} : memref<8x256xf32, #tpu.memory_space<vmem>>, vector<8x128xf32>,
    %c0_179 = arith.constant 0 : index
    %c0_180 = arith.constant 0 : index
    %359 = vector.load %arg26[%c0_179, %c0_180] : memref<8x256xf32, #tpu.memory_space<vmem>>, vector<8x256xf32>
    %c0_181 = arith.constant 0 : index
    %c0_182 = arith.constant 0 : index
    %360 = vector.load %arg17[%c0_181, %c0_182] : memref<256x512xf32, #tpu.memory_space<vmem>>, vector<256x512xf32>
    %cst_183 = arith.constant dense<0.000000e+00> : vector<8x512xf32>
    %361 = tpu.matmul %359, %360, %cst_183 {dimension_numbers = #tpu.dot_dimension_numbers<[1], [0], [0], [1], [0, 0, 1, 1], [], []>} : vector<8x256xf32>, vector<256x512xf32>, vector<8x512xf32> -> vector<8x512xf32>
    %c0_184 = arith.constant 0 : index
    %c0_185 = arith.constant 0 : index
    %362 = vector.load %arg18[%c0_184, %c0_185] : memref<1x512xf32, #tpu.memory_space<vmem>>, vector<1x512xf32>
    %363 = vector.broadcast %362 : vector<1x512xf32> to vector<8x512xf32>
    %364 = arith.addf %361, %363 : vector<8x512xf32>
    %365 = vector.extract_strided_slice %364 {offsets = [0, 0], sizes = [8, 128], strides = [1, 1]} : vector<8x512xf32> to vector<8x128xf32>
    %366 = arith.negf %365 : vector<8x128xf32>
    %367 = math.exp %366 : vector<8x128xf32>
    %cst_186 = arith.constant 1.000000e+00 : f32
    %368 = vector.broadcast %cst_186 : f32 to vector<8x128xf32>
    %369 = arith.addf %368, %367 : vector<8x128xf32>
    %370 = arith.divf %368, %369 : vector<8x128xf32>
    %371 = vector.extract_strided_slice %364 {offsets = [0, 128], sizes = [8, 128], strides = [1, 1]} : vector<8x512xf32> to vector<8x128xf32>
    %372 = arith.negf %371 : vector<8x128xf32>
    %373 = math.exp %372 : vector<8x128xf32>
    %cst_187 = arith.constant 1.000000e+00 : f32
    %374 = vector.broadcast %cst_187 : f32 to vector<8x128xf32>
    %375 = arith.addf %374, %373 : vector<8x128xf32>
    %376 = arith.divf %374, %375 : vector<8x128xf32>
    %377 = vector.extract_strided_slice %364 {offsets = [0, 256], sizes = [8, 128], strides = [1, 1]} : vector<8x512xf32> to vector<8x128xf32>
    %378 = math.tanh %377 : vector<8x128xf32>
    %379 = vector.extract_strided_slice %364 {offsets = [0, 384], sizes = [8, 128], strides = [1, 1]} : vector<8x512xf32> to vector<8x128xf32>
    %380 = arith.negf %379 : vector<8x128xf32>
    %381 = math.exp %380 : vector<8x128xf32>
    %cst_188 = arith.constant 1.000000e+00 : f32
    %382 = vector.broadcast %cst_188 : f32 to vector<8x128xf32>
    %383 = arith.addf %382, %381 : vector<8x128xf32>
    %384 = arith.divf %382, %383 : vector<8x128xf32>
    %385 = arith.mulf %376, %353 : vector<8x128xf32>
    %386 = arith.mulf %370, %378 : vector<8x128xf32>
    %387 = arith.addf %385, %386 : vector<8x128xf32>
    %388 = math.tanh %387 : vector<8x128xf32>
    %389 = arith.mulf %384, %388 : vector<8x128xf32>
    %c0_189 = arith.constant 0 : index
    %c0_190 = arith.constant 0 : index
    %390 = vector.load %arg24[%c0_189, %c0_190] : memref<24x128xf32, #tpu.memory_space<vmem>>, vector<8x128xf32>
    tpu.vector_store %arg24[%c0_189, %c0_190], %389 {strides = array<i32>} : memref<24x128xf32, #tpu.memory_space<vmem>>, vector<8x128xf32>,
    %c0_191 = arith.constant 0 : index
    %c0_192 = arith.constant 0 : index
    %391 = vector.load %arg26[%c0_191, %c0_192] : memref<8x256xf32, #tpu.memory_space<vmem>>, vector<8x128xf32>
    tpu.vector_store %arg26[%c0_191, %c0_192], %389 {strides = array<i32>} : memref<8x256xf32, #tpu.memory_space<vmem>>, vector<8x128xf32>,
    %c0_193 = arith.constant 0 : index
    %c128_194 = arith.constant 128 : index
    %392 = vector.load %arg26[%c0_193, %c128_194] : memref<8x256xf32, #tpu.memory_space<vmem>>, vector<8x128xf32>
    tpu.vector_store %arg26[%c0_193, %c128_194], %389 {strides = array<i32>} : memref<8x256xf32, #tpu.memory_space<vmem>>, vector<8x128xf32>,
    %c0_195 = arith.constant 0 : index
    %c0_196 = arith.constant 0 : index
    %393 = vector.load %arg26[%c0_195, %c0_196] : memref<8x256xf32, #tpu.memory_space<vmem>>, vector<8x256xf32>
    %c0_197 = arith.constant 0 : index
    %c0_198 = arith.constant 0 : index
    %394 = vector.load %arg17[%c0_197, %c0_198] : memref<256x512xf32, #tpu.memory_space<vmem>>, vector<256x512xf32>
    %cst_199 = arith.constant dense<0.000000e+00> : vector<8x512xf32>
    %395 = tpu.matmul %393, %394, %cst_199 {dimension_numbers = #tpu.dot_dimension_numbers<[1], [0], [0], [1], [0, 0, 1, 1], [], []>} : vector<8x256xf32>, vector<256x512xf32>, vector<8x512xf32> -> vector<8x512xf32>
    %c0_200 = arith.constant 0 : index
    %c0_201 = arith.constant 0 : index
    %396 = vector.load %arg18[%c0_200, %c0_201] : memref<1x512xf32, #tpu.memory_space<vmem>>, vector<1x512xf32>
    %397 = vector.broadcast %396 : vector<1x512xf32> to vector<8x512xf32>
    %398 = arith.addf %395, %397 : vector<8x512xf32>
    %399 = vector.extract_strided_slice %398 {offsets = [0, 0], sizes = [8, 128], strides = [1, 1]} : vector<8x512xf32> to vector<8x128xf32>
    %400 = arith.negf %399 : vector<8x128xf32>
    %401 = math.exp %400 : vector<8x128xf32>
    %cst_202 = arith.constant 1.000000e+00 : f32
    %402 = vector.broadcast %cst_202 : f32 to vector<8x128xf32>
    %403 = arith.addf %402, %401 : vector<8x128xf32>
    %404 = arith.divf %402, %403 : vector<8x128xf32>
    %405 = vector.extract_strided_slice %398 {offsets = [0, 128], sizes = [8, 128], strides = [1, 1]} : vector<8x512xf32> to vector<8x128xf32>
    %406 = arith.negf %405 : vector<8x128xf32>
    %407 = math.exp %406 : vector<8x128xf32>
    %cst_203 = arith.constant 1.000000e+00 : f32
    %408 = vector.broadcast %cst_203 : f32 to vector<8x128xf32>
    %409 = arith.addf %408, %407 : vector<8x128xf32>
    %410 = arith.divf %408, %409 : vector<8x128xf32>
    %411 = vector.extract_strided_slice %398 {offsets = [0, 256], sizes = [8, 128], strides = [1, 1]} : vector<8x512xf32> to vector<8x128xf32>
    %412 = math.tanh %411 : vector<8x128xf32>
    %413 = vector.extract_strided_slice %398 {offsets = [0, 384], sizes = [8, 128], strides = [1, 1]} : vector<8x512xf32> to vector<8x128xf32>
    %414 = arith.negf %413 : vector<8x128xf32>
    %415 = math.exp %414 : vector<8x128xf32>
    %cst_204 = arith.constant 1.000000e+00 : f32
    %416 = vector.broadcast %cst_204 : f32 to vector<8x128xf32>
    %417 = arith.addf %416, %415 : vector<8x128xf32>
    %418 = arith.divf %416, %417 : vector<8x128xf32>
    %419 = arith.mulf %410, %387 : vector<8x128xf32>
    %420 = arith.mulf %404, %412 : vector<8x128xf32>
    %421 = arith.addf %419, %420 : vector<8x128xf32>
    %422 = math.tanh %421 : vector<8x128xf32>
    %423 = arith.mulf %418, %422 : vector<8x128xf32>
    %c8_205 = arith.constant 8 : index
    %c0_206 = arith.constant 0 : index
    %424 = vector.load %arg24[%c8_205, %c0_206] : memref<24x128xf32, #tpu.memory_space<vmem>>, vector<8x128xf32>
    tpu.vector_store %arg24[%c8_205, %c0_206], %423 {strides = array<i32>} : memref<24x128xf32, #tpu.memory_space<vmem>>, vector<8x128xf32>,
    %c0_207 = arith.constant 0 : index
    %c0_208 = arith.constant 0 : index
    %425 = vector.load %arg26[%c0_207, %c0_208] : memref<8x256xf32, #tpu.memory_space<vmem>>, vector<8x128xf32>
    tpu.vector_store %arg26[%c0_207, %c0_208], %423 {strides = array<i32>} : memref<8x256xf32, #tpu.memory_space<vmem>>, vector<8x128xf32>,
    %c0_209 = arith.constant 0 : index
    %c128_210 = arith.constant 128 : index
    %426 = vector.load %arg26[%c0_209, %c128_210] : memref<8x256xf32, #tpu.memory_space<vmem>>, vector<8x128xf32>
    tpu.vector_store %arg26[%c0_209, %c128_210], %423 {strides = array<i32>} : memref<8x256xf32, #tpu.memory_space<vmem>>, vector<8x128xf32>,
    %c0_211 = arith.constant 0 : index
    %c0_212 = arith.constant 0 : index
    %427 = vector.load %arg26[%c0_211, %c0_212] : memref<8x256xf32, #tpu.memory_space<vmem>>, vector<8x256xf32>
    %c0_213 = arith.constant 0 : index
    %c0_214 = arith.constant 0 : index
    %428 = vector.load %arg17[%c0_213, %c0_214] : memref<256x512xf32, #tpu.memory_space<vmem>>, vector<256x512xf32>
    %cst_215 = arith.constant dense<0.000000e+00> : vector<8x512xf32>
    %429 = tpu.matmul %427, %428, %cst_215 {dimension_numbers = #tpu.dot_dimension_numbers<[1], [0], [0], [1], [0, 0, 1, 1], [], []>} : vector<8x256xf32>, vector<256x512xf32>, vector<8x512xf32> -> vector<8x512xf32>
    %c0_216 = arith.constant 0 : index
    %c0_217 = arith.constant 0 : index
    %430 = vector.load %arg18[%c0_216, %c0_217] : memref<1x512xf32, #tpu.memory_space<vmem>>, vector<1x512xf32>
    %431 = vector.broadcast %430 : vector<1x512xf32> to vector<8x512xf32>
    %432 = arith.addf %429, %431 : vector<8x512xf32>
    %433 = vector.extract_strided_slice %432 {offsets = [0, 0], sizes = [8, 128], strides = [1, 1]} : vector<8x512xf32> to vector<8x128xf32>
    %434 = arith.negf %433 : vector<8x128xf32>
    %435 = math.exp %434 : vector<8x128xf32>
    %cst_218 = arith.constant 1.000000e+00 : f32
    %436 = vector.broadcast %cst_218 : f32 to vector<8x128xf32>
    %437 = arith.addf %436, %435 : vector<8x128xf32>
    %438 = arith.divf %436, %437 : vector<8x128xf32>
    %439 = vector.extract_strided_slice %432 {offsets = [0, 128], sizes = [8, 128], strides = [1, 1]} : vector<8x512xf32> to vector<8x128xf32>
    %440 = arith.negf %439 : vector<8x128xf32>
    %441 = math.exp %440 : vector<8x128xf32>
    %cst_219 = arith.constant 1.000000e+00 : f32
    %442 = vector.broadcast %cst_219 : f32 to vector<8x128xf32>
    %443 = arith.addf %442, %441 : vector<8x128xf32>
    %444 = arith.divf %442, %443 : vector<8x128xf32>
    %445 = vector.extract_strided_slice %432 {offsets = [0, 256], sizes = [8, 128], strides = [1, 1]} : vector<8x512xf32> to vector<8x128xf32>
    %446 = math.tanh %445 : vector<8x128xf32>
    %447 = vector.extract_strided_slice %432 {offsets = [0, 384], sizes = [8, 128], strides = [1, 1]} : vector<8x512xf32> to vector<8x128xf32>
    %448 = arith.negf %447 : vector<8x128xf32>
    %449 = math.exp %448 : vector<8x128xf32>
    %cst_220 = arith.constant 1.000000e+00 : f32
    %450 = vector.broadcast %cst_220 : f32 to vector<8x128xf32>
    %451 = arith.addf %450, %449 : vector<8x128xf32>
    %452 = arith.divf %450, %451 : vector<8x128xf32>
    %453 = arith.mulf %444, %421 : vector<8x128xf32>
    %454 = arith.mulf %438, %446 : vector<8x128xf32>
    %455 = arith.addf %453, %454 : vector<8x128xf32>
    %456 = math.tanh %455 : vector<8x128xf32>
    %457 = arith.mulf %452, %456 : vector<8x128xf32>
    %c16_221 = arith.constant 16 : index
    %c0_222 = arith.constant 0 : index
    %458 = vector.load %arg24[%c16_221, %c0_222] : memref<24x128xf32, #tpu.memory_space<vmem>>, vector<8x128xf32>
    tpu.vector_store %arg24[%c16_221, %c0_222], %457 {strides = array<i32>} : memref<24x128xf32, #tpu.memory_space<vmem>>, vector<8x128xf32>,
    %c0_223 = arith.constant 0 : index
    %c0_224 = arith.constant 0 : index
    %459 = vector.load %arg19[%c0_223, %c0_224] : memref<128x3xf32, #tpu.memory_space<vmem>>, vector<128x3xf32>
    %cst_225 = arith.constant dense<0.000000e+00> : vector<8x3xf32>
    %460 = tpu.matmul %457, %459, %cst_225 {dimension_numbers = #tpu.dot_dimension_numbers<[1], [0], [0], [1], [0, 0, 1, 1], [], []>} : vector<8x128xf32>, vector<128x3xf32>, vector<8x3xf32> -> vector<8x3xf32>
    %c0_226 = arith.constant 0 : index
    %c0_227 = arith.constant 0 : index
    %461 = vector.load %arg20[%c0_226, %c0_227] : memref<1x3xf32, #tpu.memory_space<vmem>>, vector<1x3xf32>
    %462 = vector.broadcast %461 : vector<1x3xf32> to vector<8x3xf32>
    %463 = arith.addf %460, %462 : vector<8x3xf32>
    %c0_228 = arith.constant 0 : index
    %c0_229 = arith.constant 0 : index
    %464 = vector.load %arg25[%c0_228, %c0_229] : memref<8x3xf32, #tpu.memory_space<vmem>>, vector<8x3xf32>
    tpu.vector_store %arg25[%c0_228, %c0_229], %463 {strides = array<i32>} : memref<8x3xf32, #tpu.memory_space<vmem>>, vector<8x3xf32>,
    return
  }
}

</mosaic_0001>

<llo_original>
// kernel: generator_forward.1
$region0: #{generator_forward.1}
  #allocation0 [shape = 'u32[]', space=smem, size = 0x4, offset = 0x4, fixed_abs, tag = 'smem constant byte address 0x4 - core index']
  #allocation1 [shape = 'u32[144,128]{1,0:T(1,128)}', space=vmem, size = 0x12000, scoped, tag = 'internal scratch']
  #allocation2 [shape = 'f32[8,256]{1,0:T(8,128)}', space=vmem, size = 0x2000, scoped, tag = 'scratch operand']
  #allocation3 [shape = 'f32[40,32]{1,0:T(8,128)}', space=vmem, size = 0x5000, scoped, tag = 'scratch operand']
  %s0 = inlined_call_operand.vmem [shape: f32[40,32], index: 0, kind: input, shape index: {}]
  %s1 = inlined_call_operand.vmem [shape: f32[40,32], index: 1, kind: input, shape index: {}]
  %s2 = inlined_call_operand.vmem [shape: f32[40,5], index: 2, kind: input, shape index: {}]
  %s3 = inlined_call_operand.vmem [shape: f32[40,5], index: 3, kind: input, shape index: {}]
  %s4 = inlined_call_operand.hbm [shape: f32[32,32], index: 4, kind: input, shape index: {}]
  %s5 = inlined_call_operand.hbm [shape: f32[32,32], index: 5, kind: input, shape index: {}]
  %s6 = inlined_call_operand.vmem [shape: f32[1,32], index: 6, kind: input, shape index: {}]
  %s7 = inlined_call_operand.hbm [shape: f32[32,32], index: 7, kind: input, shape index: {}]
  %s8 = inlined_call_operand.vmem [shape: f32[1,32], index: 8, kind: input, shape index: {}]
  %s9 = inlined_call_operand.hbm [shape: f32[32,32], index: 9, kind: input, shape index: {}]
  %s10 = inlined_call_operand.hbm [shape: f32[1,32], index: 10, kind: input, shape index: {}]
  %s11 = inlined_call_operand.vmem [shape: f32[1,32], index: 11, kind: input, shape index: {}]
  %s12 = inlined_call_operand.vmem [shape: f32[5,32], index: 12, kind: input, shape index: {}]
  %s13 = inlined_call_operand.vmem [shape: f32[5,1], index: 13, kind: input, shape index: {}]
  %s14 = inlined_call_operand.hbm [shape: f32[32,32], index: 14, kind: input, shape index: {}]
  %s15 = inlined_call_operand.vmem [shape: f32[5,32], index: 15, kind: input, shape index: {}]
  %s16 = inlined_call_operand.vmem [shape: f32[1,32], index: 16, kind: input, shape index: {}]
  %s17 = inlined_call_operand.hbm [shape: f32[256,512], index: 17, kind: input, shape index: {}]
  %s18 = inlined_call_operand.vmem [shape: f32[1,512], index: 18, kind: input, shape index: {}]
  %s19 = inlined_call_operand.vmem [shape: f32[128,3], index: 19, kind: input, shape index: {}]
  %s20 = inlined_call_operand.vmem [shape: f32[1,3], index: 20, kind: input, shape index: {}]
  %s21 = inlined_call_operand.hbm [shape: f32[40,32], index: 21, kind: output, shape index: {0}]
  %s22 = inlined_call_operand.vmem [shape: f32[40,32], index: 22, kind: output, shape index: {1}]
  %s23 = inlined_call_operand.vmem [shape: f32[32,128], index: 23, kind: output, shape index: {2}]
  %s24 = inlined_call_operand.vmem [shape: f32[24,128], index: 24, kind: output, shape index: {3}]
  %s25 = inlined_call_operand.vmem [shape: f32[8,3], index: 25, kind: output, shape index: {4}]
  %26 = xla_tuple %s21, %s22, %s23, %s24, %s25
  %s27 = sld [smem:[#allocation0]]
  $region154: #{generator_forward.1} parent=0
    _
  %s29 = ssub.s32 1, %s27
  %s30 = scalar_select 0, %s29, %s27
  $region1: #{generator_forward.1} parent=0
    #allocation4 [shape = 'u8[16384]{0}', space=vmem, size = 0x4000, scoped, tag = 'input window, operand 4, single buffered']
    #allocation5 [shape = 's32[1]{0}', space=sflag, size = 0x4, scoped, tag = 'scoped memory for generator_forward.1']
    #allocation6 [shape = 's32[1]{0}', space=sflag, size = 0x4, scoped, tag = 'scoped memory for generator_forward.1']
    #allocation7 [shape = 'u8[16384]{0}', space=vmem, size = 0x4000, scoped, tag = 'input window, operand 5, single buffered']
    #allocation8 [shape = 's32[1]{0}', space=sflag, size = 0x4, scoped, tag = 'scoped memory for generator_forward.1']
    #allocation9 [shape = 'u8[16384]{0}', space=vmem, size = 0x4000, scoped, tag = 'input window, operand 7, single buffered']
    #allocation10 [shape = 'u8[16384]{0}', space=vmem, size = 0x4000, scoped, tag = 'input window, operand 9, single buffered']
    #allocation11 [shape = 's32[1]{0}', space=sflag, size = 0x4, scoped, tag = 'scoped memory for generator_forward.1']
    #allocation12 [shape = 'u8[512]{0}', space=vmem, size = 0x400, scoped, tag = 'input window, operand 10, single buffered']
    #allocation13 [shape = 'u8[16384]{0}', space=vmem, size = 0x4000, scoped, tag = 'input window, operand 14, single buffered']
    #allocation14 [shape = 's32[1]{0}', space=sflag, size = 0x4, scoped, tag = 'scoped memory for generator_forward.1']
    #allocation15 [shape = 'u8[524288]{0}', space=vmem, size = 0x80000, scoped, tag = 'input window, operand 17, single buffered']
    #allocation16 [shape = 'u8[20480]{0}', space=vmem, size = 0x5000, scoped, tag = 'output window, operand 0, single buffered']
    %31 = vsyncpa [#allocation5], 0
    %32 = vsyncpa [#allocation8], 0
    %33 = vsyncpa [#allocation11], 0
    %34 = vsyncpa [#allocation14], 0
    %35 = vsyncpa [#allocation6], 0
    // Predicated region
    $region2: #{generator_forward.1} parent=1 // pred_check
      _
    $region3: #{generator_forward.1} parent=1 // pred_check_branch
      %37 = sbr.rel (0) target = $region5
    $region4: #{generator_forward.1} parent=1 // pred_region
      _
    $region5: #{generator_forward.1} parent=1 // pred_fallthru
      _
    // Predicated region
    $region6: #{generator_forward.1} parent=1 // pred_check
      _
    $region7: #{generator_forward.1} parent=1 // pred_check_branch
      %39 = sbr.rel (0) target = $region9
    $region8: #{generator_forward.1} parent=1 // pred_region
      _
    $region9: #{generator_forward.1} parent=1 // pred_fallthru
      _
    // Predicated region
    $region10: #{generator_forward.1} parent=1 // pred_check
      _
    $region11: #{generator_forward.1} parent=1 // pred_check_branch
      %41 = sbr.rel (0) target = $region13
    $region12: #{generator_forward.1} parent=1 // pred_region
      _
    $region13: #{generator_forward.1} parent=1 // pred_fallthru
      _
    // Predicated region
    $region14: #{generator_forward.1} parent=1 // pred_check
      _
    $region15: #{generator_forward.1} parent=1 // pred_check_branch
      %43 = sbr.rel (0) target = $region17
    $region16: #{generator_forward.1} parent=1 // pred_region
      _
    $region17: #{generator_forward.1} parent=1 // pred_fallthru
      _
    // Predicated region
    $region18: #{generator_forward.1} parent=1 // pred_check
      _
    $region19: #{generator_forward.1} parent=1 // pred_check_branch
      %45 = sbr.rel (0) target = $region21
    $region20: #{generator_forward.1} parent=1 // pred_region
      %s47 = ssub.s32 512, 512
      %48 = vsyncadd [#allocation5], %s47
      %s49 = sshll.u32 [#allocation4], 4
      %s50 = int_to_ptr.vmem [resolvable:$true] %s49
      %55 = dma.hbm_to_vmem [thread:$0]  %s4, 512, %s50, [#allocation5], 128, 128, 8
    $region21: #{generator_forward.1} parent=1 // pred_fallthru
      _
    // Predicated region
    $region22: #{generator_forward.1} parent=1 // pred_check
      _
    $region23: #{generator_forward.1} parent=1 // pred_check_branch
      %57 = sbr.rel (0) target = $region25
    $region24: #{generator_forward.1} parent=1 // pred_region
      %s59 = ssub.s32 512, 512
      %60 = vsyncadd [#allocation8], %s59
      %s61 = sshll.u32 [#allocation7], 4
      %s62 = int_to_ptr.vmem [resolvable:$true] %s61
      %67 = dma.hbm_to_vmem [thread:$0]  %s5, 512, %s62, [#allocation8], 128, 128, 8
    $region25: #{generator_forward.1} parent=1 // pred_fallthru
      _
    // Predicated region
    $region26: #{generator_forward.1} parent=1 // pred_check
      _
    $region27: #{generator_forward.1} parent=1 // pred_check_branch
      %69 = sbr.rel (0) target = $region29
    $region28: #{generator_forward.1} parent=1 // pred_region
      _
    $region29: #{generator_forward.1} parent=1 // pred_fallthru
      _
    // Predicated region
    $region30: #{generator_forward.1} parent=1 // pred_check
      _
    $region31: #{generator_forward.1} parent=1 // pred_check_branch
      %71 = sbr.rel (0) target = $region33
    $region32: #{generator_forward.1} parent=1 // pred_region
      %s73 = ssub.s32 512, 512
      %74 = vsyncadd [#allocation8], %s73
      %s75 = sshll.u32 [#allocation9], 4
      %s76 = int_to_ptr.vmem [resolvable:$true] %s75
      %81 = dma.hbm_to_vmem [thread:$0]  %s7, 512, %s76, [#allocation8], 128, 128, 8
    $region33: #{generator_forward.1} parent=1 // pred_fallthru
      _
    // Predicated region
    $region34: #{generator_forward.1} parent=1 // pred_check
      _
    $region35: #{generator_forward.1} parent=1 // pred_check_branch
      %83 = sbr.rel (0) target = $region37
    $region36: #{generator_forward.1} parent=1 // pred_region
      _
    $region37: #{generator_forward.1} parent=1 // pred_fallthru
      _
    // Predicated region
    $region38: #{generator_forward.1} parent=1 // pred_check
      _
    $region39: #{generator_forward.1} parent=1 // pred_check_branch
      %85 = sbr.rel (0) target = $region41
    $region40: #{generator_forward.1} parent=1 // pred_region
      %s87 = ssub.s32 512, 512
      %88 = vsyncadd [#allocation11], %s87
      %s89 = sshll.u32 [#allocation10], 4
      %s90 = int_to_ptr.vmem [resolvable:$true] %s89
      %95 = dma.hbm_to_vmem [thread:$0]  %s9, 512, %s90, [#allocation11], 128, 128, 8
    $region41: #{generator_forward.1} parent=1 // pred_fallthru
      _
    // Predicated region
    $region42: #{generator_forward.1} parent=1 // pred_check
      _
    $region43: #{generator_forward.1} parent=1 // pred_check_branch
      %97 = sbr.rel (0) target = $region45
    $region44: #{generator_forward.1} parent=1 // pred_region
      %s99 = ssub.s32 16, 16
      %100 = vsyncadd [#allocation11], %s99
      %s102 = sshll.u32 [#allocation12], 4
      %s103 = int_to_ptr.vmem [resolvable:$true] %s102
      %105 = dma.hbm_to_vmem [thread:$0]  %s10, 16, %s103, [#allocation11]
    $region45: #{generator_forward.1} parent=1 // pred_fallthru
      _
    // Predicated region
    $region46: #{generator_forward.1} parent=1 // pred_check
      _
    $region47: #{generator_forward.1} parent=1 // pred_check_branch
      %107 = sbr.rel (0) target = $region49
    $region48: #{generator_forward.1} parent=1 // pred_region
      _
    $region49: #{generator_forward.1} parent=1 // pred_fallthru
      _
    // Predicated region
    $region50: #{generator_forward.1} parent=1 // pred_check
      _
    $region51: #{generator_forward.1} parent=1 // pred_check_branch
      %109 = sbr.rel (0) target = $region53
    $region52: #{generator_forward.1} parent=1 // pred_region
      _
    $region53: #{generator_forward.1} parent=1 // pred_fallthru
      _
    // Predicated region
    $region54: #{generator_forward.1} parent=1 // pred_check
      _
    $region55: #{generator_forward.1} parent=1 // pred_check_branch
      %111 = sbr.rel (0) target = $region57
    $region56: #{generator_forward.1} parent=1 // pred_region
      _
    $region57: #{generator_forward.1} parent=1 // pred_fallthru
      _
    // Predicated region
    $region58: #{generator_forward.1} parent=1 // pred_check
      _
    $region59: #{generator_forward.1} parent=1 // pred_check_branch
      %113 = sbr.rel (0) target = $region61
    $region60: #{generator_forward.1} parent=1 // pred_region
      %s115 = ssub.s32 512, 512
      %116 = vsyncadd [#allocation14], %s115
      %s117 = sshll.u32 [#allocation13], 4
      %s118 = int_to_ptr.vmem [resolvable:$true] %s117
      %123 = dma.hbm_to_vmem [thread:$0]  %s14, 512, %s118, [#allocation14], 128, 128, 8
    $region61: #{generator_forward.1} parent=1 // pred_fallthru
      _
    // Predicated region
    $region62: #{generator_forward.1} parent=1 // pred_check
      _
    $region63: #{generator_forward.1} parent=1 // pred_check_branch
      %125 = sbr.rel (0) target = $region65
    $region64: #{generator_forward.1} parent=1 // pred_region
      _
    $region65: #{generator_forward.1} parent=1 // pred_fallthru
      _
    // Predicated region
    $region66: #{generator_forward.1} parent=1 // pred_check
      _
    $region67: #{generator_forward.1} parent=1 // pred_check_branch
      %127 = sbr.rel (0) target = $region69
    $region68: #{generator_forward.1} parent=1 // pred_region
      _
    $region69: #{generator_forward.1} parent=1 // pred_fallthru
      _
    // Predicated region
    $region70: #{generator_forward.1} parent=1 // pred_check
      _
    $region71: #{generator_forward.1} parent=1 // pred_check_branch
      %129 = sbr.rel (0) target = $region73
    $region72: #{generator_forward.1} parent=1 // pred_region
      %s131 = ssub.s32 16384, 16384
      %132 = vsyncadd [#allocation14], %s131
      %s133 = sshll.u32 [#allocation15], 4
      %s134 = int_to_ptr.vmem [resolvable:$true] %s133
      %139 = dma.hbm_to_vmem [thread:$0]  %s17, 16384, %s134, [#allocation14], 512, 512, 32
    $region73: #{generator_forward.1} parent=1 // pred_fallthru
      _
    // Predicated region
    $region74: #{generator_forward.1} parent=1 // pred_check
      _
    $region75: #{generator_forward.1} parent=1 // pred_check_branch
      %141 = sbr.rel (0) target = $region77
    $region76: #{generator_forward.1} parent=1 // pred_region
      _
    $region77: #{generator_forward.1} parent=1 // pred_fallthru
      _
    // Predicated region
    $region78: #{generator_forward.1} parent=1 // pred_check
      _
    $region79: #{generator_forward.1} parent=1 // pred_check_branch
      %143 = sbr.rel (0) target = $region81
    $region80: #{generator_forward.1} parent=1 // pred_region
      _
    $region81: #{generator_forward.1} parent=1 // pred_fallthru
      _
    // Predicated region
    $region82: #{generator_forward.1} parent=1 // pred_check
      _
    $region83: #{generator_forward.1} parent=1 // pred_check_branch
      %145 = sbr.rel (0) target = $region85
    $region84: #{generator_forward.1} parent=1 // pred_region
      _
    $region85: #{generator_forward.1} parent=1 // pred_fallthru
      _
    // Predicated region
    $region86: #{generator_forward.1} parent=1 // pred_check
      _
    $region87: #{generator_forward.1} parent=1 // pred_check_branch
      %147 = sbr.rel (0) target = $region89
    $region88: #{generator_forward.1} parent=1 // pred_region
      %148 = dma.done [#allocation5], 512
    $region89: #{generator_forward.1} parent=1 // pred_fallthru
      _
    // Predicated region
    $region90: #{generator_forward.1} parent=1 // pred_check
      _
    $region91: #{generator_forward.1} parent=1 // pred_check_branch
      %150 = sbr.rel (0) target = $region93
    $region92: #{generator_forward.1} parent=1 // pred_region
      %151 = dma.done [#allocation8], 512
    $region93: #{generator_forward.1} parent=1 // pred_fallthru
      _
    // Predicated region
    $region94: #{generator_forward.1} parent=1 // pred_check
      _
    $region95: #{generator_forward.1} parent=1 // pred_check_branch
      %153 = sbr.rel (0) target = $region97
    $region96: #{generator_forward.1} parent=1 // pred_region
      %154 = dma.done [#allocation8], 512
    $region97: #{generator_forward.1} parent=1 // pred_fallthru
      _
    // Predicated region
    $region98: #{generator_forward.1} parent=1 // pred_check
      _
    $region99: #{generator_forward.1} parent=1 // pred_check_branch
      %156 = sbr.rel (0) target = $region101
    $region100: #{generator_forward.1} parent=1 // pred_region
      %157 = dma.done [#allocation11], 512
    $region101: #{generator_forward.1} parent=1 // pred_fallthru
      _
    // Predicated region
    $region102: #{generator_forward.1} parent=1 // pred_check
      _
    $region103: #{generator_forward.1} parent=1 // pred_check_branch
      %159 = sbr.rel (0) target = $region105
    $region104: #{generator_forward.1} parent=1 // pred_region
      %160 = dma.done [#allocation11], 16
    $region105: #{generator_forward.1} parent=1 // pred_fallthru
      _
    // Predicated region
    $region106: #{generator_forward.1} parent=1 // pred_check
      _
    $region107: #{generator_forward.1} parent=1 // pred_check_branch
      %162 = sbr.rel (0) target = $region109
    $region108: #{generator_forward.1} parent=1 // pred_region
      %163 = dma.done [#allocation14], 512
    $region109: #{generator_forward.1} parent=1 // pred_fallthru
      _
    // Predicated region
    $region110: #{generator_forward.1} parent=1 // pred_check
      _
    $region111: #{generator_forward.1} parent=1 // pred_check_branch
      %165 = sbr.rel (0) target = $region113
    $region112: #{generator_forward.1} parent=1 // pred_region
      %166 = dma.done [#allocation14], 16384
    $region113: #{generator_forward.1} parent=1 // pred_fallthru
      _
    %v167 = vld [vmem:[%s0] sm:$0xff]
    %v168 = vld [vmem:[%s0 + $0x8] sm:$0xff]
    %v169 = vld [vmem:[%s0 + $0x10] sm:$0xff]
    %v170 = vld [vmem:[%s0 + $0x18] sm:$0xff]
    %v171 = vld [vmem:[%s0 + $0x20] sm:$0xff]
    %v172 = vld [vmem:[%s1] sm:$0xff]
    %v173 = vld [vmem:[%s1 + $0x8] sm:$0xff]
    %v174 = vld [vmem:[%s1 + $0x10] sm:$0xff]
    %v175 = vld [vmem:[%s1 + $0x18] sm:$0xff]
    %v176 = vld [vmem:[%s1 + $0x20] sm:$0xff]
    %v177 = vld [vmem:[#allocation4] sm:$0xff]
    %v178 = vld [vmem:[#allocation4 + $0x8] sm:$0xff]
    %v179 = vld [vmem:[#allocation4 + $0x10] sm:$0xff]
    %v180 = vld [vmem:[#allocation4 + $0x18] sm:$0xff]
    %v181 = vld [vmem:[#allocation7] sm:$0xff]
    %v182 = vld [vmem:[#allocation7 + $0x8] sm:$0xff]
    %v183 = vld [vmem:[#allocation7 + $0x10] sm:$0xff]
    %v184 = vld [vmem:[#allocation7 + $0x18] sm:$0xff]
    %vm185 = vcmask 261120
    %v187 = vsel %vm185, %v172, 0
    %v190 = vsel %vm185, %v173, 0
    %v193 = vsel %vm185, %v174, 0
    %v196 = vsel %vm185, %v175, 0
    %v199 = vsel %vm185, %v176, 0
    %201 = vmatprep.subr.mxu0 0.0
    %202 = vmatpush1.msra.mxu0 %v181
    %203 = vmatprep.subr.mxu0 0.0
    %204 = vmatpush1.msra.mxu0 %v182
    %205 = vmatprep.subr.mxu0 0.0
    %206 = vmatpush1.msra.mxu0 %v183
    %207 = vmatprep.subr.mxu0 0.0
    %208 = vmatpush1.msra.mxu0 %v184
    %209 = vmatprep.subr.mxu0 0.0
    %210 = vmatpush1.msra.mxu0 0.0
    %211 = vmatprep.subr.mxu0 0.0
    %212 = vmatpush1.msra.mxu0 0.0
    %213 = vmatprep.subr.mxu0 0.0
    %214 = vmatpush1.msra.mxu0 0.0
    %215 = vmatprep.subr.mxu0 0.0
    %216 = vmatpush1.msra.mxu0 0.0
    %217 = vmatprep.subr.mxu0 0.0
    %218 = vmatpush1.msra.mxu0 0.0
    %219 = vmatprep.subr.mxu0 0.0
    %220 = vmatpush1.msra.mxu0 0.0
    %221 = vmatprep.subr.mxu0 0.0
    %222 = vmatpush1.msra.mxu0 0.0
    %223 = vmatprep.subr.mxu0 0.0
    %224 = vmatpush1.msra.mxu0 0.0
    %225 = vmatprep.subr.mxu0 0.0
    %226 = vmatpush1.msra.mxu0 0.0
    %227 = vmatprep.subr.mxu0 0.0
    %228 = vmatpush1.msra.mxu0 0.0
    %229 = vmatprep.subr.mxu0 0.0
    %230 = vmatpush1.msra.mxu0 0.0
    %231 = vmatprep.subr.mxu0 0.0
    %232 = vmatpush1.msra.mxu0 0.0
    %233 = vmatprep.subr.mxu0 0.0
    %234 = vmatpush1.msra.mxu0 0.0
    %235 = vmatprep.subr.mxu0 0.0
    %236 = vmatpush1.msra.mxu0 0.0
    %237 = vmatprep.subr.mxu0 0.0
    %238 = vmatpush1.msra.mxu0 0.0
    %239 = vmatprep.subr.mxu0 0.0
    %240 = vmatpush1.msra.mxu0 0.0
    %241 = vmatprep.subr.mxu0 0.0
    %242 = vmatpush1.msra.mxu0 0.0
    %243 = vmatprep.subr.mxu0 0.0
    %244 = vmatpush1.msra.mxu0 0.0
    %245 = vmatprep.subr.mxu0 0.0
    %246 = vmatpush1.msra.mxu0 0.0
    %247 = vmatprep.subr.mxu0 0.0
    %248 = vmatpush1.msra.mxu0 0.0
    %249 = vmatprep.subr.mxu0 0.0
    %250 = vmatpush1.msra.mxu0 0.0
    %251 = vmatprep.subr.mxu0 0.0
    %252 = vmatpush1.msra.mxu0 0.0
    %253 = vmatprep.subr.mxu0 0.0
    %254 = vmatpush1.msra.mxu0 0.0
    %255 = vmatprep.subr.mxu0 0.0
    %256 = vmatpush1.msra.mxu0 0.0
    %257 = vmatprep.subr.mxu0 0.0
    %258 = vmatpush1.msra.mxu0 0.0
    %259 = vmatprep.subr.mxu0 0.0
    %260 = vmatpush1.msra.mxu0 0.0
    %261 = vmatprep.subr.mxu0 0.0
    %262 = vmatpush1.msra.mxu0 0.0
    %263 = vmatprep.subr.mxu0 0.0
    %264 = vmatpush1.msra.mxu0 0.0
    %265 = vmatprep.mubr.f32.mxu0 0.0
    %266 = vmatmul.mubr.f32.gmra.mrb[0].mxu0 %v187
    %v267 = vpop.f32.mrb[0].mxu0
    %v268 = vadd.f32 0.0, %v267
    %v269 = vpop.f32.mrb[0].mxu0
    %270 = vmatprep.mubr.f32.mxu0 0.0
    %271 = vmatmul.mubr.f32.gmra.mrb[0].mxu0 %v190
    %v272 = vpop.f32.mrb[0].mxu0
    %v273 = vadd.f32 0.0, %v272
    %v274 = vpop.f32.mrb[0].mxu0
    %275 = vmatprep.mubr.f32.mxu0 0.0
    %276 = vmatmul.mubr.f32.gmra.mrb[0].mxu0 %v193
    %v277 = vpop.f32.mrb[0].mxu0
    %v278 = vadd.f32 0.0, %v277
    %v279 = vpop.f32.mrb[0].mxu0
    %280 = vmatprep.mubr.f32.mxu0 0.0
    %281 = vmatmul.mubr.f32.gmra.mrb[0].mxu0 %v196
    %v282 = vpop.f32.mrb[0].mxu0
    %v283 = vadd.f32 0.0, %v282
    %v284 = vpop.f32.mrb[0].mxu0
    %285 = vmatprep.mubr.f32.mxu0 0.0
    %286 = vmatmul.mubr.f32.gmra.mrb[0].mxu0 %v199
    %v287 = vpop.f32.mrb[0].mxu0
    %v288 = vadd.f32 0.0, %v287
    %v289 = vpop.f32.mrb[0].mxu0
    %290 = vdwg.mxu0
    %v292 = vsel %vm185, %v167, 0
    %v295 = vsel %vm185, %v168, 0
    %v298 = vsel %vm185, %v169, 0
    %v301 = vsel %vm185, %v170, 0
    %v304 = vsel %vm185, %v171, 0
    %306 = vmatprep.subr.mxu0 0.0
    %307 = vmatpush1.msra.mxu0 %v177
    %308 = vmatprep.subr.mxu0 0.0
    %309 = vmatpush1.msra.mxu0 %v178
    %310 = vmatprep.subr.mxu0 0.0
    %311 = vmatpush1.msra.mxu0 %v179
    %312 = vmatprep.subr.mxu0 0.0
    %313 = vmatpush1.msra.mxu0 %v180
    %314 = vmatprep.subr.mxu0 0.0
    %315 = vmatpush1.msra.mxu0 0.0
    %316 = vmatprep.subr.mxu0 0.0
    %317 = vmatpush1.msra.mxu0 0.0
    %318 = vmatprep.subr.mxu0 0.0
    %319 = vmatpush1.msra.mxu0 0.0
    %320 = vmatprep.subr.mxu0 0.0
    %321 = vmatpush1.msra.mxu0 0.0
    %322 = vmatprep.subr.mxu0 0.0
    %323 = vmatpush1.msra.mxu0 0.0
    %324 = vmatprep.subr.mxu0 0.0
    %325 = vmatpush1.msra.mxu0 0.0
    %326 = vmatprep.subr.mxu0 0.0
    %327 = vmatpush1.msra.mxu0 0.0
    %328 = vmatprep.subr.mxu0 0.0
    %329 = vmatpush1.msra.mxu0 0.0
    %330 = vmatprep.subr.mxu0 0.0
    %331 = vmatpush1.msra.mxu0 0.0
    %332 = vmatprep.subr.mxu0 0.0
    %333 = vmatpush1.msra.mxu0 0.0
    %334 = vmatprep.subr.mxu0 0.0
    %335 = vmatpush1.msra.mxu0 0.0
    %336 = vmatprep.subr.mxu0 0.0
    %337 = vmatpush1.msra.mxu0 0.0
    %338 = vmatprep.subr.mxu0 0.0
    %339 = vmatpush1.msra.mxu0 0.0
    %340 = vmatprep.subr.mxu0 0.0
    %341 = vmatpush1.msra.mxu0 0.0
    %342 = vmatprep.subr.mxu0 0.0
    %343 = vmatpush1.msra.mxu0 0.0
    %344 = vmatprep.subr.mxu0 0.0
    %345 = vmatpush1.msra.mxu0 0.0
    %346 = vmatprep.subr.mxu0 0.0
    %347 = vmatpush1.msra.mxu0 0.0
    %348 = vmatprep.subr.mxu0 0.0
    %349 = vmatpush1.msra.mxu0 0.0
    %350 = vmatprep.subr.mxu0 0.0
    %351 = vmatpush1.msra.mxu0 0.0
    %352 = vmatprep.subr.mxu0 0.0
    %353 = vmatpush1.msra.mxu0 0.0
    %354 = vmatprep.subr.mxu0 0.0
    %355 = vmatpush1.msra.mxu0 0.0
    %356 = vmatprep.subr.mxu0 0.0
    %357 = vmatpush1.msra.mxu0 0.0
    %358 = vmatprep.subr.mxu0 0.0
    %359 = vmatpush1.msra.mxu0 0.0
    %360 = vmatprep.subr.mxu0 0.0
    %361 = vmatpush1.msra.mxu0 0.0
    %362 = vmatprep.subr.mxu0 0.0
    %363 = vmatpush1.msra.mxu0 0.0
    %364 = vmatprep.subr.mxu0 0.0
    %365 = vmatpush1.msra.mxu0 0.0
    %366 = vmatprep.subr.mxu0 0.0
    %367 = vmatpush1.msra.mxu0 0.0
    %368 = vmatprep.subr.mxu0 0.0
    %369 = vmatpush1.msra.mxu0 0.0
    %370 = vmatprep.mubr.f32.mxu0 0.0
    %371 = vmatmul.mubr.f32.gmra.mrb[0].mxu0 %v292
    %v372 = vpop.f32.mrb[0].mxu0
    %v373 = vadd.f32 %v268, %v372
    %v374 = vpop.f32.mrb[0].mxu0
    %375 = vmatprep.mubr.f32.mxu0 0.0
    %376 = vmatmul.mubr.f32.gmra.mrb[0].mxu0 %v295
    %v377 = vpop.f32.mrb[0].mxu0
    %v378 = vadd.f32 %v273, %v377
    %v379 = vpop.f32.mrb[0].mxu0
    %380 = vmatprep.mubr.f32.mxu0 0.0
    %381 = vmatmul.mubr.f32.gmra.mrb[0].mxu0 %v298
    %v382 = vpop.f32.mrb[0].mxu0
    %v383 = vadd.f32 %v278, %v382
    %v384 = vpop.f32.mrb[0].mxu0
    %385 = vmatprep.mubr.f32.mxu0 0.0
    %386 = vmatmul.mubr.f32.gmra.mrb[0].mxu0 %v301
    %v387 = vpop.f32.mrb[0].mxu0
    %v388 = vadd.f32 %v283, %v387
    %v389 = vpop.f32.mrb[0].mxu0
    %390 = vmatprep.mubr.f32.mxu0 0.0
    %391 = vmatmul.mubr.f32.gmra.mrb[0].mxu0 %v304
    %v392 = vpop.f32.mrb[0].mxu0
    %v393 = vadd.f32 %v288, %v392
    %v394 = vpop.f32.mrb[0].mxu0
    %395 = vdwg.mxu0
    %v396 = vld [vmem:[%s6] sm:$0x1]
    %v398 = vlaneseq
    %v399 = vshrl.u32 %v398, 7
    %v400 = vsub.s32 0, %v399
    %v401 = vrot.slane %v396, %v400
    %v403 = vadd.f32 %v373, %v401
    %v404 = vadd.f32 %v378, %v401
    %v405 = vadd.f32 %v383, %v401
    %v406 = vadd.f32 %v388, %v401
    %v407 = vadd.f32 %v393, %v401
    %v408 = vmax.f32 %v403, 0.0
    %v409 = vmax.f32 %v404, 0.0
    %v410 = vmax.f32 %v405, 0.0
    %v411 = vmax.f32 %v406, 0.0
    %v412 = vmax.f32 %v407, 0.0
    %v413 = vld [vmem:[#allocation9] sm:$0xff]
    %v414 = vld [vmem:[#allocation9 + $0x8] sm:$0xff]
    %v415 = vld [vmem:[#allocation9 + $0x10] sm:$0xff]
    %v416 = vld [vmem:[#allocation9 + $0x18] sm:$0xff]
    %v417 = vld [vmem:[%s8] sm:$0x1]
    %v419 = vlaneseq
    %v420 = vshrl.u32 %v419, 7
    %v421 = vsub.s32 0, %v420
    %v422 = vrot.slane %v417, %v421
    %v425 = vsel %vm185, %v408, 0
    %v428 = vsel %vm185, %v409, 0
    %v431 = vsel %vm185, %v410, 0
    %v434 = vsel %vm185, %v411, 0
    %v437 = vsel %vm185, %v412, 0
    %439 = vmatprep.subr.mxu0 0.0
    %440 = vmatpush1.msra.mxu0 %v413
    %441 = vmatprep.subr.mxu0 0.0
    %442 = vmatpush1.msra.mxu0 %v414
    %443 = vmatprep.subr.mxu0 0.0
    %444 = vmatpush1.msra.mxu0 %v415
    %445 = vmatprep.subr.mxu0 0.0
    %446 = vmatpush1.msra.mxu0 %v416
    %447 = vmatprep.subr.mxu0 0.0
    %448 = vmatpush1.msra.mxu0 0.0
    %449 = vmatprep.subr.mxu0 0.0
    %450 = vmatpush1.msra.mxu0 0.0
    %451 = vmatprep.subr.mxu0 0.0
    %452 = vmatpush1.msra.mxu0 0.0
    %453 = vmatprep.subr.mxu0 0.0
    %454 = vmatpush1.msra.mxu0 0.0
    %455 = vmatprep.subr.mxu0 0.0
    %456 = vmatpush1.msra.mxu0 0.0
    %457 = vmatprep.subr.mxu0 0.0
    %458 = vmatpush1.msra.mxu0 0.0
    %459 = vmatprep.subr.mxu0 0.0
    %460 = vmatpush1.msra.mxu0 0.0
    %461 = vmatprep.subr.mxu0 0.0
    %462 = vmatpush1.msra.mxu0 0.0
    %463 = vmatprep.subr.mxu0 0.0
    %464 = vmatpush1.msra.mxu0 0.0
    %465 = vmatprep.subr.mxu0 0.0
    %466 = vmatpush1.msra.mxu0 0.0
    %467 = vmatprep.subr.mxu0 0.0
    %468 = vmatpush1.msra.mxu0 0.0
    %469 = vmatprep.subr.mxu0 0.0
    %470 = vmatpush1.msra.mxu0 0.0
    %471 = vmatprep.subr.mxu0 0.0
    %472 = vmatpush1.msra.mxu0 0.0
    %473 = vmatprep.subr.mxu0 0.0
    %474 = vmatpush1.msra.mxu0 0.0
    %475 = vmatprep.subr.mxu0 0.0
    %476 = vmatpush1.msra.mxu0 0.0
    %477 = vmatprep.subr.mxu0 0.0
    %478 = vmatpush1.msra.mxu0 0.0
    %479 = vmatprep.subr.mxu0 0.0
    %480 = vmatpush1.msra.mxu0 0.0
    %481 = vmatprep.subr.mxu0 0.0
    %482 = vmatpush1.msra.mxu0 0.0
    %483 = vmatprep.subr.mxu0 0.0
    %484 = vmatpush1.msra.mxu0 0.0
    %485 = vmatprep.subr.mxu0 0.0
    %486 = vmatpush1.msra.mxu0 0.0
    %487 = vmatprep.subr.mxu0 0.0
    %488 = vmatpush1.msra.mxu0 0.0
    %489 = vmatprep.subr.mxu0 0.0
    %490 = vmatpush1.msra.mxu0 0.0
    %491 = vmatprep.subr.mxu0 0.0
    %492 = vmatpush1.msra.mxu0 0.0
    %493 = vmatprep.subr.mxu0 0.0
    %494 = vmatpush1.msra.mxu0 0.0
    %495 = vmatprep.subr.mxu0 0.0
    %496 = vmatpush1.msra.mxu0 0.0
    %497 = vmatprep.subr.mxu0 0.0
    %498 = vmatpush1.msra.mxu0 0.0
    %499 = vmatprep.subr.mxu0 0.0
    %500 = vmatpush1.msra.mxu0 0.0
    %501 = vmatprep.subr.mxu0 0.0
    %502 = vmatpush1.msra.mxu0 0.0
    %503 = vmatprep.mubr.f32.mxu0 0.0
    %504 = vmatmul.mubr.f32.gmra.mrb[0].mxu0 %v425
    %v505 = vpop.f32.mrb[0].mxu0
    %v506 = vadd.f32 %v422, %v505
    %v507 = vpop.f32.mrb[0].mxu0
    %508 = vmatprep.mubr.f32.mxu0 0.0
    %509 = vmatmul.mubr.f32.gmra.mrb[0].mxu0 %v428
    %v510 = vpop.f32.mrb[0].mxu0
    %v511 = vadd.f32 %v422, %v510
    %v512 = vpop.f32.mrb[0].mxu0
    %513 = vmatprep.mubr.f32.mxu0 0.0
    %514 = vmatmul.mubr.f32.gmra.mrb[0].mxu0 %v431
    %v515 = vpop.f32.mrb[0].mxu0
    %v516 = vadd.f32 %v422, %v515
    %v517 = vpop.f32.mrb[0].mxu0
    %518 = vmatprep.mubr.f32.mxu0 0.0
    %519 = vmatmul.mubr.f32.gmra.mrb[0].mxu0 %v434
    %v520 = vpop.f32.mrb[0].mxu0
    %v521 = vadd.f32 %v422, %v520
    %v522 = vpop.f32.mrb[0].mxu0
    %523 = vmatprep.mubr.f32.mxu0 0.0
    %524 = vmatmul.mubr.f32.gmra.mrb[0].mxu0 %v437
    %v525 = vpop.f32.mrb[0].mxu0
    %v526 = vadd.f32 %v422, %v525
    %v527 = vpop.f32.mrb[0].mxu0
    %528 = vdwg.mxu0
    %v529 = vmax.f32 %v506, 0.0
    %v530 = vmax.f32 %v511, 0.0
    %v531 = vmax.f32 %v516, 0.0
    %v532 = vmax.f32 %v521, 0.0
    %v533 = vmax.f32 %v526, 0.0
    %v534 = vld [vmem:[#allocation10] sm:$0xff]
    %v535 = vld [vmem:[#allocation10 + $0x8] sm:$0xff]
    %v536 = vld [vmem:[#allocation10 + $0x10] sm:$0xff]
    %v537 = vld [vmem:[#allocation10 + $0x18] sm:$0xff]
    %v538 = vld [vmem:[#allocation12] sm:$0x1]
    %v540 = vlaneseq
    %v541 = vshrl.u32 %v540, 7
    %v542 = vsub.s32 0, %v541
    %v543 = vrot.slane %v538, %v542
    %v546 = vsel %vm185, %v529, 0
    %v549 = vsel %vm185, %v530, 0
    %v552 = vsel %vm185, %v531, 0
    %v555 = vsel %vm185, %v532, 0
    %v558 = vsel %vm185, %v533, 0
    %560 = vmatprep.subr.mxu0 0.0
    %561 = vmatpush1.msra.mxu0 %v534
    %562 = vmatprep.subr.mxu0 0.0
    %563 = vmatpush1.msra.mxu0 %v535
    %564 = vmatprep.subr.mxu0 0.0
    %565 = vmatpush1.msra.mxu0 %v536
    %566 = vmatprep.subr.mxu0 0.0
    %567 = vmatpush1.msra.mxu0 %v537
    %568 = vmatprep.subr.mxu0 0.0
    %569 = vmatpush1.msra.mxu0 0.0
    %570 = vmatprep.subr.mxu0 0.0
    %571 = vmatpush1.msra.mxu0 0.0
    %572 = vmatprep.subr.mxu0 0.0
    %573 = vmatpush1.msra.mxu0 0.0
    %574 = vmatprep.subr.mxu0 0.0
    %575 = vmatpush1.msra.mxu0 0.0
    %576 = vmatprep.subr.mxu0 0.0
    %577 = vmatpush1.msra.mxu0 0.0
    %578 = vmatprep.subr.mxu0 0.0
    %579 = vmatpush1.msra.mxu0 0.0
    %580 = vmatprep.subr.mxu0 0.0
    %581 = vmatpush1.msra.mxu0 0.0
    %582 = vmatprep.subr.mxu0 0.0
    %583 = vmatpush1.msra.mxu0 0.0
    %584 = vmatprep.subr.mxu0 0.0
    %585 = vmatpush1.msra.mxu0 0.0
    %586 = vmatprep.subr.mxu0 0.0
    %587 = vmatpush1.msra.mxu0 0.0
    %588 = vmatprep.subr.mxu0 0.0
    %589 = vmatpush1.msra.mxu0 0.0
    %590 = vmatprep.subr.mxu0 0.0
    %591 = vmatpush1.msra.mxu0 0.0
    %592 = vmatprep.subr.mxu0 0.0
    %593 = vmatpush1.msra.mxu0 0.0
    %594 = vmatprep.subr.mxu0 0.0
    %595 = vmatpush1.msra.mxu0 0.0
    %596 = vmatprep.subr.mxu0 0.0
    %597 = vmatpush1.msra.mxu0 0.0
    %598 = vmatprep.subr.mxu0 0.0
    %599 = vmatpush1.msra.mxu0 0.0
    %600 = vmatprep.subr.mxu0 0.0
    %601 = vmatpush1.msra.mxu0 0.0
    %602 = vmatprep.subr.mxu0 0.0
    %603 = vmatpush1.msra.mxu0 0.0
    %604 = vmatprep.subr.mxu0 0.0
    %605 = vmatpush1.msra.mxu0 0.0
    %606 = vmatprep.subr.mxu0 0.0
    %607 = vmatpush1.msra.mxu0 0.0
    %608 = vmatprep.subr.mxu0 0.0
    %609 = vmatpush1.msra.mxu0 0.0
    %610 = vmatprep.subr.mxu0 0.0
    %611 = vmatpush1.msra.mxu0 0.0
    %612 = vmatprep.subr.mxu0 0.0
    %613 = vmatpush1.msra.mxu0 0.0
    %614 = vmatprep.subr.mxu0 0.0
    %615 = vmatpush1.msra.mxu0 0.0
    %616 = vmatprep.subr.mxu0 0.0
    %617 = vmatpush1.msra.mxu0 0.0
    %618 = vmatprep.subr.mxu0 0.0
    %619 = vmatpush1.msra.mxu0 0.0
    %620 = vmatprep.subr.mxu0 0.0
    %621 = vmatpush1.msra.mxu0 0.0
    %622 = vmatprep.subr.mxu0 0.0
    %623 = vmatpush1.msra.mxu0 0.0
    %624 = vmatprep.mubr.f32.mxu0 0.0
    %625 = vmatmul.mubr.f32.gmra.mrb[0].mxu0 %v546
    %v626 = vpop.f32.mrb[0].mxu0
    %v627 = vadd.f32 %v543, %v626
    %v628 = vpop.f32.mrb[0].mxu0
    %629 = vmatprep.mubr.f32.mxu0 0.0
    %630 = vmatmul.mubr.f32.gmra.mrb[0].mxu0 %v549
    %v631 = vpop.f32.mrb[0].mxu0
    %v632 = vadd.f32 %v543, %v631
    %v633 = vpop.f32.mrb[0].mxu0
    %634 = vmatprep.mubr.f32.mxu0 0.0
    %635 = vmatmul.mubr.f32.gmra.mrb[0].mxu0 %v552
    %v636 = vpop.f32.mrb[0].mxu0
    %v637 = vadd.f32 %v543, %v636
    %v638 = vpop.f32.mrb[0].mxu0
    %639 = vmatprep.mubr.f32.mxu0 0.0
    %640 = vmatmul.mubr.f32.gmra.mrb[0].mxu0 %v555
    %v641 = vpop.f32.mrb[0].mxu0
    %v642 = vadd.f32 %v543, %v641
    %v643 = vpop.f32.mrb[0].mxu0
    %644 = vmatprep.mubr.f32.mxu0 0.0
    %645 = vmatmul.mubr.f32.gmra.mrb[0].mxu0 %v558
    %v646 = vpop.f32.mrb[0].mxu0
    %v647 = vadd.f32 %v543, %v646
    %v648 = vpop.f32.mrb[0].mxu0
    %649 = vdwg.mxu0
    %v650 = vxor.u32 %v627, 2147483648
    %v651 = vxor.u32 %v632, 2147483648
    %v652 = vxor.u32 %v637, 2147483648
    %v653 = vxor.u32 %v642, 2147483648
    %v654 = vxor.u32 %v647, 2147483648
    %v655 = vmul.f32 %v650, 1.442695
    %v656 = vpow.pop %v655
    %v657 = vmul.f32 %v651, 1.442695
    %v658 = vpow.pop %v657
    %v659 = vmul.f32 %v652, 1.442695
    %v660 = vpow.pop %v659
    %v661 = vmul.f32 %v653, 1.442695
    %v662 = vpow.pop %v661
    %v663 = vmul.f32 %v654, 1.442695
    %v664 = vpow.pop %v663
    %v665 = vadd.f32 %v656, 1.0
    %v666 = vadd.f32 %v658, 1.0
    %v667 = vadd.f32 %v660, 1.0
    %v668 = vadd.f32 %v662, 1.0
    %v669 = vadd.f32 %v664, 1.0
    %v670 = vrcp.pop %v665
    %v671 = vmul.f32 1.0, %v670
    %v672 = vrcp.pop %v666
    %v673 = vmul.f32 1.0, %v672
    %v674 = vrcp.pop %v667
    %v675 = vmul.f32 1.0, %v674
    %v676 = vrcp.pop %v668
    %v677 = vmul.f32 1.0, %v676
    %v678 = vrcp.pop %v669
    %v679 = vmul.f32 1.0, %v678
    %680 = vst.msk [vmem:[#allocation16] sm:$0xff] %vm185, %v671
    %681 = vst.msk [vmem:[#allocation16 + $0x8] sm:$0xff] %vm185, %v673
    %682 = vst.msk [vmem:[#allocation16 + $0x10] sm:$0xff] %vm185, %v675
    %683 = vst.msk [vmem:[#allocation16 + $0x18] sm:$0xff] %vm185, %v677
    %684 = vst.msk [vmem:[#allocation16 + $0x20] sm:$0xff] %vm185, %v679
    %v685 = vmul.f32 %v167, %v172
    %v686 = vmul.f32 %v168, %v173
    %v687 = vmul.f32 %v169, %v174
    %v688 = vmul.f32 %v170, %v175
    %v689 = vmul.f32 %v171, %v176
    %v690 = vsub.f32 1.0, %v172
    %v691 = vsub.f32 1.0, %v173
    %v692 = vsub.f32 1.0, %v174
    %v693 = vsub.f32 1.0, %v175
    %v694 = vsub.f32 1.0, %v176
    %v695 = vmul.f32 %v671, %v690
    %v696 = vmul.f32 %v673, %v691
    %v697 = vmul.f32 %v675, %v692
    %v698 = vmul.f32 %v677, %v693
    %v699 = vmul.f32 %v679, %v694
    %v700 = vadd.f32 %v685, %v695
    %v701 = vadd.f32 %v686, %v696
    %v702 = vadd.f32 %v687, %v697
    %v703 = vadd.f32 %v688, %v698
    %v704 = vadd.f32 %v689, %v699
    %705 = vst.msk [vmem:[%s22] sm:$0xff] %vm185, %v700
    %706 = vst.msk [vmem:[%s22 + $0x8] sm:$0xff] %vm185, %v701
    %707 = vst.msk [vmem:[%s22 + $0x10] sm:$0xff] %vm185, %v702
    %708 = vst.msk [vmem:[%s22 + $0x18] sm:$0xff] %vm185, %v703
    %709 = vst.msk [vmem:[%s22 + $0x20] sm:$0xff] %vm185, %v704
    %v710 = vld [vmem:[%s11] sm:$0x1]
    %v712 = vlaneseq
    %v713 = vshrl.u32 %v712, 7
    %v714 = vsub.s32 0, %v713
    %v715 = vrot.slane %v710, %v714
    %v717 = vmul.f32 %v700, %v715
    %v718 = vmul.f32 %v701, %v715
    %v719 = vmul.f32 %v702, %v715
    %v720 = vmul.f32 %v703, %v715
    %v721 = vmul.f32 %v704, %v715
    %v722 = vsel %vm185, %v717, 0.0
    %723 = vadd.xlane.f32.xlu0 %v722
    %v724 = vpop.xlane.xlu0 %723
    %v725 = vsel %vm185, %v718, 0.0
    %726 = vadd.xlane.f32.xlu0 %v725
    %v727 = vpop.xlane.xlu0 %726
    %v728 = vsel %vm185, %v719, 0.0
    %729 = vadd.xlane.f32.xlu0 %v728
    %v730 = vpop.xlane.xlu0 %729
    %v731 = vsel %vm185, %v720, 0.0
    %732 = vadd.xlane.f32.xlu0 %v731
    %v733 = vpop.xlane.xlu0 %732
    %v734 = vsel %vm185, %v721, 0.0
    %735 = vadd.xlane.f32.xlu0 %v734
    %v736 = vpop.xlane.xlu0 %735
    %v737 = vld [vmem:[%s12] sm:$0x1f]
    %v738 = vld [vmem:[%s13] sm:$0x1f]
    %v739 = vlaneseq
    %v740 = vshrl.u32 %v739, 7
    %v741 = vsub.s32 0, %v740
    %v742 = vrot.slane %v737, %v741
    %v743 = vmul.f32 %v724, %v742
    %v744 = vadd.f32 %v743, 0.0
    %s746 = vtos %v738
    %v747 = vstv %s746
    %v749 = vmul.f32 %v700, %v747
    %v750 = vadd.f32 %v749, 0.0
    %v751 = vlaneseq
    %v752 = vshrl.u32 %v751, 7
    %v753 = vsub.s32 1, %v752
    %v754 = vrot.slane %v737, %v753
    %v755 = vmul.f32 %v727, %v754
    %v756 = vadd.f32 %v744, %v755
    %v757 = vrot.slane %v738, 1
    %s758 = vtos %v757
    %v759 = vstv %s758
    %v761 = vmul.f32 %v701, %v759
    %v762 = vadd.f32 %v750, %v761
    %v763 = vlaneseq
    %v764 = vshrl.u32 %v763, 7
    %v765 = vsub.s32 2, %v764
    %v766 = vrot.slane %v737, %v765
    %v767 = vmul.f32 %v730, %v766
    %v768 = vadd.f32 %v756, %v767
    %v769 = vrot.slane %v738, 2
    %s770 = vtos %v769
    %v771 = vstv %s770
    %v773 = vmul.f32 %v702, %v771
    %v774 = vadd.f32 %v762, %v773
    %v775 = vlaneseq
    %v776 = vshrl.u32 %v775, 7
    %v777 = vsub.s32 3, %v776
    %v778 = vrot.slane %v737, %v777
    %v779 = vmul.f32 %v733, %v778
    %v780 = vadd.f32 %v768, %v779
    %v781 = vrot.slane %v738, 3
    %s782 = vtos %v781
    %v783 = vstv %s782
    %v785 = vmul.f32 %v703, %v783
    %v786 = vadd.f32 %v774, %v785
    %v787 = vlaneseq
    %v788 = vshrl.u32 %v787, 7
    %v789 = vsub.s32 4, %v788
    %v790 = vrot.slane %v737, %v789
    %v791 = vmul.f32 %v736, %v790
    %v792 = vadd.f32 %v780, %v791
    %v793 = vrot.slane %v738, 4
    %s794 = vtos %v793
    %v795 = vstv %s794
    %v797 = vmul.f32 %v704, %v795
    %v798 = vadd.f32 %v786, %v797
    %v800 = vsel %vm185, %v792, 0
    %v803 = vsel %vm185, %v798, 0
    %805 = vmatprep.subr.mxu0 0.0
    %806 = vmatpush1.xpose.msra.mxu0 %v803
    %807 = vmatprep.subr.mxu0 0.0
    %808 = vmatpush1.xpose.msra.mxu0 0.0
    %809 = vmatprep.subr.mxu0 0.0
    %810 = vmatpush1.xpose.msra.mxu0 0.0
    %811 = vmatprep.subr.mxu0 0.0
    %812 = vmatpush1.xpose.msra.mxu0 0.0
    %813 = vmatprep.subr.mxu0 0.0
    %814 = vmatpush1.xpose.msra.mxu0 0.0
    %815 = vmatprep.subr.mxu0 0.0
    %816 = vmatpush1.xpose.msra.mxu0 0.0
    %817 = vmatprep.subr.mxu0 0.0
    %818 = vmatpush1.xpose.msra.mxu0 0.0
    %819 = vmatprep.subr.mxu0 0.0
    %820 = vmatpush1.xpose.msra.mxu0 0.0
    %821 = vmatprep.subr.mxu0 0.0
    %822 = vmatpush1.xpose.msra.mxu0 0.0
    %823 = vmatprep.subr.mxu0 0.0
    %824 = vmatpush1.xpose.msra.mxu0 0.0
    %825 = vmatprep.subr.mxu0 0.0
    %826 = vmatpush1.xpose.msra.mxu0 0.0
    %827 = vmatprep.subr.mxu0 0.0
    %828 = vmatpush1.xpose.msra.mxu0 0.0
    %829 = vmatprep.subr.mxu0 0.0
    %830 = vmatpush1.xpose.msra.mxu0 0.0
    %831 = vmatprep.subr.mxu0 0.0
    %832 = vmatpush1.xpose.msra.mxu0 0.0
    %833 = vmatprep.subr.mxu0 0.0
    %834 = vmatpush1.xpose.msra.mxu0 0.0
    %835 = vmatprep.subr.mxu0 0.0
    %836 = vmatpush1.xpose.msra.mxu0 0.0
    %837 = vmatprep.subr.mxu0 0.0
    %838 = vmatpush1.xpose.msra.mxu0 0.0
    %839 = vmatprep.subr.mxu0 0.0
    %840 = vmatpush1.xpose.msra.mxu0 0.0
    %841 = vmatprep.subr.mxu0 0.0
    %842 = vmatpush1.xpose.msra.mxu0 0.0
    %843 = vmatprep.subr.mxu0 0.0
    %844 = vmatpush1.xpose.msra.mxu0 0.0
    %845 = vmatprep.subr.mxu0 0.0
    %846 = vmatpush1.xpose.msra.mxu0 0.0
    %847 = vmatprep.subr.mxu0 0.0
    %848 = vmatpush1.xpose.msra.mxu0 0.0
    %849 = vmatprep.subr.mxu0 0.0
    %850 = vmatpush1.xpose.msra.mxu0 0.0
    %851 = vmatprep.subr.mxu0 0.0
    %852 = vmatpush1.xpose.msra.mxu0 0.0
    %853 = vmatprep.subr.mxu0 0.0
    %854 = vmatpush1.xpose.msra.mxu0 0.0
    %855 = vmatprep.subr.mxu0 0.0
    %856 = vmatpush1.xpose.msra.mxu0 0.0
    %857 = vmatprep.subr.mxu0 0.0
    %858 = vmatpush1.xpose.msra.mxu0 0.0
    %859 = vmatprep.subr.mxu0 0.0
    %860 = vmatpush1.xpose.msra.mxu0 0.0
    %861 = vmatprep.subr.mxu0 0.0
    %862 = vmatpush1.xpose.msra.mxu0 0.0
    %863 = vmatprep.subr.mxu0 0.0
    %864 = vmatpush1.xpose.msra.mxu0 0.0
    %865 = vmatprep.subr.mxu0 0.0
    %866 = vmatpush1.xpose.msra.mxu0 0.0
    %867 = vmatprep.subr.mxu0 0.0
    %868 = vmatpush1.xpose.msra.mxu0 0.0
    %869 = vmatprep.mubr.f32.mxu0 0.0
    %870 = vmatmul.mubr.f32.gmra.mrb[0].mxu0 %v800
    %v871 = vpop.f32.mrb[0].mxu0
    %v872 = vadd.f32 0.0, %v871
    %v873 = vpop.f32.mrb[0].mxu0
    %874 = vdwg.mxu0
    %v875 = vxor.u32 %v872, 2147483648
    %v876 = vmul.f32 %v875, 1.442695
    %v877 = vpow.pop %v876
    %v878 = vadd.f32 %v877, 1.0
    %v879 = vrcp.pop %v878
    %v880 = vmul.f32 1.0, %v879
    %vm881 = vcmask 64512
    %v882 = vsel %vm881, %v880, -inf
    %883 = vmax.xlane.f32.xlu0 %v882
    %v884 = vpop.xlane.xlu0 %883
    %v885 = vsub.f32 %v880, %v884
    %v886 = vmul.f32 %v885, 1.442695
    %v887 = vpow.pop %v886
    %v888 = vsel %vm881, %v887, 0.0
    %889 = vadd.xlane.f32.xlu0 %v888
    %v890 = vpop.xlane.xlu0 %889
    %v891 = vrcp.pop %v890
    %v892 = vmul.f32 %v887, %v891
    %v893 = vsel %vm881, %v892, 0.0
    %894 = vadd.xlane.f32.xlu0 %v893
    %v895 = vpop.xlane.xlu0 %894
    %v896 = vrot.slane %v895, 4
    %v897 = vadd.f32 %v895, %v896
    %v898 = vrot.slane %v897, 2
    %v899 = vadd.f32 %v897, %v898
    %v900 = vrot.slane %v899, 1
    %v901 = vadd.f32 %v899, %v900
    %s902 = vtos %v901
    %v903 = vstv %s902
    %v904 = vrcp.pop 64.0
    %v905 = vmul.f32 %v903, %v904
    %v906 = vrcp.pop 0.6
    %v907 = vmul.f32 %v905, %v906
    %vm908 = vcmp.lt.f32.partialorder %v892, %v907
    %v909 = vsel %vm908, 0.0, %v892
    %v911 = vsel %vm881, %v909, 0
    %913 = vmatprep.subr.mxu0 0.0
    %914 = vmatpush1.msra.mxu0 %v700
    %915 = vmatprep.subr.mxu0 0.0
    %916 = vmatpush1.msra.mxu0 0.0
    %917 = vmatprep.subr.mxu0 0.0
    %918 = vmatpush1.msra.mxu0 0.0
    %919 = vmatprep.subr.mxu0 0.0
    %920 = vmatpush1.msra.mxu0 0.0
    %921 = vmatprep.subr.mxu0 0.0
    %922 = vmatpush1.msra.mxu0 0.0
    %923 = vmatprep.subr.mxu0 0.0
    %924 = vmatpush1.msra.mxu0 0.0
    %925 = vmatprep.subr.mxu0 0.0
    %926 = vmatpush1.msra.mxu0 0.0
    %927 = vmatprep.subr.mxu0 0.0
    %928 = vmatpush1.msra.mxu0 0.0
    %929 = vmatprep.subr.mxu0 0.0
    %930 = vmatpush1.msra.mxu0 0.0
    %931 = vmatprep.subr.mxu0 0.0
    %932 = vmatpush1.msra.mxu0 0.0
    %933 = vmatprep.subr.mxu0 0.0
    %934 = vmatpush1.msra.mxu0 0.0
    %935 = vmatprep.subr.mxu0 0.0
    %936 = vmatpush1.msra.mxu0 0.0
    %937 = vmatprep.subr.mxu0 0.0
    %938 = vmatpush1.msra.mxu0 0.0
    %939 = vmatprep.subr.mxu0 0.0
    %940 = vmatpush1.msra.mxu0 0.0
    %941 = vmatprep.subr.mxu0 0.0
    %942 = vmatpush1.msra.mxu0 0.0
    %943 = vmatprep.subr.mxu0 0.0
    %944 = vmatpush1.msra.mxu0 0.0
    %945 = vmatprep.subr.mxu0 0.0
    %946 = vmatpush1.msra.mxu0 0.0
    %947 = vmatprep.subr.mxu0 0.0
    %948 = vmatpush1.msra.mxu0 0.0
    %949 = vmatprep.subr.mxu0 0.0
    %950 = vmatpush1.msra.mxu0 0.0
    %951 = vmatprep.subr.mxu0 0.0
    %952 = vmatpush1.msra.mxu0 0.0
    %953 = vmatprep.subr.mxu0 0.0
    %954 = vmatpush1.msra.mxu0 0.0
    %955 = vmatprep.subr.mxu0 0.0
    %956 = vmatpush1.msra.mxu0 0.0
    %957 = vmatprep.subr.mxu0 0.0
    %958 = vmatpush1.msra.mxu0 0.0
    %959 = vmatprep.subr.mxu0 0.0
    %960 = vmatpush1.msra.mxu0 0.0
    %961 = vmatprep.subr.mxu0 0.0
    %962 = vmatpush1.msra.mxu0 0.0
    %963 = vmatprep.subr.mxu0 0.0
    %964 = vmatpush1.msra.mxu0 0.0
    %965 = vmatprep.subr.mxu0 0.0
    %966 = vmatpush1.msra.mxu0 0.0
    %967 = vmatprep.subr.mxu0 0.0
    %968 = vmatpush1.msra.mxu0 0.0
    %969 = vmatprep.subr.mxu0 0.0
    %970 = vmatpush1.msra.mxu0 0.0
    %971 = vmatprep.subr.mxu0 0.0
    %972 = vmatpush1.msra.mxu0 0.0
    %973 = vmatprep.subr.mxu0 0.0
    %974 = vmatpush1.msra.mxu0 0.0
    %975 = vmatprep.subr.mxu0 0.0
    %976 = vmatpush1.msra.mxu0 0.0
    %977 = vmatprep.mubr.f32.mxu0 0.0
    %978 = vmatmul.mubr.f32.gmra.mrb[0].mxu0 %v911
    %v979 = vpop.f32.mrb[0].mxu0
    %v980 = vadd.f32 0.0, %v979
    %v981 = vpop.f32.mrb[0].mxu0
    %982 = vdwg.mxu0
    %983 = vst.msk [vmem:[#allocation3] sm:$0xff] %vm185, %v980
    %984 = vmatprep.subr.mxu0 0.0
    %985 = vmatpush1.msra.mxu0 %v701
    %986 = vmatprep.subr.mxu0 0.0
    %987 = vmatpush1.msra.mxu0 0.0
    %988 = vmatprep.subr.mxu0 0.0
    %989 = vmatpush1.msra.mxu0 0.0
    %990 = vmatprep.subr.mxu0 0.0
    %991 = vmatpush1.msra.mxu0 0.0
    %992 = vmatprep.subr.mxu0 0.0
    %993 = vmatpush1.msra.mxu0 0.0
    %994 = vmatprep.subr.mxu0 0.0
    %995 = vmatpush1.msra.mxu0 0.0
    %996 = vmatprep.subr.mxu0 0.0
    %997 = vmatpush1.msra.mxu0 0.0
    %998 = vmatprep.subr.mxu0 0.0
    %999 = vmatpush1.msra.mxu0 0.0
    %1000 = vmatprep.subr.mxu0 0.0
    %1001 = vmatpush1.msra.mxu0 0.0
    %1002 = vmatprep.subr.mxu0 0.0
    %1003 = vmatpush1.msra.mxu0 0.0
    %1004 = vmatprep.subr.mxu0 0.0
    %1005 = vmatpush1.msra.mxu0 0.0
    %1006 = vmatprep.subr.mxu0 0.0
    %1007 = vmatpush1.msra.mxu0 0.0
    %1008 = vmatprep.subr.mxu0 0.0
    %1009 = vmatpush1.msra.mxu0 0.0
    %1010 = vmatprep.subr.mxu0 0.0
    %1011 = vmatpush1.msra.mxu0 0.0
    %1012 = vmatprep.subr.mxu0 0.0
    %1013 = vmatpush1.msra.mxu0 0.0
    %1014 = vmatprep.subr.mxu0 0.0
    %1015 = vmatpush1.msra.mxu0 0.0
    %1016 = vmatprep.subr.mxu0 0.0
    %1017 = vmatpush1.msra.mxu0 0.0
    %1018 = vmatprep.subr.mxu0 0.0
    %1019 = vmatpush1.msra.mxu0 0.0
    %1020 = vmatprep.subr.mxu0 0.0
    %1021 = vmatpush1.msra.mxu0 0.0
    %1022 = vmatprep.subr.mxu0 0.0
    %1023 = vmatpush1.msra.mxu0 0.0
    %1024 = vmatprep.subr.mxu0 0.0
    %1025 = vmatpush1.msra.mxu0 0.0
    %1026 = vmatprep.subr.mxu0 0.0
    %1027 = vmatpush1.msra.mxu0 0.0
    %1028 = vmatprep.subr.mxu0 0.0
    %1029 = vmatpush1.msra.mxu0 0.0
    %1030 = vmatprep.subr.mxu0 0.0
    %1031 = vmatpush1.msra.mxu0 0.0
    %1032 = vmatprep.subr.mxu0 0.0
    %1033 = vmatpush1.msra.mxu0 0.0
    %1034 = vmatprep.subr.mxu0 0.0
    %1035 = vmatpush1.msra.mxu0 0.0
    %1036 = vmatprep.subr.mxu0 0.0
    %1037 = vmatpush1.msra.mxu0 0.0
    %1038 = vmatprep.subr.mxu0 0.0
    %1039 = vmatpush1.msra.mxu0 0.0
    %1040 = vmatprep.subr.mxu0 0.0
    %1041 = vmatpush1.msra.mxu0 0.0
    %1042 = vmatprep.subr.mxu0 0.0
    %1043 = vmatpush1.msra.mxu0 0.0
    %1044 = vmatprep.subr.mxu0 0.0
    %1045 = vmatpush1.msra.mxu0 0.0
    %1046 = vmatprep.subr.mxu0 0.0
    %1047 = vmatpush1.msra.mxu0 0.0
    %1048 = vmatprep.mubr.f32.mxu0 0.0
    %1049 = vmatmul.mubr.f32.gmra.mrb[0].mxu0 %v911
    %v1050 = vpop.f32.mrb[0].mxu0
    %v1051 = vadd.f32 0.0, %v1050
    %v1052 = vpop.f32.mrb[0].mxu0
    %1053 = vdwg.mxu0
    %1054 = vst.msk [vmem:[#allocation3 + $0x8] sm:$0xff] %vm185, %v1051
    %1055 = vmatprep.subr.mxu0 0.0
    %1056 = vmatpush1.msra.mxu0 %v702
    %1057 = vmatprep.subr.mxu0 0.0
    %1058 = vmatpush1.msra.mxu0 0.0
    %1059 = vmatprep.subr.mxu0 0.0
    %1060 = vmatpush1.msra.mxu0 0.0
    %1061 = vmatprep.subr.mxu0 0.0
    %1062 = vmatpush1.msra.mxu0 0.0
    %1063 = vmatprep.subr.mxu0 0.0
    %1064 = vmatpush1.msra.mxu0 0.0
    %1065 = vmatprep.subr.mxu0 0.0
    %1066 = vmatpush1.msra.mxu0 0.0
    %1067 = vmatprep.subr.mxu0 0.0
    %1068 = vmatpush1.msra.mxu0 0.0
    %1069 = vmatprep.subr.mxu0 0.0
    %1070 = vmatpush1.msra.mxu0 0.0
    %1071 = vmatprep.subr.mxu0 0.0
    %1072 = vmatpush1.msra.mxu0 0.0
    %1073 = vmatprep.subr.mxu0 0.0
    %1074 = vmatpush1.msra.mxu0 0.0
    %1075 = vmatprep.subr.mxu0 0.0
    %1076 = vmatpush1.msra.mxu0 0.0
    %1077 = vmatprep.subr.mxu0 0.0
    %1078 = vmatpush1.msra.mxu0 0.0
    %1079 = vmatprep.subr.mxu0 0.0
    %1080 = vmatpush1.msra.mxu0 0.0
    %1081 = vmatprep.subr.mxu0 0.0
    %1082 = vmatpush1.msra.mxu0 0.0
    %1083 = vmatprep.subr.mxu0 0.0
    %1084 = vmatpush1.msra.mxu0 0.0
    %1085 = vmatprep.subr.mxu0 0.0
    %1086 = vmatpush1.msra.mxu0 0.0
    %1087 = vmatprep.subr.mxu0 0.0
    %1088 = vmatpush1.msra.mxu0 0.0
    %1089 = vmatprep.subr.mxu0 0.0
    %1090 = vmatpush1.msra.mxu0 0.0
    %1091 = vmatprep.subr.mxu0 0.0
    %1092 = vmatpush1.msra.mxu0 0.0
    %1093 = vmatprep.subr.mxu0 0.0
    %1094 = vmatpush1.msra.mxu0 0.0
    %1095 = vmatprep.subr.mxu0 0.0
    %1096 = vmatpush1.msra.mxu0 0.0
    %1097 = vmatprep.subr.mxu0 0.0
    %1098 = vmatpush1.msra.mxu0 0.0
    %1099 = vmatprep.subr.mxu0 0.0
    %1100 = vmatpush1.msra.mxu0 0.0
    %1101 = vmatprep.subr.mxu0 0.0
    %1102 = vmatpush1.msra.mxu0 0.0
    %1103 = vmatprep.subr.mxu0 0.0
    %1104 = vmatpush1.msra.mxu0 0.0
    %1105 = vmatprep.subr.mxu0 0.0
    %1106 = vmatpush1.msra.mxu0 0.0
    %1107 = vmatprep.subr.mxu0 0.0
    %1108 = vmatpush1.msra.mxu0 0.0
    %1109 = vmatprep.subr.mxu0 0.0
    %1110 = vmatpush1.msra.mxu0 0.0
    %1111 = vmatprep.subr.mxu0 0.0
    %1112 = vmatpush1.msra.mxu0 0.0
    %1113 = vmatprep.subr.mxu0 0.0
    %1114 = vmatpush1.msra.mxu0 0.0
    %1115 = vmatprep.subr.mxu0 0.0
    %1116 = vmatpush1.msra.mxu0 0.0
    %1117 = vmatprep.subr.mxu0 0.0
    %1118 = vmatpush1.msra.mxu0 0.0
    %1119 = vmatprep.mubr.f32.mxu0 0.0
    %1120 = vmatmul.mubr.f32.gmra.mrb[0].mxu0 %v911
    %v1121 = vpop.f32.mrb[0].mxu0
    %v1122 = vadd.f32 0.0, %v1121
    %v1123 = vpop.f32.mrb[0].mxu0
    %1124 = vdwg.mxu0
    %1125 = vst.msk [vmem:[#allocation3 + $0x10] sm:$0xff] %vm185, %v1122
    %1126 = vmatprep.subr.mxu0 0.0
    %1127 = vmatpush1.msra.mxu0 %v703
    %1128 = vmatprep.subr.mxu0 0.0
    %1129 = vmatpush1.msra.mxu0 0.0
    %1130 = vmatprep.subr.mxu0 0.0
    %1131 = vmatpush1.msra.mxu0 0.0
    %1132 = vmatprep.subr.mxu0 0.0
    %1133 = vmatpush1.msra.mxu0 0.0
    %1134 = vmatprep.subr.mxu0 0.0
    %1135 = vmatpush1.msra.mxu0 0.0
    %1136 = vmatprep.subr.mxu0 0.0
    %1137 = vmatpush1.msra.mxu0 0.0
    %1138 = vmatprep.subr.mxu0 0.0
    %1139 = vmatpush1.msra.mxu0 0.0
    %1140 = vmatprep.subr.mxu0 0.0
    %1141 = vmatpush1.msra.mxu0 0.0
    %1142 = vmatprep.subr.mxu0 0.0
    %1143 = vmatpush1.msra.mxu0 0.0
    %1144 = vmatprep.subr.mxu0 0.0
    %1145 = vmatpush1.msra.mxu0 0.0
    %1146 = vmatprep.subr.mxu0 0.0
    %1147 = vmatpush1.msra.mxu0 0.0
    %1148 = vmatprep.subr.mxu0 0.0
    %1149 = vmatpush1.msra.mxu0 0.0
    %1150 = vmatprep.subr.mxu0 0.0
    %1151 = vmatpush1.msra.mxu0 0.0
    %1152 = vmatprep.subr.mxu0 0.0
    %1153 = vmatpush1.msra.mxu0 0.0
    %1154 = vmatprep.subr.mxu0 0.0
    %1155 = vmatpush1.msra.mxu0 0.0
    %1156 = vmatprep.subr.mxu0 0.0
    %1157 = vmatpush1.msra.mxu0 0.0
    %1158 = vmatprep.subr.mxu0 0.0
    %1159 = vmatpush1.msra.mxu0 0.0
    %1160 = vmatprep.subr.mxu0 0.0
    %1161 = vmatpush1.msra.mxu0 0.0
    %1162 = vmatprep.subr.mxu0 0.0
    %1163 = vmatpush1.msra.mxu0 0.0
    %1164 = vmatprep.subr.mxu0 0.0
    %1165 = vmatpush1.msra.mxu0 0.0
    %1166 = vmatprep.subr.mxu0 0.0
    %1167 = vmatpush1.msra.mxu0 0.0
    %1168 = vmatprep.subr.mxu0 0.0
    %1169 = vmatpush1.msra.mxu0 0.0
    %1170 = vmatprep.subr.mxu0 0.0
    %1171 = vmatpush1.msra.mxu0 0.0
    %1172 = vmatprep.subr.mxu0 0.0
    %1173 = vmatpush1.msra.mxu0 0.0
    %1174 = vmatprep.subr.mxu0 0.0
    %1175 = vmatpush1.msra.mxu0 0.0
    %1176 = vmatprep.subr.mxu0 0.0
    %1177 = vmatpush1.msra.mxu0 0.0
    %1178 = vmatprep.subr.mxu0 0.0
    %1179 = vmatpush1.msra.mxu0 0.0
    %1180 = vmatprep.subr.mxu0 0.0
    %1181 = vmatpush1.msra.mxu0 0.0
    %1182 = vmatprep.subr.mxu0 0.0
    %1183 = vmatpush1.msra.mxu0 0.0
    %1184 = vmatprep.subr.mxu0 0.0
    %1185 = vmatpush1.msra.mxu0 0.0
    %1186 = vmatprep.subr.mxu0 0.0
    %1187 = vmatpush1.msra.mxu0 0.0
    %1188 = vmatprep.subr.mxu0 0.0
    %1189 = vmatpush1.msra.mxu0 0.0
    %1190 = vmatprep.mubr.f32.mxu0 0.0
    %1191 = vmatmul.mubr.f32.gmra.mrb[0].mxu0 %v911
    %v1192 = vpop.f32.mrb[0].mxu0
    %v1193 = vadd.f32 0.0, %v1192
    %v1194 = vpop.f32.mrb[0].mxu0
    %1195 = vdwg.mxu0
    %1196 = vst.msk [vmem:[#allocation3 + $0x18] sm:$0xff] %vm185, %v1193
    %1197 = vmatprep.subr.mxu0 0.0
    %1198 = vmatpush1.msra.mxu0 %v704
    %1199 = vmatprep.subr.mxu0 0.0
    %1200 = vmatpush1.msra.mxu0 0.0
    %1201 = vmatprep.subr.mxu0 0.0
    %1202 = vmatpush1.msra.mxu0 0.0
    %1203 = vmatprep.subr.mxu0 0.0
    %1204 = vmatpush1.msra.mxu0 0.0
    %1205 = vmatprep.subr.mxu0 0.0
    %1206 = vmatpush1.msra.mxu0 0.0
    %1207 = vmatprep.subr.mxu0 0.0
    %1208 = vmatpush1.msra.mxu0 0.0
    %1209 = vmatprep.subr.mxu0 0.0
    %1210 = vmatpush1.msra.mxu0 0.0
    %1211 = vmatprep.subr.mxu0 0.0
    %1212 = vmatpush1.msra.mxu0 0.0
    %1213 = vmatprep.subr.mxu0 0.0
    %1214 = vmatpush1.msra.mxu0 0.0
    %1215 = vmatprep.subr.mxu0 0.0
    %1216 = vmatpush1.msra.mxu0 0.0
    %1217 = vmatprep.subr.mxu0 0.0
    %1218 = vmatpush1.msra.mxu0 0.0
    %1219 = vmatprep.subr.mxu0 0.0
    %1220 = vmatpush1.msra.mxu0 0.0
    %1221 = vmatprep.subr.mxu0 0.0
    %1222 = vmatpush1.msra.mxu0 0.0
    %1223 = vmatprep.subr.mxu0 0.0
    %1224 = vmatpush1.msra.mxu0 0.0
    %1225 = vmatprep.subr.mxu0 0.0
    %1226 = vmatpush1.msra.mxu0 0.0
    %1227 = vmatprep.subr.mxu0 0.0
    %1228 = vmatpush1.msra.mxu0 0.0
    %1229 = vmatprep.subr.mxu0 0.0
    %1230 = vmatpush1.msra.mxu0 0.0
    %1231 = vmatprep.subr.mxu0 0.0
    %1232 = vmatpush1.msra.mxu0 0.0
    %1233 = vmatprep.subr.mxu0 0.0
    %1234 = vmatpush1.msra.mxu0 0.0
    %1235 = vmatprep.subr.mxu0 0.0
    %1236 = vmatpush1.msra.mxu0 0.0
    %1237 = vmatprep.subr.mxu0 0.0
    %1238 = vmatpush1.msra.mxu0 0.0
    %1239 = vmatprep.subr.mxu0 0.0
    %1240 = vmatpush1.msra.mxu0 0.0
    %1241 = vmatprep.subr.mxu0 0.0
    %1242 = vmatpush1.msra.mxu0 0.0
    %1243 = vmatprep.subr.mxu0 0.0
    %1244 = vmatpush1.msra.mxu0 0.0
    %1245 = vmatprep.subr.mxu0 0.0
    %1246 = vmatpush1.msra.mxu0 0.0
    %1247 = vmatprep.subr.mxu0 0.0
    %1248 = vmatpush1.msra.mxu0 0.0
    %1249 = vmatprep.subr.mxu0 0.0
    %1250 = vmatpush1.msra.mxu0 0.0
    %1251 = vmatprep.subr.mxu0 0.0
    %1252 = vmatpush1.msra.mxu0 0.0
    %1253 = vmatprep.subr.mxu0 0.0
    %1254 = vmatpush1.msra.mxu0 0.0
    %1255 = vmatprep.subr.mxu0 0.0
    %1256 = vmatpush1.msra.mxu0 0.0
    %1257 = vmatprep.subr.mxu0 0.0
    %1258 = vmatpush1.msra.mxu0 0.0
    %1259 = vmatprep.subr.mxu0 0.0
    %1260 = vmatpush1.msra.mxu0 0.0
    %1261 = vmatprep.mubr.f32.mxu0 0.0
    %1262 = vmatmul.mubr.f32.gmra.mrb[0].mxu0 %v911
    %v1263 = vpop.f32.mrb[0].mxu0
    %v1264 = vadd.f32 0.0, %v1263
    %v1265 = vpop.f32.mrb[0].mxu0
    %1266 = vdwg.mxu0
    %1267 = vst.msk [vmem:[#allocation3 + $0x20] sm:$0xff] %vm185, %v1264
    %v1268 = vld [vmem:[#allocation3] sm:$0xff]
    %v1269 = vld [vmem:[#allocation3 + $0x8] sm:$0xff]
    %v1270 = vld [vmem:[#allocation3 + $0x10] sm:$0xff]
    %v1271 = vld [vmem:[#allocation3 + $0x18] sm:$0xff]
    %v1272 = vld [vmem:[#allocation3 + $0x20] sm:$0xff]
    %v1273 = vld [vmem:[#allocation13] sm:$0xff]
    %v1274 = vld [vmem:[#allocation13 + $0x8] sm:$0xff]
    %v1275 = vld [vmem:[#allocation13 + $0x10] sm:$0xff]
    %v1276 = vld [vmem:[#allocation13 + $0x18] sm:$0xff]
    %v1277 = vld [vmem:[%s2] sm:$0xff]
    %v1278 = vld [vmem:[%s2 + $0x8] sm:$0xff]
    %v1279 = vld [vmem:[%s2 + $0x10] sm:$0xff]
    %v1280 = vld [vmem:[%s2 + $0x18] sm:$0xff]
    %v1281 = vld [vmem:[%s2 + $0x20] sm:$0xff]
    %v1282 = vld [vmem:[%s15] sm:$0x1f]
    %vm1283 = vcmask 39936
    %v1285 = vsel %vm1283, %v1277, 0
    %v1288 = vsel %vm1283, %v1278, 0
    %v1291 = vsel %vm1283, %v1279, 0
    %v1294 = vsel %vm1283, %v1280, 0
    %v1297 = vsel %vm1283, %v1281, 0
    %vm1299 = vcmask 1044480
    %v1301 = vsel %vm1299, %v1282, 0
    %1303 = vmatprep.subr.mxu0 0.0
    %1304 = vmatpush1.msra.mxu0 %v1301
    %1305 = vmatprep.subr.mxu0 0.0
    %1306 = vmatpush1.msra.mxu0 0.0
    %1307 = vmatprep.subr.mxu0 0.0
    %1308 = vmatpush1.msra.mxu0 0.0
    %1309 = vmatprep.subr.mxu0 0.0
    %1310 = vmatpush1.msra.mxu0 0.0
    %1311 = vmatprep.subr.mxu0 0.0
    %1312 = vmatpush1.msra.mxu0 0.0
    %1313 = vmatprep.subr.mxu0 0.0
    %1314 = vmatpush1.msra.mxu0 0.0
    %1315 = vmatprep.subr.mxu0 0.0
    %1316 = vmatpush1.msra.mxu0 0.0
    %1317 = vmatprep.subr.mxu0 0.0
    %1318 = vmatpush1.msra.mxu0 0.0
    %1319 = vmatprep.subr.mxu0 0.0
    %1320 = vmatpush1.msra.mxu0 0.0
    %1321 = vmatprep.subr.mxu0 0.0
    %1322 = vmatpush1.msra.mxu0 0.0
    %1323 = vmatprep.subr.mxu0 0.0
    %1324 = vmatpush1.msra.mxu0 0.0
    %1325 = vmatprep.subr.mxu0 0.0
    %1326 = vmatpush1.msra.mxu0 0.0
    %1327 = vmatprep.subr.mxu0 0.0
    %1328 = vmatpush1.msra.mxu0 0.0
    %1329 = vmatprep.subr.mxu0 0.0
    %1330 = vmatpush1.msra.mxu0 0.0
    %1331 = vmatprep.subr.mxu0 0.0
    %1332 = vmatpush1.msra.mxu0 0.0
    %1333 = vmatprep.subr.mxu0 0.0
    %1334 = vmatpush1.msra.mxu0 0.0
    %1335 = vmatprep.subr.mxu0 0.0
    %1336 = vmatpush1.msra.mxu0 0.0
    %1337 = vmatprep.subr.mxu0 0.0
    %1338 = vmatpush1.msra.mxu0 0.0
    %1339 = vmatprep.subr.mxu0 0.0
    %1340 = vmatpush1.msra.mxu0 0.0
    %1341 = vmatprep.subr.mxu0 0.0
    %1342 = vmatpush1.msra.mxu0 0.0
    %1343 = vmatprep.subr.mxu0 0.0
    %1344 = vmatpush1.msra.mxu0 0.0
    %1345 = vmatprep.subr.mxu0 0.0
    %1346 = vmatpush1.msra.mxu0 0.0
    %1347 = vmatprep.subr.mxu0 0.0
    %1348 = vmatpush1.msra.mxu0 0.0
    %1349 = vmatprep.subr.mxu0 0.0
    %1350 = vmatpush1.msra.mxu0 0.0
    %1351 = vmatprep.subr.mxu0 0.0
    %1352 = vmatpush1.msra.mxu0 0.0
    %1353 = vmatprep.subr.mxu0 0.0
    %1354 = vmatpush1.msra.mxu0 0.0
    %1355 = vmatprep.subr.mxu0 0.0
    %1356 = vmatpush1.msra.mxu0 0.0
    %1357 = vmatprep.subr.mxu0 0.0
    %1358 = vmatpush1.msra.mxu0 0.0
    %1359 = vmatprep.subr.mxu0 0.0
    %1360 = vmatpush1.msra.mxu0 0.0
    %1361 = vmatprep.subr.mxu0 0.0
    %1362 = vmatpush1.msra.mxu0 0.0
    %1363 = vmatprep.subr.mxu0 0.0
    %1364 = vmatpush1.msra.mxu0 0.0
    %1365 = vmatprep.subr.mxu0 0.0
    %1366 = vmatpush1.msra.mxu0 0.0
    %1367 = vmatprep.mubr.f32.mxu0 0.0
    %1368 = vmatmul.mubr.f32.gmra.mrb[0].mxu0 %v1285
    %v1369 = vpop.f32.mrb[0].mxu0
    %v1370 = vadd.f32 0.0, %v1369
    %v1371 = vpop.f32.mrb[0].mxu0
    %1372 = vmatprep.mubr.f32.mxu0 0.0
    %1373 = vmatmul.mubr.f32.gmra.mrb[0].mxu0 %v1288
    %v1374 = vpop.f32.mrb[0].mxu0
    %v1375 = vadd.f32 0.0, %v1374
    %v1376 = vpop.f32.mrb[0].mxu0
    %1377 = vmatprep.mubr.f32.mxu0 0.0
    %1378 = vmatmul.mubr.f32.gmra.mrb[0].mxu0 %v1291
    %v1379 = vpop.f32.mrb[0].mxu0
    %v1380 = vadd.f32 0.0, %v1379
    %v1381 = vpop.f32.mrb[0].mxu0
    %1382 = vmatprep.mubr.f32.mxu0 0.0
    %1383 = vmatmul.mubr.f32.gmra.mrb[0].mxu0 %v1294
    %v1384 = vpop.f32.mrb[0].mxu0
    %v1385 = vadd.f32 0.0, %v1384
    %v1386 = vpop.f32.mrb[0].mxu0
    %1387 = vmatprep.mubr.f32.mxu0 0.0
    %1388 = vmatmul.mubr.f32.gmra.mrb[0].mxu0 %v1297
    %v1389 = vpop.f32.mrb[0].mxu0
    %v1390 = vadd.f32 0.0, %v1389
    %v1391 = vpop.f32.mrb[0].mxu0
    %1392 = vdwg.mxu0
    %v1394 = vsel %vm185, %v1268, 0
    %v1397 = vsel %vm185, %v1269, 0
    %v1400 = vsel %vm185, %v1270, 0
    %v1403 = vsel %vm185, %v1271, 0
    %v1406 = vsel %vm185, %v1272, 0
    %1408 = vmatprep.subr.mxu0 0.0
    %1409 = vmatpush1.msra.mxu0 %v1273
    %1410 = vmatprep.subr.mxu0 0.0
    %1411 = vmatpush1.msra.mxu0 %v1274
    %1412 = vmatprep.subr.mxu0 0.0
    %1413 = vmatpush1.msra.mxu0 %v1275
    %1414 = vmatprep.subr.mxu0 0.0
    %1415 = vmatpush1.msra.mxu0 %v1276
    %1416 = vmatprep.subr.mxu0 0.0
    %1417 = vmatpush1.msra.mxu0 0.0
    %1418 = vmatprep.subr.mxu0 0.0
    %1419 = vmatpush1.msra.mxu0 0.0
    %1420 = vmatprep.subr.mxu0 0.0
    %1421 = vmatpush1.msra.mxu0 0.0
    %1422 = vmatprep.subr.mxu0 0.0
    %1423 = vmatpush1.msra.mxu0 0.0
    %1424 = vmatprep.subr.mxu0 0.0
    %1425 = vmatpush1.msra.mxu0 0.0
    %1426 = vmatprep.subr.mxu0 0.0
    %1427 = vmatpush1.msra.mxu0 0.0
    %1428 = vmatprep.subr.mxu0 0.0
    %1429 = vmatpush1.msra.mxu0 0.0
    %1430 = vmatprep.subr.mxu0 0.0
    %1431 = vmatpush1.msra.mxu0 0.0
    %1432 = vmatprep.subr.mxu0 0.0
    %1433 = vmatpush1.msra.mxu0 0.0
    %1434 = vmatprep.subr.mxu0 0.0
    %1435 = vmatpush1.msra.mxu0 0.0
    %1436 = vmatprep.subr.mxu0 0.0
    %1437 = vmatpush1.msra.mxu0 0.0
    %1438 = vmatprep.subr.mxu0 0.0
    %1439 = vmatpush1.msra.mxu0 0.0
    %1440 = vmatprep.subr.mxu0 0.0
    %1441 = vmatpush1.msra.mxu0 0.0
    %1442 = vmatprep.subr.mxu0 0.0
    %1443 = vmatpush1.msra.mxu0 0.0
    %1444 = vmatprep.subr.mxu0 0.0
    %1445 = vmatpush1.msra.mxu0 0.0
    %1446 = vmatprep.subr.mxu0 0.0
    %1447 = vmatpush1.msra.mxu0 0.0
    %1448 = vmatprep.subr.mxu0 0.0
    %1449 = vmatpush1.msra.mxu0 0.0
    %1450 = vmatprep.subr.mxu0 0.0
    %1451 = vmatpush1.msra.mxu0 0.0
    %1452 = vmatprep.subr.mxu0 0.0
    %1453 = vmatpush1.msra.mxu0 0.0
    %1454 = vmatprep.subr.mxu0 0.0
    %1455 = vmatpush1.msra.mxu0 0.0
    %1456 = vmatprep.subr.mxu0 0.0
    %1457 = vmatpush1.msra.mxu0 0.0
    %1458 = vmatprep.subr.mxu0 0.0
    %1459 = vmatpush1.msra.mxu0 0.0
    %1460 = vmatprep.subr.mxu0 0.0
    %1461 = vmatpush1.msra.mxu0 0.0
    %1462 = vmatprep.subr.mxu0 0.0
    %1463 = vmatpush1.msra.mxu0 0.0
    %1464 = vmatprep.subr.mxu0 0.0
    %1465 = vmatpush1.msra.mxu0 0.0
    %1466 = vmatprep.subr.mxu0 0.0
    %1467 = vmatpush1.msra.mxu0 0.0
    %1468 = vmatprep.subr.mxu0 0.0
    %1469 = vmatpush1.msra.mxu0 0.0
    %1470 = vmatprep.subr.mxu0 0.0
    %1471 = vmatpush1.msra.mxu0 0.0
    %1472 = vmatprep.mubr.f32.mxu0 0.0
    %1473 = vmatmul.mubr.f32.gmra.mrb[0].mxu0 %v1394
    %v1474 = vpop.f32.mrb[0].mxu0
    %v1475 = vadd.f32 %v1370, %v1474
    %v1476 = vpop.f32.mrb[0].mxu0
    %1477 = vmatprep.mubr.f32.mxu0 0.0
    %1478 = vmatmul.mubr.f32.gmra.mrb[0].mxu0 %v1397
    %v1479 = vpop.f32.mrb[0].mxu0
    %v1480 = vadd.f32 %v1375, %v1479
    %v1481 = vpop.f32.mrb[0].mxu0
    %1482 = vmatprep.mubr.f32.mxu0 0.0
    %1483 = vmatmul.mubr.f32.gmra.mrb[0].mxu0 %v1400
    %v1484 = vpop.f32.mrb[0].mxu0
    %v1485 = vadd.f32 %v1380, %v1484
    %v1486 = vpop.f32.mrb[0].mxu0
    %1487 = vmatprep.mubr.f32.mxu0 0.0
    %1488 = vmatmul.mubr.f32.gmra.mrb[0].mxu0 %v1403
    %v1489 = vpop.f32.mrb[0].mxu0
    %v1490 = vadd.f32 %v1385, %v1489
    %v1491 = vpop.f32.mrb[0].mxu0
    %1492 = vmatprep.mubr.f32.mxu0 0.0
    %1493 = vmatmul.mubr.f32.gmra.mrb[0].mxu0 %v1406
    %v1494 = vpop.f32.mrb[0].mxu0
    %v1495 = vadd.f32 %v1390, %v1494
    %v1496 = vpop.f32.mrb[0].mxu0
    %1497 = vdwg.mxu0
    %v1498 = vld [vmem:[%s16] sm:$0x1]
    %v1500 = vlaneseq
    %v1501 = vshrl.u32 %v1500, 7
    %v1502 = vsub.s32 0, %v1501
    %v1503 = vrot.slane %v1498, %v1502
    %v1505 = vadd.f32 %v1475, %v1503
    %v1506 = vadd.f32 %v1480, %v1503
    %v1507 = vadd.f32 %v1485, %v1503
    %v1508 = vadd.f32 %v1490, %v1503
    %v1509 = vadd.f32 %v1495, %v1503
    %v1510 = vmax.f32 %v1505, 0.0
    %v1511 = vmax.f32 %v1506, 0.0
    %v1512 = vmax.f32 %v1507, 0.0
    %v1513 = vmax.f32 %v1508, 0.0
    %v1514 = vmax.f32 %v1509, 0.0
    %1515 = vst [vmem:[#allocation2] sm:$0xff] 0.0
    %1516 = vst [vmem:[#allocation2 + $0x8] sm:$0xff] 0.0
    %1517 = vst.msk [vmem:[#allocation2] sm:$0xff] %vm185, %v1510
    %v1518 = vld [vmem:[%s3] sm:$0xff]
    %1520 = vrot.lane.b32.xlu0 %v1518, 32
    %v1521 = vpop.permute.xlu0 %1520
    %vm1523 = vcmask 302336
    %1524 = vst.msk [vmem:[#allocation2] sm:$0xff] %vm1523, %v1521
    %v1525 = vld [vmem:[#allocation2] sm:$0xff]
    %v1526 = vld [vmem:[#allocation2 + $0x8] sm:$0xff]
    %v1527 = vld [vmem:[#allocation15] sm:$0xff]
    %v1528 = vld [vmem:[#allocation15 + $0x8] sm:$0xff]
    %v1529 = vld [vmem:[#allocation15 + $0x10] sm:$0xff]
    %v1530 = vld [vmem:[#allocation15 + $0x18] sm:$0xff]
    %v1531 = vld [vmem:[#allocation15 + $0x20] sm:$0xff]
    %v1532 = vld [vmem:[#allocation15 + $0x28] sm:$0xff]
    %v1533 = vld [vmem:[#allocation15 + $0x30] sm:$0xff]
    %v1534 = vld [vmem:[#allocation15 + $0x38] sm:$0xff]
    %v1535 = vld [vmem:[#allocation15 + $0x40] sm:$0xff]
    %v1536 = vld [vmem:[#allocation15 + $0x48] sm:$0xff]
    %v1537 = vld [vmem:[#allocation15 + $0x50] sm:$0xff]
    %v1538 = vld [vmem:[#allocation15 + $0x58] sm:$0xff]
    %v1539 = vld [vmem:[#allocation15 + $0x60] sm:$0xff]
    %v1540 = vld [vmem:[#allocation15 + $0x68] sm:$0xff]
    %v1541 = vld [vmem:[#allocation15 + $0x70] sm:$0xff]
    %v1542 = vld [vmem:[#allocation15 + $0x78] sm:$0xff]
    %v1543 = vld [vmem:[#allocation15 + $0x80] sm:$0xff]
    %v1544 = vld [vmem:[#allocation15 + $0x88] sm:$0xff]
    %v1545 = vld [vmem:[#allocation15 + $0x90] sm:$0xff]
    %v1546 = vld [vmem:[#allocation15 + $0x98] sm:$0xff]
    %v1547 = vld [vmem:[#allocation15 + $0xa0] sm:$0xff]
    %v1548 = vld [vmem:[#allocation15 + $0xa8] sm:$0xff]
    %v1549 = vld [vmem:[#allocation15 + $0xb0] sm:$0xff]
    %v1550 = vld [vmem:[#allocation15 + $0xb8] sm:$0xff]
    %v1551 = vld [vmem:[#allocation15 + $0xc0] sm:$0xff]
    %v1552 = vld [vmem:[#allocation15 + $0xc8] sm:$0xff]
    %v1553 = vld [vmem:[#allocation15 + $0xd0] sm:$0xff]
    %v1554 = vld [vmem:[#allocation15 + $0xd8] sm:$0xff]
    %v1555 = vld [vmem:[#allocation15 + $0xe0] sm:$0xff]
    %v1556 = vld [vmem:[#allocation15 + $0xe8] sm:$0xff]
    %v1557 = vld [vmem:[#allocation15 + $0xf0] sm:$0xff]
    %v1558 = vld [vmem:[#allocation15 + $0xf8] sm:$0xff]
    %v1559 = vld [vmem:[#allocation15 + $0x100] sm:$0xff]
    %v1560 = vld [vmem:[#allocation15 + $0x108] sm:$0xff]
    %v1561 = vld [vmem:[#allocation15 + $0x110] sm:$0xff]
    %v1562 = vld [vmem:[#allocation15 + $0x118] sm:$0xff]
    %v1563 = vld [vmem:[#allocation15 + $0x120] sm:$0xff]
    %v1564 = vld [vmem:[#allocation15 + $0x128] sm:$0xff]
    %v1565 = vld [vmem:[#allocation15 + $0x130] sm:$0xff]
    %v1566 = vld [vmem:[#allocation15 + $0x138] sm:$0xff]
    %v1567 = vld [vmem:[#allocation15 + $0x140] sm:$0xff]
    %v1568 = vld [vmem:[#allocation15 + $0x148] sm:$0xff]
    %v1569 = vld [vmem:[#allocation15 + $0x150] sm:$0xff]
    %v1570 = vld [vmem:[#allocation15 + $0x158] sm:$0xff]
    %v1571 = vld [vmem:[#allocation15 + $0x160] sm:$0xff]
    %v1572 = vld [vmem:[#allocation15 + $0x168] sm:$0xff]
    %v1573 = vld [vmem:[#allocation15 + $0x170] sm:$0xff]
    %v1574 = vld [vmem:[#allocation15 + $0x178] sm:$0xff]
    %v1575 = vld [vmem:[#allocation15 + $0x180] sm:$0xff]
    %v1576 = vld [vmem:[#allocation15 + $0x188] sm:$0xff]
    %v1577 = vld [vmem:[#allocation15 + $0x190] sm:$0xff]
    %v1578 = vld [vmem:[#allocation15 + $0x198] sm:$0xff]
    %v1579 = vld [vmem:[#allocation15 + $0x1a0] sm:$0xff]
    %v1580 = vld [vmem:[#allocation15 + $0x1a8] sm:$0xff]
    %v1581 = vld [vmem:[#allocation15 + $0x1b0] sm:$0xff]
    %v1582 = vld [vmem:[#allocation15 + $0x1b8] sm:$0xff]
    %v1583 = vld [vmem:[#allocation15 + $0x1c0] sm:$0xff]
    %v1584 = vld [vmem:[#allocation15 + $0x1c8] sm:$0xff]
    %v1585 = vld [vmem:[#allocation15 + $0x1d0] sm:$0xff]
    %v1586 = vld [vmem:[#allocation15 + $0x1d8] sm:$0xff]
    %v1587 = vld [vmem:[#allocation15 + $0x1e0] sm:$0xff]
    %v1588 = vld [vmem:[#allocation15 + $0x1e8] sm:$0xff]
    %v1589 = vld [vmem:[#allocation15 + $0x1f0] sm:$0xff]
    %v1590 = vld [vmem:[#allocation15 + $0x1f8] sm:$0xff]
    %v1591 = vld [vmem:[#allocation15 + $0x200] sm:$0xff]
    %v1592 = vld [vmem:[#allocation15 + $0x208] sm:$0xff]
    %v1593 = vld [vmem:[#allocation15 + $0x210] sm:$0xff]
    %v1594 = vld [vmem:[#allocation15 + $0x218] sm:$0xff]
    %v1595 = vld [vmem:[#allocation15 + $0x220] sm:$0xff]
    %v1596 = vld [vmem:[#allocation15 + $0x228] sm:$0xff]
    %v1597 = vld [vmem:[#allocation15 + $0x230] sm:$0xff]
    %v1598 = vld [vmem:[#allocation15 + $0x238] sm:$0xff]
    %v1599 = vld [vmem:[#allocation15 + $0x240] sm:$0xff]
    %v1600 = vld [vmem:[#allocation15 + $0x248] sm:$0xff]
    %v1601 = vld [vmem:[#allocation15 + $0x250] sm:$0xff]
    %v1602 = vld [vmem:[#allocation15 + $0x258] sm:$0xff]
    %v1603 = vld [vmem:[#allocation15 + $0x260] sm:$0xff]
    %v1604 = vld [vmem:[#allocation15 + $0x268] sm:$0xff]
    %v1605 = vld [vmem:[#allocation15 + $0x270] sm:$0xff]
    %v1606 = vld [vmem:[#allocation15 + $0x278] sm:$0xff]
    %v1607 = vld [vmem:[#allocation15 + $0x280] sm:$0xff]
    %v1608 = vld [vmem:[#allocation15 + $0x288] sm:$0xff]
    %v1609 = vld [vmem:[#allocation15 + $0x290] sm:$0xff]
    %v1610 = vld [vmem:[#allocation15 + $0x298] sm:$0xff]
    %v1611 = vld [vmem:[#allocation15 + $0x2a0] sm:$0xff]
    %v1612 = vld [vmem:[#allocation15 + $0x2a8] sm:$0xff]
    %v1613 = vld [vmem:[#allocation15 + $0x2b0] sm:$0xff]
    %v1614 = vld [vmem:[#allocation15 + $0x2b8] sm:$0xff]
    %v1615 = vld [vmem:[#allocation15 + $0x2c0] sm:$0xff]
    %v1616 = vld [vmem:[#allocation15 + $0x2c8] sm:$0xff]
    %v1617 = vld [vmem:[#allocation15 + $0x2d0] sm:$0xff]
    %v1618 = vld [vmem:[#allocation15 + $0x2d8] sm:$0xff]
    %v1619 = vld [vmem:[#allocation15 + $0x2e0] sm:$0xff]
    %v1620 = vld [vmem:[#allocation15 + $0x2e8] sm:$0xff]
    %v1621 = vld [vmem:[#allocation15 + $0x2f0] sm:$0xff]
    %v1622 = vld [vmem:[#allocation15 + $0x2f8] sm:$0xff]
    %v1623 = vld [vmem:[#allocation15 + $0x300] sm:$0xff]
    %v1624 = vld [vmem:[#allocation15 + $0x308] sm:$0xff]
    %v1625 = vld [vmem:[#allocation15 + $0x310] sm:$0xff]
    %v1626 = vld [vmem:[#allocation15 + $0x318] sm:$0xff]
    %v1627 = vld [vmem:[#allocation15 + $0x320] sm:$0xff]
    %v1628 = vld [vmem:[#allocation15 + $0x328] sm:$0xff]
    %v1629 = vld [vmem:[#allocation15 + $0x330] sm:$0xff]
    %v1630 = vld [vmem:[#allocation15 + $0x338] sm:$0xff]
    %v1631 = vld [vmem:[#allocation15 + $0x340] sm:$0xff]
    %v1632 = vld [vmem:[#allocation15 + $0x348] sm:$0xff]
    %v1633 = vld [vmem:[#allocation15 + $0x350] sm:$0xff]
    %v1634 = vld [vmem:[#allocation15 + $0x358] sm:$0xff]
    %v1635 = vld [vmem:[#allocation15 + $0x360] sm:$0xff]
    %v1636 = vld [vmem:[#allocation15 + $0x368] sm:$0xff]
    %v1637 = vld [vmem:[#allocation15 + $0x370] sm:$0xff]
    %v1638 = vld [vmem:[#allocation15 + $0x378] sm:$0xff]
    %v1639 = vld [vmem:[#allocation15 + $0x380] sm:$0xff]
    %v1640 = vld [vmem:[#allocation15 + $0x388] sm:$0xff]
    %v1641 = vld [vmem:[#allocation15 + $0x390] sm:$0xff]
    %v1642 = vld [vmem:[#allocation15 + $0x398] sm:$0xff]
    %v1643 = vld [vmem:[#allocation15 + $0x3a0] sm:$0xff]
    %v1644 = vld [vmem:[#allocation15 + $0x3a8] sm:$0xff]
    %v1645 = vld [vmem:[#allocation15 + $0x3b0] sm:$0xff]
    %v1646 = vld [vmem:[#allocation15 + $0x3b8] sm:$0xff]
    %v1647 = vld [vmem:[#allocation15 + $0x3c0] sm:$0xff]
    %v1648 = vld [vmem:[#allocation15 + $0x3c8] sm:$0xff]
    %v1649 = vld [vmem:[#allocation15 + $0x3d0] sm:$0xff]
    %v1650 = vld [vmem:[#allocation15 + $0x3d8] sm:$0xff]
    %v1651 = vld [vmem:[#allocation15 + $0x3e0] sm:$0xff]
    %v1652 = vld [vmem:[#allocation15 + $0x3e8] sm:$0xff]
    %v1653 = vld [vmem:[#allocation15 + $0x3f0] sm:$0xff]
    %v1654 = vld [vmem:[#allocation15 + $0x3f8] sm:$0xff]
    %v1655 = vld [vmem:[%s18] sm:$0xf]
    %v1657 = vlaneseq
    %v1658 = vshrl.u32 %v1657, 7
    %v1659 = vsub.s32 0, %v1658
    %v1660 = vrot.slane %v1655, %v1659
    %v1661 = vlaneseq
    %v1662 = vshrl.u32 %v1661, 7
    %v1663 = vsub.s32 1, %v1662
    %v1664 = vrot.slane %v1655, %v1663
    %v1665 = vlaneseq
    %v1666 = vshrl.u32 %v1665, 7
    %v1667 = vsub.s32 2, %v1666
    %v1668 = vrot.slane %v1655, %v1667
    %v1669 = vlaneseq
    %v1670 = vshrl.u32 %v1669, 7
    %v1671 = vsub.s32 3, %v1670
    %v1672 = vrot.slane %v1655, %v1671
    %1677 = vmatprep.subr.mxu0 %v1528
    %1678 = vmatpush1.msra.mxu0 %v1527
    %1679 = vmatprep.subr.mxu0 %v1532
    %1680 = vmatpush1.msra.mxu0 %v1531
    %1681 = vmatprep.subr.mxu0 %v1536
    %1682 = vmatpush1.msra.mxu0 %v1535
    %1683 = vmatprep.subr.mxu0 %v1540
    %1684 = vmatpush1.msra.mxu0 %v1539
    %1685 = vmatprep.subr.mxu0 %v1544
    %1686 = vmatpush1.msra.mxu0 %v1543
    %1687 = vmatprep.subr.mxu0 %v1548
    %1688 = vmatpush1.msra.mxu0 %v1547
    %1689 = vmatprep.subr.mxu0 %v1552
    %1690 = vmatpush1.msra.mxu0 %v1551
    %1691 = vmatprep.subr.mxu0 %v1556
    %1692 = vmatpush1.msra.mxu0 %v1555
    %1693 = vmatprep.subr.mxu0 %v1560
    %1694 = vmatpush1.msra.mxu0 %v1559
    %1695 = vmatprep.subr.mxu0 %v1564
    %1696 = vmatpush1.msra.mxu0 %v1563
    %1697 = vmatprep.subr.mxu0 %v1568
    %1698 = vmatpush1.msra.mxu0 %v1567
    %1699 = vmatprep.subr.mxu0 %v1572
    %1700 = vmatpush1.msra.mxu0 %v1571
    %1701 = vmatprep.subr.mxu0 %v1576
    %1702 = vmatpush1.msra.mxu0 %v1575
    %1703 = vmatprep.subr.mxu0 %v1580
    %1704 = vmatpush1.msra.mxu0 %v1579
    %1705 = vmatprep.subr.mxu0 %v1584
    %1706 = vmatpush1.msra.mxu0 %v1583
    %1707 = vmatprep.subr.mxu0 %v1588
    %1708 = vmatpush1.msra.mxu0 %v1587
    %1709 = vmatprep.subr.mxu0 %v1592
    %1710 = vmatpush1.msra.mxu0 %v1591
    %1711 = vmatprep.subr.mxu0 %v1596
    %1712 = vmatpush1.msra.mxu0 %v1595
    %1713 = vmatprep.subr.mxu0 %v1600
    %1714 = vmatpush1.msra.mxu0 %v1599
    %1715 = vmatprep.subr.mxu0 %v1604
    %1716 = vmatpush1.msra.mxu0 %v1603
    %1717 = vmatprep.subr.mxu0 %v1608
    %1718 = vmatpush1.msra.mxu0 %v1607
    %1719 = vmatprep.subr.mxu0 %v1612
    %1720 = vmatpush1.msra.mxu0 %v1611
    %1721 = vmatprep.subr.mxu0 %v1616
    %1722 = vmatpush1.msra.mxu0 %v1615
    %1723 = vmatprep.subr.mxu0 %v1620
    %1724 = vmatpush1.msra.mxu0 %v1619
    %1725 = vmatprep.subr.mxu0 %v1624
    %1726 = vmatpush1.msra.mxu0 %v1623
    %1727 = vmatprep.subr.mxu0 %v1628
    %1728 = vmatpush1.msra.mxu0 %v1627
    %1729 = vmatprep.subr.mxu0 %v1632
    %1730 = vmatpush1.msra.mxu0 %v1631
    %1731 = vmatprep.subr.mxu0 %v1636
    %1732 = vmatpush1.msra.mxu0 %v1635
    %1733 = vmatprep.subr.mxu0 %v1640
    %1734 = vmatpush1.msra.mxu0 %v1639
    %1735 = vmatprep.subr.mxu0 %v1644
    %1736 = vmatpush1.msra.mxu0 %v1643
    %1737 = vmatprep.subr.mxu0 %v1648
    %1738 = vmatpush1.msra.mxu0 %v1647
    %1739 = vmatprep.subr.mxu0 %v1652
    %1740 = vmatpush1.msra.mxu0 %v1651
    %1741 = vmatprep.mubr.f32.mxu0 %v1526
    %1742 = vmatmul.mubr.f32.gmra.mrb[0].mxu0 %v1525
    %v1743 = vpop.f32.mrb[0].mxu0
    %v1744 = vadd.f32 %v1660, %v1743
    %v1745 = vpop.f32.mrb[0].mxu0
    %v1746 = vadd.f32 %v1664, %v1745
    %1747 = vdwg.mxu0
    %1748 = vmatprep.subr.mxu0 %v1530
    %1749 = vmatpush1.msra.mxu0 %v1529
    %1750 = vmatprep.subr.mxu0 %v1534
    %1751 = vmatpush1.msra.mxu0 %v1533
    %1752 = vmatprep.subr.mxu0 %v1538
    %1753 = vmatpush1.msra.mxu0 %v1537
    %1754 = vmatprep.subr.mxu0 %v1542
    %1755 = vmatpush1.msra.mxu0 %v1541
    %1756 = vmatprep.subr.mxu0 %v1546
    %1757 = vmatpush1.msra.mxu0 %v1545
    %1758 = vmatprep.subr.mxu0 %v1550
    %1759 = vmatpush1.msra.mxu0 %v1549
    %1760 = vmatprep.subr.mxu0 %v1554
    %1761 = vmatpush1.msra.mxu0 %v1553
    %1762 = vmatprep.subr.mxu0 %v1558
    %1763 = vmatpush1.msra.mxu0 %v1557
    %1764 = vmatprep.subr.mxu0 %v1562
    %1765 = vmatpush1.msra.mxu0 %v1561
    %1766 = vmatprep.subr.mxu0 %v1566
    %1767 = vmatpush1.msra.mxu0 %v1565
    %1768 = vmatprep.subr.mxu0 %v1570
    %1769 = vmatpush1.msra.mxu0 %v1569
    %1770 = vmatprep.subr.mxu0 %v1574
    %1771 = vmatpush1.msra.mxu0 %v1573
    %1772 = vmatprep.subr.mxu0 %v1578
    %1773 = vmatpush1.msra.mxu0 %v1577
    %1774 = vmatprep.subr.mxu0 %v1582
    %1775 = vmatpush1.msra.mxu0 %v1581
    %1776 = vmatprep.subr.mxu0 %v1586
    %1777 = vmatpush1.msra.mxu0 %v1585
    %1778 = vmatprep.subr.mxu0 %v1590
    %1779 = vmatpush1.msra.mxu0 %v1589
    %1780 = vmatprep.subr.mxu0 %v1594
    %1781 = vmatpush1.msra.mxu0 %v1593
    %1782 = vmatprep.subr.mxu0 %v1598
    %1783 = vmatpush1.msra.mxu0 %v1597
    %1784 = vmatprep.subr.mxu0 %v1602
    %1785 = vmatpush1.msra.mxu0 %v1601
    %1786 = vmatprep.subr.mxu0 %v1606
    %1787 = vmatpush1.msra.mxu0 %v1605
    %1788 = vmatprep.subr.mxu0 %v1610
    %1789 = vmatpush1.msra.mxu0 %v1609
    %1790 = vmatprep.subr.mxu0 %v1614
    %1791 = vmatpush1.msra.mxu0 %v1613
    %1792 = vmatprep.subr.mxu0 %v1618
    %1793 = vmatpush1.msra.mxu0 %v1617
    %1794 = vmatprep.subr.mxu0 %v1622
    %1795 = vmatpush1.msra.mxu0 %v1621
    %1796 = vmatprep.subr.mxu0 %v1626
    %1797 = vmatpush1.msra.mxu0 %v1625
    %1798 = vmatprep.subr.mxu0 %v1630
    %1799 = vmatpush1.msra.mxu0 %v1629
    %1800 = vmatprep.subr.mxu0 %v1634
    %1801 = vmatpush1.msra.mxu0 %v1633
    %1802 = vmatprep.subr.mxu0 %v1638
    %1803 = vmatpush1.msra.mxu0 %v1637
    %1804 = vmatprep.subr.mxu0 %v1642
    %1805 = vmatpush1.msra.mxu0 %v1641
    %1806 = vmatprep.subr.mxu0 %v1646
    %1807 = vmatpush1.msra.mxu0 %v1645
    %1808 = vmatprep.subr.mxu0 %v1650
    %1809 = vmatpush1.msra.mxu0 %v1649
    %1810 = vmatprep.subr.mxu0 %v1654
    %1811 = vmatpush1.msra.mxu0 %v1653
    %1812 = vmatprep.mubr.f32.mxu0 %v1526
    %1813 = vmatmul.mubr.f32.gmra.mrb[0].mxu0 %v1525
    %v1814 = vpop.f32.mrb[0].mxu0
    %v1815 = vadd.f32 %v1668, %v1814
    %v1816 = vpop.f32.mrb[0].mxu0
    %v1817 = vadd.f32 %v1672, %v1816
    %1818 = vdwg.mxu0
    %v1819 = vxor.u32 %v1744, 2147483648
    %v1820 = vmul.f32 %v1819, 1.442695
    %v1821 = vpow.pop %v1820
    %v1822 = vadd.f32 %v1821, 1.0
    %v1823 = vrcp.pop %v1822
    %v1824 = vmul.f32 1.0, %v1823
    %v1825 = vxor.u32 %v1746, 2147483648
    %v1826 = vmul.f32 %v1825, 1.442695
    %v1827 = vpow.pop %v1826
    %v1828 = vadd.f32 %v1827, 1.0
    %v1829 = vrcp.pop %v1828
    %v1830 = vmul.f32 1.0, %v1829
    %v1831 = vtanh.pop %v1815
    %v1832 = vxor.u32 %v1817, 2147483648
    %v1833 = vmul.f32 %v1832, 1.442695
    %v1834 = vpow.pop %v1833
    %v1835 = vadd.f32 %v1834, 1.0
    %v1836 = vrcp.pop %v1835
    %v1837 = vmul.f32 1.0, %v1836
    %v1838 = vmul.f32 %v1830, 0.0
    %v1839 = vmul.f32 %v1824, %v1831
    %v1840 = vadd.f32 %v1838, %v1839
    %v1841 = vtanh.pop %v1840
    %v1842 = vmul.f32 %v1837, %v1841
    %1843 = vst [vmem:[%s23] sm:$0xff] %v1842
    %1844 = vst [vmem:[#allocation2 + $0x8] sm:$0xff] %v1842
    %v1845 = vld [vmem:[%s3 + $0x8] sm:$0xff]
    %vm1846 = vcmp.eq.f32.partialorder %v1845, -5.0
    %1848 = vrot.lane.b32.xlu0 %v1842, 96
    %v1849 = vpop.permute.xlu0 %1848
    %v1851 = vsel %vm1846, %v1849, %v1845
    %1852 = vst.msk [vmem:[#allocation2] sm:$0xff] %vm185, %v1511
    %1854 = vrot.lane.b32.xlu0 %v1851, 32
    %v1855 = vpop.permute.xlu0 %1854
    %1857 = vst.msk [vmem:[#allocation2] sm:$0xff] %vm1523, %v1855
    %v1858 = vld [vmem:[#allocation2] sm:$0xff]
    %v1859 = vld [vmem:[#allocation2 + $0x8] sm:$0xff]
    %v1860 = vld [vmem:[#allocation15] sm:$0xff]
    %v1861 = vld [vmem:[#allocation15 + $0x8] sm:$0xff]
    %v1862 = vld [vmem:[#allocation15 + $0x10] sm:$0xff]
    %v1863 = vld [vmem:[#allocation15 + $0x18] sm:$0xff]
    %v1864 = vld [vmem:[#allocation15 + $0x20] sm:$0xff]
    %v1865 = vld [vmem:[#allocation15 + $0x28] sm:$0xff]
    %v1866 = vld [vmem:[#allocation15 + $0x30] sm:$0xff]
    %v1867 = vld [vmem:[#allocation15 + $0x38] sm:$0xff]
    %v1868 = vld [vmem:[#allocation15 + $0x40] sm:$0xff]
    %v1869 = vld [vmem:[#allocation15 + $0x48] sm:$0xff]
    %v1870 = vld [vmem:[#allocation15 + $0x50] sm:$0xff]
    %v1871 = vld [vmem:[#allocation15 + $0x58] sm:$0xff]
    %v1872 = vld [vmem:[#allocation15 + $0x60] sm:$0xff]
    %v1873 = vld [vmem:[#allocation15 + $0x68] sm:$0xff]
    %v1874 = vld [vmem:[#allocation15 + $0x70] sm:$0xff]
    %v1875 = vld [vmem:[#allocation15 + $0x78] sm:$0xff]
    %v1876 = vld [vmem:[#allocation15 + $0x80] sm:$0xff]
    %v1877 = vld [vmem:[#allocation15 + $0x88] sm:$0xff]
    %v1878 = vld [vmem:[#allocation15 + $0x90] sm:$0xff]
    %v1879 = vld [vmem:[#allocation15 + $0x98] sm:$0xff]
    %v1880 = vld [vmem:[#allocation15 + $0xa0] sm:$0xff]
    %v1881 = vld [vmem:[#allocation15 + $0xa8] sm:$0xff]
    %v1882 = vld [vmem:[#allocation15 + $0xb0] sm:$0xff]
    %v1883 = vld [vmem:[#allocation15 + $0xb8] sm:$0xff]
    %v1884 = vld [vmem:[#allocation15 + $0xc0] sm:$0xff]
    %v1885 = vld [vmem:[#allocation15 + $0xc8] sm:$0xff]
    %v1886 = vld [vmem:[#allocation15 + $0xd0] sm:$0xff]
    %v1887 = vld [vmem:[#allocation15 + $0xd8] sm:$0xff]
    %v1888 = vld [vmem:[#allocation15 + $0xe0] sm:$0xff]
    %v1889 = vld [vmem:[#allocation15 + $0xe8] sm:$0xff]
    %v1890 = vld [vmem:[#allocation15 + $0xf0] sm:$0xff]
    %v1891 = vld [vmem:[#allocation15 + $0xf8] sm:$0xff]
    %v1892 = vld [vmem:[#allocation15 + $0x100] sm:$0xff]
    %v1893 = vld [vmem:[#allocation15 + $0x108] sm:$0xff]
    %v1894 = vld [vmem:[#allocation15 + $0x110] sm:$0xff]
    %v1895 = vld [vmem:[#allocation15 + $0x118] sm:$0xff]
    %v1896 = vld [vmem:[#allocation15 + $0x120] sm:$0xff]
    %v1897 = vld [vmem:[#allocation15 + $0x128] sm:$0xff]
    %v1898 = vld [vmem:[#allocation15 + $0x130] sm:$0xff]
    %v1899 = vld [vmem:[#allocation15 + $0x138] sm:$0xff]
    %v1900 = vld [vmem:[#allocation15 + $0x140] sm:$0xff]
    %v1901 = vld [vmem:[#allocation15 + $0x148] sm:$0xff]
    %v1902 = vld [vmem:[#allocation15 + $0x150] sm:$0xff]
    %v1903 = vld [vmem:[#allocation15 + $0x158] sm:$0xff]
    %v1904 = vld [vmem:[#allocation15 + $0x160] sm:$0xff]
    %v1905 = vld [vmem:[#allocation15 + $0x168] sm:$0xff]
    %v1906 = vld [vmem:[#allocation15 + $0x170] sm:$0xff]
    %v1907 = vld [vmem:[#allocation15 + $0x178] sm:$0xff]
    %v1908 = vld [vmem:[#allocation15 + $0x180] sm:$0xff]
    %v1909 = vld [vmem:[#allocation15 + $0x188] sm:$0xff]
    %v1910 = vld [vmem:[#allocation15 + $0x190] sm:$0xff]
    %v1911 = vld [vmem:[#allocation15 + $0x198] sm:$0xff]
    %v1912 = vld [vmem:[#allocation15 + $0x1a0] sm:$0xff]
    %v1913 = vld [vmem:[#allocation15 + $0x1a8] sm:$0xff]
    %v1914 = vld [vmem:[#allocation15 + $0x1b0] sm:$0xff]
    %v1915 = vld [vmem:[#allocation15 + $0x1b8] sm:$0xff]
    %v1916 = vld [vmem:[#allocation15 + $0x1c0] sm:$0xff]
    %v1917 = vld [vmem:[#allocation15 + $0x1c8] sm:$0xff]
    %v1918 = vld [vmem:[#allocation15 + $0x1d0] sm:$0xff]
    %v1919 = vld [vmem:[#allocation15 + $0x1d8] sm:$0xff]
    %v1920 = vld [vmem:[#allocation15 + $0x1e0] sm:$0xff]
    %v1921 = vld [vmem:[#allocation15 + $0x1e8] sm:$0xff]
    %v1922 = vld [vmem:[#allocation15 + $0x1f0] sm:$0xff]
    %v1923 = vld [vmem:[#allocation15 + $0x1f8] sm:$0xff]
    %v1924 = vld [vmem:[#allocation15 + $0x200] sm:$0xff]
    %v1925 = vld [vmem:[#allocation15 + $0x208] sm:$0xff]
    %v1926 = vld [vmem:[#allocation15 + $0x210] sm:$0xff]
    %v1927 = vld [vmem:[#allocation15 + $0x218] sm:$0xff]
    %v1928 = vld [vmem:[#allocation15 + $0x220] sm:$0xff]
    %v1929 = vld [vmem:[#allocation15 + $0x228] sm:$0xff]
    %v1930 = vld [vmem:[#allocation15 + $0x230] sm:$0xff]
    %v1931 = vld [vmem:[#allocation15 + $0x238] sm:$0xff]
    %v1932 = vld [vmem:[#allocation15 + $0x240] sm:$0xff]
    %v1933 = vld [vmem:[#allocation15 + $0x248] sm:$0xff]
    %v1934 = vld [vmem:[#allocation15 + $0x250] sm:$0xff]
    %v1935 = vld [vmem:[#allocation15 + $0x258] sm:$0xff]
    %v1936 = vld [vmem:[#allocation15 + $0x260] sm:$0xff]
    %v1937 = vld [vmem:[#allocation15 + $0x268] sm:$0xff]
    %v1938 = vld [vmem:[#allocation15 + $0x270] sm:$0xff]
    %v1939 = vld [vmem:[#allocation15 + $0x278] sm:$0xff]
    %v1940 = vld [vmem:[#allocation15 + $0x280] sm:$0xff]
    %v1941 = vld [vmem:[#allocation15 + $0x288] sm:$0xff]
    %v1942 = vld [vmem:[#allocation15 + $0x290] sm:$0xff]
    %v1943 = vld [vmem:[#allocation15 + $0x298] sm:$0xff]
    %v1944 = vld [vmem:[#allocation15 + $0x2a0] sm:$0xff]
    %v1945 = vld [vmem:[#allocation15 + $0x2a8] sm:$0xff]
    %v1946 = vld [vmem:[#allocation15 + $0x2b0] sm:$0xff]
    %v1947 = vld [vmem:[#allocation15 + $0x2b8] sm:$0xff]
    %v1948 = vld [vmem:[#allocation15 + $0x2c0] sm:$0xff]
    %v1949 = vld [vmem:[#allocation15 + $0x2c8] sm:$0xff]
    %v1950 = vld [vmem:[#allocation15 + $0x2d0] sm:$0xff]
    %v1951 = vld [vmem:[#allocation15 + $0x2d8] sm:$0xff]
    %v1952 = vld [vmem:[#allocation15 + $0x2e0] sm:$0xff]
    %v1953 = vld [vmem:[#allocation15 + $0x2e8] sm:$0xff]
    %v1954 = vld [vmem:[#allocation15 + $0x2f0] sm:$0xff]
    %v1955 = vld [vmem:[#allocation15 + $0x2f8] sm:$0xff]
    %v1956 = vld [vmem:[#allocation15 + $0x300] sm:$0xff]
    %v1957 = vld [vmem:[#allocation15 + $0x308] sm:$0xff]
    %v1958 = vld [vmem:[#allocation15 + $0x310] sm:$0xff]
    %v1959 = vld [vmem:[#allocation15 + $0x318] sm:$0xff]
    %v1960 = vld [vmem:[#allocation15 + $0x320] sm:$0xff]
    %v1961 = vld [vmem:[#allocation15 + $0x328] sm:$0xff]
    %v1962 = vld [vmem:[#allocation15 + $0x330] sm:$0xff]
    %v1963 = vld [vmem:[#allocation15 + $0x338] sm:$0xff]
    %v1964 = vld [vmem:[#allocation15 + $0x340] sm:$0xff]
    %v1965 = vld [vmem:[#allocation15 + $0x348] sm:$0xff]
    %v1966 = vld [vmem:[#allocation15 + $0x350] sm:$0xff]
    %v1967 = vld [vmem:[#allocation15 + $0x358] sm:$0xff]
    %v1968 = vld [vmem:[#allocation15 + $0x360] sm:$0xff]
    %v1969 = vld [vmem:[#allocation15 + $0x368] sm:$0xff]
    %v1970 = vld [vmem:[#allocation15 + $0x370] sm:$0xff]
    %v1971 = vld [vmem:[#allocation15 + $0x378] sm:$0xff]
    %v1972 = vld [vmem:[#allocation15 + $0x380] sm:$0xff]
    %v1973 = vld [vmem:[#allocation15 + $0x388] sm:$0xff]
    %v1974 = vld [vmem:[#allocation15 + $0x390] sm:$0xff]
    %v1975 = vld [vmem:[#allocation15 + $0x398] sm:$0xff]
    %v1976 = vld [vmem:[#allocation15 + $0x3a0] sm:$0xff]
    %v1977 = vld [vmem:[#allocation15 + $0x3a8] sm:$0xff]
    %v1978 = vld [vmem:[#allocation15 + $0x3b0] sm:$0xff]
    %v1979 = vld [vmem:[#allocation15 + $0x3b8] sm:$0xff]
    %v1980 = vld [vmem:[#allocation15 + $0x3c0] sm:$0xff]
    %v1981 = vld [vmem:[#allocation15 + $0x3c8] sm:$0xff]
    %v1982 = vld [vmem:[#allocation15 + $0x3d0] sm:$0xff]
    %v1983 = vld [vmem:[#allocation15 + $0x3d8] sm:$0xff]
    %v1984 = vld [vmem:[#allocation15 + $0x3e0] sm:$0xff]
    %v1985 = vld [vmem:[#allocation15 + $0x3e8] sm:$0xff]
    %v1986 = vld [vmem:[#allocation15 + $0x3f0] sm:$0xff]
    %v1987 = vld [vmem:[#allocation15 + $0x3f8] sm:$0xff]
    %v1988 = vld [vmem:[%s18] sm:$0xf]
    %v1990 = vlaneseq
    %v1991 = vshrl.u32 %v1990, 7
    %v1992 = vsub.s32 0, %v1991
    %v1993 = vrot.slane %v1988, %v1992
    %v1994 = vlaneseq
    %v1995 = vshrl.u32 %v1994, 7
    %v1996 = vsub.s32 1, %v1995
    %v1997 = vrot.slane %v1988, %v1996
    %v1998 = vlaneseq
    %v1999 = vshrl.u32 %v1998, 7
    %v2000 = vsub.s32 2, %v1999
    %v2001 = vrot.slane %v1988, %v2000
    %v2002 = vlaneseq
    %v2003 = vshrl.u32 %v2002, 7
    %v2004 = vsub.s32 3, %v2003
    %v2005 = vrot.slane %v1988, %v2004
    %2010 = vmatprep.subr.mxu0 %v1861
    %2011 = vmatpush1.msra.mxu0 %v1860
    %2012 = vmatprep.subr.mxu0 %v1865
    %2013 = vmatpush1.msra.mxu0 %v1864
    %2014 = vmatprep.subr.mxu0 %v1869
    %2015 = vmatpush1.msra.mxu0 %v1868
    %2016 = vmatprep.subr.mxu0 %v1873
    %2017 = vmatpush1.msra.mxu0 %v1872
    %2018 = vmatprep.subr.mxu0 %v1877
    %2019 = vmatpush1.msra.mxu0 %v1876
    %2020 = vmatprep.subr.mxu0 %v1881
    %2021 = vmatpush1.msra.mxu0 %v1880
    %2022 = vmatprep.subr.mxu0 %v1885
    %2023 = vmatpush1.msra.mxu0 %v1884
    %2024 = vmatprep.subr.mxu0 %v1889
    %2025 = vmatpush1.msra.mxu0 %v1888
    %2026 = vmatprep.subr.mxu0 %v1893
    %2027 = vmatpush1.msra.mxu0 %v1892
    %2028 = vmatprep.subr.mxu0 %v1897
    %2029 = vmatpush1.msra.mxu0 %v1896
    %2030 = vmatprep.subr.mxu0 %v1901
    %2031 = vmatpush1.msra.mxu0 %v1900
    %2032 = vmatprep.subr.mxu0 %v1905
    %2033 = vmatpush1.msra.mxu0 %v1904
    %2034 = vmatprep.subr.mxu0 %v1909
    %2035 = vmatpush1.msra.mxu0 %v1908
    %2036 = vmatprep.subr.mxu0 %v1913
    %2037 = vmatpush1.msra.mxu0 %v1912
    %2038 = vmatprep.subr.mxu0 %v1917
    %2039 = vmatpush1.msra.mxu0 %v1916
    %2040 = vmatprep.subr.mxu0 %v1921
    %2041 = vmatpush1.msra.mxu0 %v1920
    %2042 = vmatprep.subr.mxu0 %v1925
    %2043 = vmatpush1.msra.mxu0 %v1924
    %2044 = vmatprep.subr.mxu0 %v1929
    %2045 = vmatpush1.msra.mxu0 %v1928
    %2046 = vmatprep.subr.mxu0 %v1933
    %2047 = vmatpush1.msra.mxu0 %v1932
    %2048 = vmatprep.subr.mxu0 %v1937
    %2049 = vmatpush1.msra.mxu0 %v1936
    %2050 = vmatprep.subr.mxu0 %v1941
    %2051 = vmatpush1.msra.mxu0 %v1940
    %2052 = vmatprep.subr.mxu0 %v1945
    %2053 = vmatpush1.msra.mxu0 %v1944
    %2054 = vmatprep.subr.mxu0 %v1949
    %2055 = vmatpush1.msra.mxu0 %v1948
    %2056 = vmatprep.subr.mxu0 %v1953
    %2057 = vmatpush1.msra.mxu0 %v1952
    %2058 = vmatprep.subr.mxu0 %v1957
    %2059 = vmatpush1.msra.mxu0 %v1956
    %2060 = vmatprep.subr.mxu0 %v1961
    %2061 = vmatpush1.msra.mxu0 %v1960
    %2062 = vmatprep.subr.mxu0 %v1965
    %2063 = vmatpush1.msra.mxu0 %v1964
    %2064 = vmatprep.subr.mxu0 %v1969
    %2065 = vmatpush1.msra.mxu0 %v1968
    %2066 = vmatprep.subr.mxu0 %v1973
    %2067 = vmatpush1.msra.mxu0 %v1972
    %2068 = vmatprep.subr.mxu0 %v1977
    %2069 = vmatpush1.msra.mxu0 %v1976
    %2070 = vmatprep.subr.mxu0 %v1981
    %2071 = vmatpush1.msra.mxu0 %v1980
    %2072 = vmatprep.subr.mxu0 %v1985
    %2073 = vmatpush1.msra.mxu0 %v1984
    %2074 = vmatprep.mubr.f32.mxu0 %v1859
    %2075 = vmatmul.mubr.f32.gmra.mrb[0].mxu0 %v1858
    %v2076 = vpop.f32.mrb[0].mxu0
    %v2077 = vadd.f32 %v1993, %v2076
    %v2078 = vpop.f32.mrb[0].mxu0
    %v2079 = vadd.f32 %v1997, %v2078
    %2080 = vdwg.mxu0
    %2081 = vmatprep.subr.mxu0 %v1863
    %2082 = vmatpush1.msra.mxu0 %v1862
    %2083 = vmatprep.subr.mxu0 %v1867
    %2084 = vmatpush1.msra.mxu0 %v1866
    %2085 = vmatprep.subr.mxu0 %v1871
    %2086 = vmatpush1.msra.mxu0 %v1870
    %2087 = vmatprep.subr.mxu0 %v1875
    %2088 = vmatpush1.msra.mxu0 %v1874
    %2089 = vmatprep.subr.mxu0 %v1879
    %2090 = vmatpush1.msra.mxu0 %v1878
    %2091 = vmatprep.subr.mxu0 %v1883
    %2092 = vmatpush1.msra.mxu0 %v1882
    %2093 = vmatprep.subr.mxu0 %v1887
    %2094 = vmatpush1.msra.mxu0 %v1886
    %2095 = vmatprep.subr.mxu0 %v1891
    %2096 = vmatpush1.msra.mxu0 %v1890
    %2097 = vmatprep.subr.mxu0 %v1895
    %2098 = vmatpush1.msra.mxu0 %v1894
    %2099 = vmatprep.subr.mxu0 %v1899
    %2100 = vmatpush1.msra.mxu0 %v1898
    %2101 = vmatprep.subr.mxu0 %v1903
    %2102 = vmatpush1.msra.mxu0 %v1902
    %2103 = vmatprep.subr.mxu0 %v1907
    %2104 = vmatpush1.msra.mxu0 %v1906
    %2105 = vmatprep.subr.mxu0 %v1911
    %2106 = vmatpush1.msra.mxu0 %v1910
    %2107 = vmatprep.subr.mxu0 %v1915
    %2108 = vmatpush1.msra.mxu0 %v1914
    %2109 = vmatprep.subr.mxu0 %v1919
    %2110 = vmatpush1.msra.mxu0 %v1918
    %2111 = vmatprep.subr.mxu0 %v1923
    %2112 = vmatpush1.msra.mxu0 %v1922
    %2113 = vmatprep.subr.mxu0 %v1927
    %2114 = vmatpush1.msra.mxu0 %v1926
    %2115 = vmatprep.subr.mxu0 %v1931
    %2116 = vmatpush1.msra.mxu0 %v1930
    %2117 = vmatprep.subr.mxu0 %v1935
    %2118 = vmatpush1.msra.mxu0 %v1934
    %2119 = vmatprep.subr.mxu0 %v1939
    %2120 = vmatpush1.msra.mxu0 %v1938
    %2121 = vmatprep.subr.mxu0 %v1943
    %2122 = vmatpush1.msra.mxu0 %v1942
    %2123 = vmatprep.subr.mxu0 %v1947
    %2124 = vmatpush1.msra.mxu0 %v1946
    %2125 = vmatprep.subr.mxu0 %v1951
    %2126 = vmatpush1.msra.mxu0 %v1950
    %2127 = vmatprep.subr.mxu0 %v1955
    %2128 = vmatpush1.msra.mxu0 %v1954
    %2129 = vmatprep.subr.mxu0 %v1959
    %2130 = vmatpush1.msra.mxu0 %v1958
    %2131 = vmatprep.subr.mxu0 %v1963
    %2132 = vmatpush1.msra.mxu0 %v1962
    %2133 = vmatprep.subr.mxu0 %v1967
    %2134 = vmatpush1.msra.mxu0 %v1966
    %2135 = vmatprep.subr.mxu0 %v1971
    %2136 = vmatpush1.msra.mxu0 %v1970
    %2137 = vmatprep.subr.mxu0 %v1975
    %2138 = vmatpush1.msra.mxu0 %v1974
    %2139 = vmatprep.subr.mxu0 %v1979
    %2140 = vmatpush1.msra.mxu0 %v1978
    %2141 = vmatprep.subr.mxu0 %v1983
    %2142 = vmatpush1.msra.mxu0 %v1982
    %2143 = vmatprep.subr.mxu0 %v1987
    %2144 = vmatpush1.msra.mxu0 %v1986
    %2145 = vmatprep.mubr.f32.mxu0 %v1859
    %2146 = vmatmul.mubr.f32.gmra.mrb[0].mxu0 %v1858
    %v2147 = vpop.f32.mrb[0].mxu0
    %v2148 = vadd.f32 %v2001, %v2147
    %v2149 = vpop.f32.mrb[0].mxu0
    %v2150 = vadd.f32 %v2005, %v2149
    %2151 = vdwg.mxu0
    %v2152 = vxor.u32 %v2077, 2147483648
    %v2153 = vmul.f32 %v2152, 1.442695
    %v2154 = vpow.pop %v2153
    %v2155 = vadd.f32 %v2154, 1.0
    %v2156 = vrcp.pop %v2155
    %v2157 = vmul.f32 1.0, %v2156
    %v2158 = vxor.u32 %v2079, 2147483648
    %v2159 = vmul.f32 %v2158, 1.442695
    %v2160 = vpow.pop %v2159
    %v2161 = vadd.f32 %v2160, 1.0
    %v2162 = vrcp.pop %v2161
    %v2163 = vmul.f32 1.0, %v2162
    %v2164 = vtanh.pop %v2148
    %v2165 = vxor.u32 %v2150, 2147483648
    %v2166 = vmul.f32 %v2165, 1.442695
    %v2167 = vpow.pop %v2166
    %v2168 = vadd.f32 %v2167, 1.0
    %v2169 = vrcp.pop %v2168
    %v2170 = vmul.f32 1.0, %v2169
    %v2171 = vmul.f32 %v2163, %v1840
    %v2172 = vmul.f32 %v2157, %v2164
    %v2173 = vadd.f32 %v2171, %v2172
    %v2174 = vtanh.pop %v2173
    %v2175 = vmul.f32 %v2170, %v2174
    %2176 = vst [vmem:[#allocation2 + $0x8] sm:$0xff] %v2175
    %2177 = vst [vmem:[%s23 + $0x8] sm:$0xff] %v2175
    %v2178 = vld [vmem:[%s3 + $0x10] sm:$0xff]
    %vm2179 = vcmp.eq.f32.partialorder %v2178, -5.0
    %2181 = vrot.lane.b32.xlu0 %v2175, 96
    %v2182 = vpop.permute.xlu0 %2181
    %v2184 = vsel %vm2179, %v2182, %v2178
    %2185 = vst.msk [vmem:[#allocation2] sm:$0xff] %vm185, %v1512
    %2187 = vrot.lane.b32.xlu0 %v2184, 32
    %v2188 = vpop.permute.xlu0 %2187
    %2190 = vst.msk [vmem:[#allocation2] sm:$0xff] %vm1523, %v2188
    %v2191 = vld [vmem:[#allocation2] sm:$0xff]
    %v2192 = vld [vmem:[#allocation2 + $0x8] sm:$0xff]
    %v2193 = vld [vmem:[#allocation15] sm:$0xff]
    %v2194 = vld [vmem:[#allocation15 + $0x8] sm:$0xff]
    %v2195 = vld [vmem:[#allocation15 + $0x10] sm:$0xff]
    %v2196 = vld [vmem:[#allocation15 + $0x18] sm:$0xff]
    %v2197 = vld [vmem:[#allocation15 + $0x20] sm:$0xff]
    %v2198 = vld [vmem:[#allocation15 + $0x28] sm:$0xff]
    %v2199 = vld [vmem:[#allocation15 + $0x30] sm:$0xff]
    %v2200 = vld [vmem:[#allocation15 + $0x38] sm:$0xff]
    %v2201 = vld [vmem:[#allocation15 + $0x40] sm:$0xff]
    %v2202 = vld [vmem:[#allocation15 + $0x48] sm:$0xff]
    %v2203 = vld [vmem:[#allocation15 + $0x50] sm:$0xff]
    %v2204 = vld [vmem:[#allocation15 + $0x58] sm:$0xff]
    %v2205 = vld [vmem:[#allocation15 + $0x60] sm:$0xff]
    %v2206 = vld [vmem:[#allocation15 + $0x68] sm:$0xff]
    %v2207 = vld [vmem:[#allocation15 + $0x70] sm:$0xff]
    %v2208 = vld [vmem:[#allocation15 + $0x78] sm:$0xff]
    %v2209 = vld [vmem:[#allocation15 + $0x80] sm:$0xff]
    %v2210 = vld [vmem:[#allocation15 + $0x88] sm:$0xff]
    %v2211 = vld [vmem:[#allocation15 + $0x90] sm:$0xff]
    %v2212 = vld [vmem:[#allocation15 + $0x98] sm:$0xff]
    %v2213 = vld [vmem:[#allocation15 + $0xa0] sm:$0xff]
    %v2214 = vld [vmem:[#allocation15 + $0xa8] sm:$0xff]
    %v2215 = vld [vmem:[#allocation15 + $0xb0] sm:$0xff]
    %v2216 = vld [vmem:[#allocation15 + $0xb8] sm:$0xff]
    %v2217 = vld [vmem:[#allocation15 + $0xc0] sm:$0xff]
    %v2218 = vld [vmem:[#allocation15 + $0xc8] sm:$0xff]
    %v2219 = vld [vmem:[#allocation15 + $0xd0] sm:$0xff]
    %v2220 = vld [vmem:[#allocation15 + $0xd8] sm:$0xff]
    %v2221 = vld [vmem:[#allocation15 + $0xe0] sm:$0xff]
    %v2222 = vld [vmem:[#allocation15 + $0xe8] sm:$0xff]
    %v2223 = vld [vmem:[#allocation15 + $0xf0] sm:$0xff]
    %v2224 = vld [vmem:[#allocation15 + $0xf8] sm:$0xff]
    %v2225 = vld [vmem:[#allocation15 + $0x100] sm:$0xff]
    %v2226 = vld [vmem:[#allocation15 + $0x108] sm:$0xff]
    %v2227 = vld [vmem:[#allocation15 + $0x110] sm:$0xff]
    %v2228 = vld [vmem:[#allocation15 + $0x118] sm:$0xff]
    %v2229 = vld [vmem:[#allocation15 + $0x120] sm:$0xff]
    %v2230 = vld [vmem:[#allocation15 + $0x128] sm:$0xff]
    %v2231 = vld [vmem:[#allocation15 + $0x130] sm:$0xff]
    %v2232 = vld [vmem:[#allocation15 + $0x138] sm:$0xff]
    %v2233 = vld [vmem:[#allocation15 + $0x140] sm:$0xff]
    %v2234 = vld [vmem:[#allocation15 + $0x148] sm:$0xff]
    %v2235 = vld [vmem:[#allocation15 + $0x150] sm:$0xff]
    %v2236 = vld [vmem:[#allocation15 + $0x158] sm:$0xff]
    %v2237 = vld [vmem:[#allocation15 + $0x160] sm:$0xff]
    %v2238 = vld [vmem:[#allocation15 + $0x168] sm:$0xff]
    %v2239 = vld [vmem:[#allocation15 + $0x170] sm:$0xff]
    %v2240 = vld [vmem:[#allocation15 + $0x178] sm:$0xff]
    %v2241 = vld [vmem:[#allocation15 + $0x180] sm:$0xff]
    %v2242 = vld [vmem:[#allocation15 + $0x188] sm:$0xff]
    %v2243 = vld [vmem:[#allocation15 + $0x190] sm:$0xff]
    %v2244 = vld [vmem:[#allocation15 + $0x198] sm:$0xff]
    %v2245 = vld [vmem:[#allocation15 + $0x1a0] sm:$0xff]
    %v2246 = vld [vmem:[#allocation15 + $0x1a8] sm:$0xff]
    %v2247 = vld [vmem:[#allocation15 + $0x1b0] sm:$0xff]
    %v2248 = vld [vmem:[#allocation15 + $0x1b8] sm:$0xff]
    %v2249 = vld [vmem:[#allocation15 + $0x1c0] sm:$0xff]
    %v2250 = vld [vmem:[#allocation15 + $0x1c8] sm:$0xff]
    %v2251 = vld [vmem:[#allocation15 + $0x1d0] sm:$0xff]
    %v2252 = vld [vmem:[#allocation15 + $0x1d8] sm:$0xff]
    %v2253 = vld [vmem:[#allocation15 + $0x1e0] sm:$0xff]
    %v2254 = vld [vmem:[#allocation15 + $0x1e8] sm:$0xff]
    %v2255 = vld [vmem:[#allocation15 + $0x1f0] sm:$0xff]
    %v2256 = vld [vmem:[#allocation15 + $0x1f8] sm:$0xff]
    %v2257 = vld [vmem:[#allocation15 + $0x200] sm:$0xff]
    %v2258 = vld [vmem:[#allocation15 + $0x208] sm:$0xff]
    %v2259 = vld [vmem:[#allocation15 + $0x210] sm:$0xff]
    %v2260 = vld [vmem:[#allocation15 + $0x218] sm:$0xff]
    %v2261 = vld [vmem:[#allocation15 + $0x220] sm:$0xff]
    %v2262 = vld [vmem:[#allocation15 + $0x228] sm:$0xff]
    %v2263 = vld [vmem:[#allocation15 + $0x230] sm:$0xff]
    %v2264 = vld [vmem:[#allocation15 + $0x238] sm:$0xff]
    %v2265 = vld [vmem:[#allocation15 + $0x240] sm:$0xff]
    %v2266 = vld [vmem:[#allocation15 + $0x248] sm:$0xff]
    %v2267 = vld [vmem:[#allocation15 + $0x250] sm:$0xff]
    %v2268 = vld [vmem:[#allocation15 + $0x258] sm:$0xff]
    %v2269 = vld [vmem:[#allocation15 + $0x260] sm:$0xff]
    %v2270 = vld [vmem:[#allocation15 + $0x268] sm:$0xff]
    %v2271 = vld [vmem:[#allocation15 + $0x270] sm:$0xff]
    %v2272 = vld [vmem:[#allocation15 + $0x278] sm:$0xff]
    %v2273 = vld [vmem:[#allocation15 + $0x280] sm:$0xff]
    %v2274 = vld [vmem:[#allocation15 + $0x288] sm:$0xff]
    %v2275 = vld [vmem:[#allocation15 + $0x290] sm:$0xff]
    %v2276 = vld [vmem:[#allocation15 + $0x298] sm:$0xff]
    %v2277 = vld [vmem:[#allocation15 + $0x2a0] sm:$0xff]
    %v2278 = vld [vmem:[#allocation15 + $0x2a8] sm:$0xff]
    %v2279 = vld [vmem:[#allocation15 + $0x2b0] sm:$0xff]
    %v2280 = vld [vmem:[#allocation15 + $0x2b8] sm:$0xff]
    %v2281 = vld [vmem:[#allocation15 + $0x2c0] sm:$0xff]
    %v2282 = vld [vmem:[#allocation15 + $0x2c8] sm:$0xff]
    %v2283 = vld [vmem:[#allocation15 + $0x2d0] sm:$0xff]
    %v2284 = vld [vmem:[#allocation15 + $0x2d8] sm:$0xff]
    %v2285 = vld [vmem:[#allocation15 + $0x2e0] sm:$0xff]
    %v2286 = vld [vmem:[#allocation15 + $0x2e8] sm:$0xff]
    %v2287 = vld [vmem:[#allocation15 + $0x2f0] sm:$0xff]
    %v2288 = vld [vmem:[#allocation15 + $0x2f8] sm:$0xff]
    %v2289 = vld [vmem:[#allocation15 + $0x300] sm:$0xff]
    %v2290 = vld [vmem:[#allocation15 + $0x308] sm:$0xff]
    %v2291 = vld [vmem:[#allocation15 + $0x310] sm:$0xff]
    %v2292 = vld [vmem:[#allocation15 + $0x318] sm:$0xff]
    %v2293 = vld [vmem:[#allocation15 + $0x320] sm:$0xff]
    %v2294 = vld [vmem:[#allocation15 + $0x328] sm:$0xff]
    %v2295 = vld [vmem:[#allocation15 + $0x330] sm:$0xff]
    %v2296 = vld [vmem:[#allocation15 + $0x338] sm:$0xff]
    %v2297 = vld [vmem:[#allocation15 + $0x340] sm:$0xff]
    %v2298 = vld [vmem:[#allocation15 + $0x348] sm:$0xff]
    %v2299 = vld [vmem:[#allocation15 + $0x350] sm:$0xff]
    %v2300 = vld [vmem:[#allocation15 + $0x358] sm:$0xff]
    %v2301 = vld [vmem:[#allocation15 + $0x360] sm:$0xff]
    %v2302 = vld [vmem:[#allocation15 + $0x368] sm:$0xff]
    %v2303 = vld [vmem:[#allocation15 + $0x370] sm:$0xff]
    %v2304 = vld [vmem:[#allocation15 + $0x378] sm:$0xff]
    %v2305 = vld [vmem:[#allocation15 + $0x380] sm:$0xff]
    %v2306 = vld [vmem:[#allocation15 + $0x388] sm:$0xff]
    %v2307 = vld [vmem:[#allocation15 + $0x390] sm:$0xff]
    %v2308 = vld [vmem:[#allocation15 + $0x398] sm:$0xff]
    %v2309 = vld [vmem:[#allocation15 + $0x3a0] sm:$0xff]
    %v2310 = vld [vmem:[#allocation15 + $0x3a8] sm:$0xff]
    %v2311 = vld [vmem:[#allocation15 + $0x3b0] sm:$0xff]
    %v2312 = vld [vmem:[#allocation15 + $0x3b8] sm:$0xff]
    %v2313 = vld [vmem:[#allocation15 + $0x3c0] sm:$0xff]
    %v2314 = vld [vmem:[#allocation15 + $0x3c8] sm:$0xff]
    %v2315 = vld [vmem:[#allocation15 + $0x3d0] sm:$0xff]
    %v2316 = vld [vmem:[#allocation15 + $0x3d8] sm:$0xff]
    %v2317 = vld [vmem:[#allocation15 + $0x3e0] sm:$0xff]
    %v2318 = vld [vmem:[#allocation15 + $0x3e8] sm:$0xff]
    %v2319 = vld [vmem:[#allocation15 + $0x3f0] sm:$0xff]
    %v2320 = vld [vmem:[#allocation15 + $0x3f8] sm:$0xff]
    %v2321 = vld [vmem:[%s18] sm:$0xf]
    %v2323 = vlaneseq
    %v2324 = vshrl.u32 %v2323, 7
    %v2325 = vsub.s32 0, %v2324
    %v2326 = vrot.slane %v2321, %v2325
    %v2327 = vlaneseq
    %v2328 = vshrl.u32 %v2327, 7
    %v2329 = vsub.s32 1, %v2328
    %v2330 = vrot.slane %v2321, %v2329
    %v2331 = vlaneseq
    %v2332 = vshrl.u32 %v2331, 7
    %v2333 = vsub.s32 2, %v2332
    %v2334 = vrot.slane %v2321, %v2333
    %v2335 = vlaneseq
    %v2336 = vshrl.u32 %v2335, 7
    %v2337 = vsub.s32 3, %v2336
    %v2338 = vrot.slane %v2321, %v2337
    %2343 = vmatprep.subr.mxu0 %v2194
    %2344 = vmatpush1.msra.mxu0 %v2193
    %2345 = vmatprep.subr.mxu0 %v2198
    %2346 = vmatpush1.msra.mxu0 %v2197
    %2347 = vmatprep.subr.mxu0 %v2202
    %2348 = vmatpush1.msra.mxu0 %v2201
    %2349 = vmatprep.subr.mxu0 %v2206
    %2350 = vmatpush1.msra.mxu0 %v2205
    %2351 = vmatprep.subr.mxu0 %v2210
    %2352 = vmatpush1.msra.mxu0 %v2209
    %2353 = vmatprep.subr.mxu0 %v2214
    %2354 = vmatpush1.msra.mxu0 %v2213
    %2355 = vmatprep.subr.mxu0 %v2218
    %2356 = vmatpush1.msra.mxu0 %v2217
    %2357 = vmatprep.subr.mxu0 %v2222
    %2358 = vmatpush1.msra.mxu0 %v2221
    %2359 = vmatprep.subr.mxu0 %v2226
    %2360 = vmatpush1.msra.mxu0 %v2225
    %2361 = vmatprep.subr.mxu0 %v2230
    %2362 = vmatpush1.msra.mxu0 %v2229
    %2363 = vmatprep.subr.mxu0 %v2234
    %2364 = vmatpush1.msra.mxu0 %v2233
    %2365 = vmatprep.subr.mxu0 %v2238
    %2366 = vmatpush1.msra.mxu0 %v2237
    %2367 = vmatprep.subr.mxu0 %v2242
    %2368 = vmatpush1.msra.mxu0 %v2241
    %2369 = vmatprep.subr.mxu0 %v2246
    %2370 = vmatpush1.msra.mxu0 %v2245
    %2371 = vmatprep.subr.mxu0 %v2250
    %2372 = vmatpush1.msra.mxu0 %v2249
    %2373 = vmatprep.subr.mxu0 %v2254
    %2374 = vmatpush1.msra.mxu0 %v2253
    %2375 = vmatprep.subr.mxu0 %v2258
    %2376 = vmatpush1.msra.mxu0 %v2257
    %2377 = vmatprep.subr.mxu0 %v2262
    %2378 = vmatpush1.msra.mxu0 %v2261
    %2379 = vmatprep.subr.mxu0 %v2266
    %2380 = vmatpush1.msra.mxu0 %v2265
    %2381 = vmatprep.subr.mxu0 %v2270
    %2382 = vmatpush1.msra.mxu0 %v2269
    %2383 = vmatprep.subr.mxu0 %v2274
    %2384 = vmatpush1.msra.mxu0 %v2273
    %2385 = vmatprep.subr.mxu0 %v2278
    %2386 = vmatpush1.msra.mxu0 %v2277
    %2387 = vmatprep.subr.mxu0 %v2282
    %2388 = vmatpush1.msra.mxu0 %v2281
    %2389 = vmatprep.subr.mxu0 %v2286
    %2390 = vmatpush1.msra.mxu0 %v2285
    %2391 = vmatprep.subr.mxu0 %v2290
    %2392 = vmatpush1.msra.mxu0 %v2289
    %2393 = vmatprep.subr.mxu0 %v2294
    %2394 = vmatpush1.msra.mxu0 %v2293
    %2395 = vmatprep.subr.mxu0 %v2298
    %2396 = vmatpush1.msra.mxu0 %v2297
    %2397 = vmatprep.subr.mxu0 %v2302
    %2398 = vmatpush1.msra.mxu0 %v2301
    %2399 = vmatprep.subr.mxu0 %v2306
    %2400 = vmatpush1.msra.mxu0 %v2305
    %2401 = vmatprep.subr.mxu0 %v2310
    %2402 = vmatpush1.msra.mxu0 %v2309
    %2403 = vmatprep.subr.mxu0 %v2314
    %2404 = vmatpush1.msra.mxu0 %v2313
    %2405 = vmatprep.subr.mxu0 %v2318
    %2406 = vmatpush1.msra.mxu0 %v2317
    %2407 = vmatprep.mubr.f32.mxu0 %v2192
    %2408 = vmatmul.mubr.f32.gmra.mrb[0].mxu0 %v2191
    %v2409 = vpop.f32.mrb[0].mxu0
    %v2410 = vadd.f32 %v2326, %v2409
    %v2411 = vpop.f32.mrb[0].mxu0
    %v2412 = vadd.f32 %v2330, %v2411
    %2413 = vdwg.mxu0
    %2414 = vmatprep.subr.mxu0 %v2196
    %2415 = vmatpush1.msra.mxu0 %v2195
    %2416 = vmatprep.subr.mxu0 %v2200
    %2417 = vmatpush1.msra.mxu0 %v2199
    %2418 = vmatprep.subr.mxu0 %v2204
    %2419 = vmatpush1.msra.mxu0 %v2203
    %2420 = vmatprep.subr.mxu0 %v2208
    %2421 = vmatpush1.msra.mxu0 %v2207
    %2422 = vmatprep.subr.mxu0 %v2212
    %2423 = vmatpush1.msra.mxu0 %v2211
    %2424 = vmatprep.subr.mxu0 %v2216
    %2425 = vmatpush1.msra.mxu0 %v2215
    %2426 = vmatprep.subr.mxu0 %v2220
    %2427 = vmatpush1.msra.mxu0 %v2219
    %2428 = vmatprep.subr.mxu0 %v2224
    %2429 = vmatpush1.msra.mxu0 %v2223
    %2430 = vmatprep.subr.mxu0 %v2228
    %2431 = vmatpush1.msra.mxu0 %v2227
    %2432 = vmatprep.subr.mxu0 %v2232
    %2433 = vmatpush1.msra.mxu0 %v2231
    %2434 = vmatprep.subr.mxu0 %v2236
    %2435 = vmatpush1.msra.mxu0 %v2235
    %2436 = vmatprep.subr.mxu0 %v2240
    %2437 = vmatpush1.msra.mxu0 %v2239
    %2438 = vmatprep.subr.mxu0 %v2244
    %2439 = vmatpush1.msra.mxu0 %v2243
    %2440 = vmatprep.subr.mxu0 %v2248
    %2441 = vmatpush1.msra.mxu0 %v2247
    %2442 = vmatprep.subr.mxu0 %v2252
    %2443 = vmatpush1.msra.mxu0 %v2251
    %2444 = vmatprep.subr.mxu0 %v2256
    %2445 = vmatpush1.msra.mxu0 %v2255
    %2446 = vmatprep.subr.mxu0 %v2260
    %2447 = vmatpush1.msra.mxu0 %v2259
    %2448 = vmatprep.subr.mxu0 %v2264
    %2449 = vmatpush1.msra.mxu0 %v2263
    %2450 = vmatprep.subr.mxu0 %v2268
    %2451 = vmatpush1.msra.mxu0 %v2267
    %2452 = vmatprep.subr.mxu0 %v2272
    %2453 = vmatpush1.msra.mxu0 %v2271
    %2454 = vmatprep.subr.mxu0 %v2276
    %2455 = vmatpush1.msra.mxu0 %v2275
    %2456 = vmatprep.subr.mxu0 %v2280
    %2457 = vmatpush1.msra.mxu0 %v2279
    %2458 = vmatprep.subr.mxu0 %v2284
    %2459 = vmatpush1.msra.mxu0 %v2283
    %2460 = vmatprep.subr.mxu0 %v2288
    %2461 = vmatpush1.msra.mxu0 %v2287
    %2462 = vmatprep.subr.mxu0 %v2292
    %2463 = vmatpush1.msra.mxu0 %v2291
    %2464 = vmatprep.subr.mxu0 %v2296
    %2465 = vmatpush1.msra.mxu0 %v2295
    %2466 = vmatprep.subr.mxu0 %v2300
    %2467 = vmatpush1.msra.mxu0 %v2299
    %2468 = vmatprep.subr.mxu0 %v2304
    %2469 = vmatpush1.msra.mxu0 %v2303
    %2470 = vmatprep.subr.mxu0 %v2308
    %2471 = vmatpush1.msra.mxu0 %v2307
    %2472 = vmatprep.subr.mxu0 %v2312
    %2473 = vmatpush1.msra.mxu0 %v2311
    %2474 = vmatprep.subr.mxu0 %v2316
    %2475 = vmatpush1.msra.mxu0 %v2315
    %2476 = vmatprep.subr.mxu0 %v2320
    %2477 = vmatpush1.msra.mxu0 %v2319
    %2478 = vmatprep.mubr.f32.mxu0 %v2192
    %2479 = vmatmul.mubr.f32.gmra.mrb[0].mxu0 %v2191
    %v2480 = vpop.f32.mrb[0].mxu0
    %v2481 = vadd.f32 %v2334, %v2480
    %v2482 = vpop.f32.mrb[0].mxu0
    %v2483 = vadd.f32 %v2338, %v2482
    %2484 = vdwg.mxu0
    %v2485 = vxor.u32 %v2410, 2147483648
    %v2486 = vmul.f32 %v2485, 1.442695
    %v2487 = vpow.pop %v2486
    %v2488 = vadd.f32 %v2487, 1.0
    %v2489 = vrcp.pop %v2488
    %v2490 = vmul.f32 1.0, %v2489
    %v2491 = vxor.u32 %v2412, 2147483648
    %v2492 = vmul.f32 %v2491, 1.442695
    %v2493 = vpow.pop %v2492
    %v2494 = vadd.f32 %v2493, 1.0
    %v2495 = vrcp.pop %v2494
    %v2496 = vmul.f32 1.0, %v2495
    %v2497 = vtanh.pop %v2481
    %v2498 = vxor.u32 %v2483, 2147483648
    %v2499 = vmul.f32 %v2498, 1.442695
    %v2500 = vpow.pop %v2499
    %v2501 = vadd.f32 %v2500, 1.0
    %v2502 = vrcp.pop %v2501
    %v2503 = vmul.f32 1.0, %v2502
    %v2504 = vmul.f32 %v2496, %v2173
    %v2505 = vmul.f32 %v2490, %v2497
    %v2506 = vadd.f32 %v2504, %v2505
    %v2507 = vtanh.pop %v2506
    %v2508 = vmul.f32 %v2503, %v2507
    %2509 = vst [vmem:[#allocation2 + $0x8] sm:$0xff] %v2508
    %2510 = vst [vmem:[%s23 + $0x10] sm:$0xff] %v2508
    %v2511 = vld [vmem:[%s3 + $0x18] sm:$0xff]
    %vm2512 = vcmp.eq.f32.partialorder %v2511, -5.0
    %2514 = vrot.lane.b32.xlu0 %v2508, 96
    %v2515 = vpop.permute.xlu0 %2514
    %v2517 = vsel %vm2512, %v2515, %v2511
    %2518 = vst.msk [vmem:[#allocation2] sm:$0xff] %vm185, %v1513
    %2520 = vrot.lane.b32.xlu0 %v2517, 32
    %v2521 = vpop.permute.xlu0 %2520
    %2523 = vst.msk [vmem:[#allocation2] sm:$0xff] %vm1523, %v2521
    %v2524 = vld [vmem:[#allocation2] sm:$0xff]
    %v2525 = vld [vmem:[#allocation2 + $0x8] sm:$0xff]
    %v2526 = vld [vmem:[#allocation15] sm:$0xff]
    %v2527 = vld [vmem:[#allocation15 + $0x8] sm:$0xff]
    %v2528 = vld [vmem:[#allocation15 + $0x10] sm:$0xff]
    %v2529 = vld [vmem:[#allocation15 + $0x18] sm:$0xff]
    %v2530 = vld [vmem:[#allocation15 + $0x20] sm:$0xff]
    %v2531 = vld [vmem:[#allocation15 + $0x28] sm:$0xff]
    %v2532 = vld [vmem:[#allocation15 + $0x30] sm:$0xff]
    %v2533 = vld [vmem:[#allocation15 + $0x38] sm:$0xff]
    %v2534 = vld [vmem:[#allocation15 + $0x40] sm:$0xff]
    %v2535 = vld [vmem:[#allocation15 + $0x48] sm:$0xff]
    %v2536 = vld [vmem:[#allocation15 + $0x50] sm:$0xff]
    %v2537 = vld [vmem:[#allocation15 + $0x58] sm:$0xff]
    %v2538 = vld [vmem:[#allocation15 + $0x60] sm:$0xff]
    %v2539 = vld [vmem:[#allocation15 + $0x68] sm:$0xff]
    %v2540 = vld [vmem:[#allocation15 + $0x70] sm:$0xff]
    %v2541 = vld [vmem:[#allocation15 + $0x78] sm:$0xff]
    %v2542 = vld [vmem:[#allocation15 + $0x80] sm:$0xff]
    %v2543 = vld [vmem:[#allocation15 + $0x88] sm:$0xff]
    %v2544 = vld [vmem:[#allocation15 + $0x90] sm:$0xff]
    %v2545 = vld [vmem:[#allocation15 + $0x98] sm:$0xff]
    %v2546 = vld [vmem:[#allocation15 + $0xa0] sm:$0xff]
    %v2547 = vld [vmem:[#allocation15 + $0xa8] sm:$0xff]
    %v2548 = vld [vmem:[#allocation15 + $0xb0] sm:$0xff]
    %v2549 = vld [vmem:[#allocation15 + $0xb8] sm:$0xff]
    %v2550 = vld [vmem:[#allocation15 + $0xc0] sm:$0xff]
    %v2551 = vld [vmem:[#allocation15 + $0xc8] sm:$0xff]
    %v2552 = vld [vmem:[#allocation15 + $0xd0] sm:$0xff]
    %v2553 = vld [vmem:[#allocation15 + $0xd8] sm:$0xff]
    %v2554 = vld [vmem:[#allocation15 + $0xe0] sm:$0xff]
    %v2555 = vld [vmem:[#allocation15 + $0xe8] sm:$0xff]
    %v2556 = vld [vmem:[#allocation15 + $0xf0] sm:$0xff]
    %v2557 = vld [vmem:[#allocation15 + $0xf8] sm:$0xff]
    %v2558 = vld [vmem:[#allocation15 + $0x100] sm:$0xff]
    %v2559 = vld [vmem:[#allocation15 + $0x108] sm:$0xff]
    %v2560 = vld [vmem:[#allocation15 + $0x110] sm:$0xff]
    %v2561 = vld [vmem:[#allocation15 + $0x118] sm:$0xff]
    %v2562 = vld [vmem:[#allocation15 + $0x120] sm:$0xff]
    %v2563 = vld [vmem:[#allocation15 + $0x128] sm:$0xff]
    %v2564 = vld [vmem:[#allocation15 + $0x130] sm:$0xff]
    %v2565 = vld [vmem:[#allocation15 + $0x138] sm:$0xff]
    %v2566 = vld [vmem:[#allocation15 + $0x140] sm:$0xff]
    %v2567 = vld [vmem:[#allocation15 + $0x148] sm:$0xff]
    %v2568 = vld [vmem:[#allocation15 + $0x150] sm:$0xff]
    %v2569 = vld [vmem:[#allocation15 + $0x158] sm:$0xff]
    %v2570 = vld [vmem:[#allocation15 + $0x160] sm:$0xff]
    %v2571 = vld [vmem:[#allocation15 + $0x168] sm:$0xff]
    %v2572 = vld [vmem:[#allocation15 + $0x170] sm:$0xff]
    %v2573 = vld [vmem:[#allocation15 + $0x178] sm:$0xff]
    %v2574 = vld [vmem:[#allocation15 + $0x180] sm:$0xff]
    %v2575 = vld [vmem:[#allocation15 + $0x188] sm:$0xff]
    %v2576 = vld [vmem:[#allocation15 + $0x190] sm:$0xff]
    %v2577 = vld [vmem:[#allocation15 + $0x198] sm:$0xff]
    %v2578 = vld [vmem:[#allocation15 + $0x1a0] sm:$0xff]
    %v2579 = vld [vmem:[#allocation15 + $0x1a8] sm:$0xff]
    %v2580 = vld [vmem:[#allocation15 + $0x1b0] sm:$0xff]
    %v2581 = vld [vmem:[#allocation15 + $0x1b8] sm:$0xff]
    %v2582 = vld [vmem:[#allocation15 + $0x1c0] sm:$0xff]
    %v2583 = vld [vmem:[#allocation15 + $0x1c8] sm:$0xff]
    %v2584 = vld [vmem:[#allocation15 + $0x1d0] sm:$0xff]
    %v2585 = vld [vmem:[#allocation15 + $0x1d8] sm:$0xff]
    %v2586 = vld [vmem:[#allocation15 + $0x1e0] sm:$0xff]
    %v2587 = vld [vmem:[#allocation15 + $0x1e8] sm:$0xff]
    %v2588 = vld [vmem:[#allocation15 + $0x1f0] sm:$0xff]
    %v2589 = vld [vmem:[#allocation15 + $0x1f8] sm:$0xff]
    %v2590 = vld [vmem:[#allocation15 + $0x200] sm:$0xff]
    %v2591 = vld [vmem:[#allocation15 + $0x208] sm:$0xff]
    %v2592 = vld [vmem:[#allocation15 + $0x210] sm:$0xff]
    %v2593 = vld [vmem:[#allocation15 + $0x218] sm:$0xff]
    %v2594 = vld [vmem:[#allocation15 + $0x220] sm:$0xff]
    %v2595 = vld [vmem:[#allocation15 + $0x228] sm:$0xff]
    %v2596 = vld [vmem:[#allocation15 + $0x230] sm:$0xff]
    %v2597 = vld [vmem:[#allocation15 + $0x238] sm:$0xff]
    %v2598 = vld [vmem:[#allocation15 + $0x240] sm:$0xff]
    %v2599 = vld [vmem:[#allocation15 + $0x248] sm:$0xff]
    %v2600 = vld [vmem:[#allocation15 + $0x250] sm:$0xff]
    %v2601 = vld [vmem:[#allocation15 + $0x258] sm:$0xff]
    %v2602 = vld [vmem:[#allocation15 + $0x260] sm:$0xff]
    %v2603 = vld [vmem:[#allocation15 + $0x268] sm:$0xff]
    %v2604 = vld [vmem:[#allocation15 + $0x270] sm:$0xff]
    %v2605 = vld [vmem:[#allocation15 + $0x278] sm:$0xff]
    %v2606 = vld [vmem:[#allocation15 + $0x280] sm:$0xff]
    %v2607 = vld [vmem:[#allocation15 + $0x288] sm:$0xff]
    %v2608 = vld [vmem:[#allocation15 + $0x290] sm:$0xff]
    %v2609 = vld [vmem:[#allocation15 + $0x298] sm:$0xff]
    %v2610 = vld [vmem:[#allocation15 + $0x2a0] sm:$0xff]
    %v2611 = vld [vmem:[#allocation15 + $0x2a8] sm:$0xff]
    %v2612 = vld [vmem:[#allocation15 + $0x2b0] sm:$0xff]
    %v2613 = vld [vmem:[#allocation15 + $0x2b8] sm:$0xff]
    %v2614 = vld [vmem:[#allocation15 + $0x2c0] sm:$0xff]
    %v2615 = vld [vmem:[#allocation15 + $0x2c8] sm:$0xff]
    %v2616 = vld [vmem:[#allocation15 + $0x2d0] sm:$0xff]
    %v2617 = vld [vmem:[#allocation15 + $0x2d8] sm:$0xff]
    %v2618 = vld [vmem:[#allocation15 + $0x2e0] sm:$0xff]
    %v2619 = vld [vmem:[#allocation15 + $0x2e8] sm:$0xff]
    %v2620 = vld [vmem:[#allocation15 + $0x2f0] sm:$0xff]
    %v2621 = vld [vmem:[#allocation15 + $0x2f8] sm:$0xff]
    %v2622 = vld [vmem:[#allocation15 + $0x300] sm:$0xff]
    %v2623 = vld [vmem:[#allocation15 + $0x308] sm:$0xff]
    %v2624 = vld [vmem:[#allocation15 + $0x310] sm:$0xff]
    %v2625 = vld [vmem:[#allocation15 + $0x318] sm:$0xff]
    %v2626 = vld [vmem:[#allocation15 + $0x320] sm:$0xff]
    %v2627 = vld [vmem:[#allocation15 + $0x328] sm:$0xff]
    %v2628 = vld [vmem:[#allocation15 + $0x330] sm:$0xff]
    %v2629 = vld [vmem:[#allocation15 + $0x338] sm:$0xff]
    %v2630 = vld [vmem:[#allocation15 + $0x340] sm:$0xff]
    %v2631 = vld [vmem:[#allocation15 + $0x348] sm:$0xff]
    %v2632 = vld [vmem:[#allocation15 + $0x350] sm:$0xff]
    %v2633 = vld [vmem:[#allocation15 + $0x358] sm:$0xff]
    %v2634 = vld [vmem:[#allocation15 + $0x360] sm:$0xff]
    %v2635 = vld [vmem:[#allocation15 + $0x368] sm:$0xff]
    %v2636 = vld [vmem:[#allocation15 + $0x370] sm:$0xff]
    %v2637 = vld [vmem:[#allocation15 + $0x378] sm:$0xff]
    %v2638 = vld [vmem:[#allocation15 + $0x380] sm:$0xff]
    %v2639 = vld [vmem:[#allocation15 + $0x388] sm:$0xff]
    %v2640 = vld [vmem:[#allocation15 + $0x390] sm:$0xff]
    %v2641 = vld [vmem:[#allocation15 + $0x398] sm:$0xff]
    %v2642 = vld [vmem:[#allocation15 + $0x3a0] sm:$0xff]
    %v2643 = vld [vmem:[#allocation15 + $0x3a8] sm:$0xff]
    %v2644 = vld [vmem:[#allocation15 + $0x3b0] sm:$0xff]
    %v2645 = vld [vmem:[#allocation15 + $0x3b8] sm:$0xff]
    %v2646 = vld [vmem:[#allocation15 + $0x3c0] sm:$0xff]
    %v2647 = vld [vmem:[#allocation15 + $0x3c8] sm:$0xff]
    %v2648 = vld [vmem:[#allocation15 + $0x3d0] sm:$0xff]
    %v2649 = vld [vmem:[#allocation15 + $0x3d8] sm:$0xff]
    %v2650 = vld [vmem:[#allocation15 + $0x3e0] sm:$0xff]
    %v2651 = vld [vmem:[#allocation15 + $0x3e8] sm:$0xff]
    %v2652 = vld [vmem:[#allocation15 + $0x3f0] sm:$0xff]
    %v2653 = vld [vmem:[#allocation15 + $0x3f8] sm:$0xff]
    %v2654 = vld [vmem:[%s18] sm:$0xf]
    %v2656 = vlaneseq
    %v2657 = vshrl.u32 %v2656, 7
    %v2658 = vsub.s32 0, %v2657
    %v2659 = vrot.slane %v2654, %v2658
    %v2660 = vlaneseq
    %v2661 = vshrl.u32 %v2660, 7
    %v2662 = vsub.s32 1, %v2661
    %v2663 = vrot.slane %v2654, %v2662
    %v2664 = vlaneseq
    %v2665 = vshrl.u32 %v2664, 7
    %v2666 = vsub.s32 2, %v2665
    %v2667 = vrot.slane %v2654, %v2666
    %v2668 = vlaneseq
    %v2669 = vshrl.u32 %v2668, 7
    %v2670 = vsub.s32 3, %v2669
    %v2671 = vrot.slane %v2654, %v2670
    %2676 = vmatprep.subr.mxu0 %v2527
    %2677 = vmatpush1.msra.mxu0 %v2526
    %2678 = vmatprep.subr.mxu0 %v2531
    %2679 = vmatpush1.msra.mxu0 %v2530
    %2680 = vmatprep.subr.mxu0 %v2535
    %2681 = vmatpush1.msra.mxu0 %v2534
    %2682 = vmatprep.subr.mxu0 %v2539
    %2683 = vmatpush1.msra.mxu0 %v2538
    %2684 = vmatprep.subr.mxu0 %v2543
    %2685 = vmatpush1.msra.mxu0 %v2542
    %2686 = vmatprep.subr.mxu0 %v2547
    %2687 = vmatpush1.msra.mxu0 %v2546
    %2688 = vmatprep.subr.mxu0 %v2551
    %2689 = vmatpush1.msra.mxu0 %v2550
    %2690 = vmatprep.subr.mxu0 %v2555
    %2691 = vmatpush1.msra.mxu0 %v2554
    %2692 = vmatprep.subr.mxu0 %v2559
    %2693 = vmatpush1.msra.mxu0 %v2558
    %2694 = vmatprep.subr.mxu0 %v2563
    %2695 = vmatpush1.msra.mxu0 %v2562
    %2696 = vmatprep.subr.mxu0 %v2567
    %2697 = vmatpush1.msra.mxu0 %v2566
    %2698 = vmatprep.subr.mxu0 %v2571
    %2699 = vmatpush1.msra.mxu0 %v2570
    %2700 = vmatprep.subr.mxu0 %v2575
    %2701 = vmatpush1.msra.mxu0 %v2574
    %2702 = vmatprep.subr.mxu0 %v2579
    %2703 = vmatpush1.msra.mxu0 %v2578
    %2704 = vmatprep.subr.mxu0 %v2583
    %2705 = vmatpush1.msra.mxu0 %v2582
    %2706 = vmatprep.subr.mxu0 %v2587
    %2707 = vmatpush1.msra.mxu0 %v2586
    %2708 = vmatprep.subr.mxu0 %v2591
    %2709 = vmatpush1.msra.mxu0 %v2590
    %2710 = vmatprep.subr.mxu0 %v2595
    %2711 = vmatpush1.msra.mxu0 %v2594
    %2712 = vmatprep.subr.mxu0 %v2599
    %2713 = vmatpush1.msra.mxu0 %v2598
    %2714 = vmatprep.subr.mxu0 %v2603
    %2715 = vmatpush1.msra.mxu0 %v2602
    %2716 = vmatprep.subr.mxu0 %v2607
    %2717 = vmatpush1.msra.mxu0 %v2606
    %2718 = vmatprep.subr.mxu0 %v2611
    %2719 = vmatpush1.msra.mxu0 %v2610
    %2720 = vmatprep.subr.mxu0 %v2615
    %2721 = vmatpush1.msra.mxu0 %v2614
    %2722 = vmatprep.subr.mxu0 %v2619
    %2723 = vmatpush1.msra.mxu0 %v2618
    %2724 = vmatprep.subr.mxu0 %v2623
    %2725 = vmatpush1.msra.mxu0 %v2622
    %2726 = vmatprep.subr.mxu0 %v2627
    %2727 = vmatpush1.msra.mxu0 %v2626
    %2728 = vmatprep.subr.mxu0 %v2631
    %2729 = vmatpush1.msra.mxu0 %v2630
    %2730 = vmatprep.subr.mxu0 %v2635
    %2731 = vmatpush1.msra.mxu0 %v2634
    %2732 = vmatprep.subr.mxu0 %v2639
    %2733 = vmatpush1.msra.mxu0 %v2638
    %2734 = vmatprep.subr.mxu0 %v2643
    %2735 = vmatpush1.msra.mxu0 %v2642
    %2736 = vmatprep.subr.mxu0 %v2647
    %2737 = vmatpush1.msra.mxu0 %v2646
    %2738 = vmatprep.subr.mxu0 %v2651
    %2739 = vmatpush1.msra.mxu0 %v2650
    %2740 = vmatprep.mubr.f32.mxu0 %v2525
    %2741 = vmatmul.mubr.f32.gmra.mrb[0].mxu0 %v2524
    %v2742 = vpop.f32.mrb[0].mxu0
    %v2743 = vadd.f32 %v2659, %v2742
    %v2744 = vpop.f32.mrb[0].mxu0
    %v2745 = vadd.f32 %v2663, %v2744
    %2746 = vdwg.mxu0
    %2747 = vmatprep.subr.mxu0 %v2529
    %2748 = vmatpush1.msra.mxu0 %v2528
    %2749 = vmatprep.subr.mxu0 %v2533
    %2750 = vmatpush1.msra.mxu0 %v2532
    %2751 = vmatprep.subr.mxu0 %v2537
    %2752 = vmatpush1.msra.mxu0 %v2536
    %2753 = vmatprep.subr.mxu0 %v2541
    %2754 = vmatpush1.msra.mxu0 %v2540
    %2755 = vmatprep.subr.mxu0 %v2545
    %2756 = vmatpush1.msra.mxu0 %v2544
    %2757 = vmatprep.subr.mxu0 %v2549
    %2758 = vmatpush1.msra.mxu0 %v2548
    %2759 = vmatprep.subr.mxu0 %v2553
    %2760 = vmatpush1.msra.mxu0 %v2552
    %2761 = vmatprep.subr.mxu0 %v2557
    %2762 = vmatpush1.msra.mxu0 %v2556
    %2763 = vmatprep.subr.mxu0 %v2561
    %2764 = vmatpush1.msra.mxu0 %v2560
    %2765 = vmatprep.subr.mxu0 %v2565
    %2766 = vmatpush1.msra.mxu0 %v2564
    %2767 = vmatprep.subr.mxu0 %v2569
    %2768 = vmatpush1.msra.mxu0 %v2568
    %2769 = vmatprep.subr.mxu0 %v2573
    %2770 = vmatpush1.msra.mxu0 %v2572
    %2771 = vmatprep.subr.mxu0 %v2577
    %2772 = vmatpush1.msra.mxu0 %v2576
    %2773 = vmatprep.subr.mxu0 %v2581
    %2774 = vmatpush1.msra.mxu0 %v2580
    %2775 = vmatprep.subr.mxu0 %v2585
    %2776 = vmatpush1.msra.mxu0 %v2584
    %2777 = vmatprep.subr.mxu0 %v2589
    %2778 = vmatpush1.msra.mxu0 %v2588
    %2779 = vmatprep.subr.mxu0 %v2593
    %2780 = vmatpush1.msra.mxu0 %v2592
    %2781 = vmatprep.subr.mxu0 %v2597
    %2782 = vmatpush1.msra.mxu0 %v2596
    %2783 = vmatprep.subr.mxu0 %v2601
    %2784 = vmatpush1.msra.mxu0 %v2600
    %2785 = vmatprep.subr.mxu0 %v2605
    %2786 = vmatpush1.msra.mxu0 %v2604
    %2787 = vmatprep.subr.mxu0 %v2609
    %2788 = vmatpush1.msra.mxu0 %v2608
    %2789 = vmatprep.subr.mxu0 %v2613
    %2790 = vmatpush1.msra.mxu0 %v2612
    %2791 = vmatprep.subr.mxu0 %v2617
    %2792 = vmatpush1.msra.mxu0 %v2616
    %2793 = vmatprep.subr.mxu0 %v2621
    %2794 = vmatpush1.msra.mxu0 %v2620
    %2795 = vmatprep.subr.mxu0 %v2625
    %2796 = vmatpush1.msra.mxu0 %v2624
    %2797 = vmatprep.subr.mxu0 %v2629
    %2798 = vmatpush1.msra.mxu0 %v2628
    %2799 = vmatprep.subr.mxu0 %v2633
    %2800 = vmatpush1.msra.mxu0 %v2632
    %2801 = vmatprep.subr.mxu0 %v2637
    %2802 = vmatpush1.msra.mxu0 %v2636
    %2803 = vmatprep.subr.mxu0 %v2641
    %2804 = vmatpush1.msra.mxu0 %v2640
    %2805 = vmatprep.subr.mxu0 %v2645
    %2806 = vmatpush1.msra.mxu0 %v2644
    %2807 = vmatprep.subr.mxu0 %v2649
    %2808 = vmatpush1.msra.mxu0 %v2648
    %2809 = vmatprep.subr.mxu0 %v2653
    %2810 = vmatpush1.msra.mxu0 %v2652
    %2811 = vmatprep.mubr.f32.mxu0 %v2525
    %2812 = vmatmul.mubr.f32.gmra.mrb[0].mxu0 %v2524
    %v2813 = vpop.f32.mrb[0].mxu0
    %v2814 = vadd.f32 %v2667, %v2813
    %v2815 = vpop.f32.mrb[0].mxu0
    %v2816 = vadd.f32 %v2671, %v2815
    %2817 = vdwg.mxu0
    %v2818 = vxor.u32 %v2743, 2147483648
    %v2819 = vmul.f32 %v2818, 1.442695
    %v2820 = vpow.pop %v2819
    %v2821 = vadd.f32 %v2820, 1.0
    %v2822 = vrcp.pop %v2821
    %v2823 = vmul.f32 1.0, %v2822
    %v2824 = vxor.u32 %v2745, 2147483648
    %v2825 = vmul.f32 %v2824, 1.442695
    %v2826 = vpow.pop %v2825
    %v2827 = vadd.f32 %v2826, 1.0
    %v2828 = vrcp.pop %v2827
    %v2829 = vmul.f32 1.0, %v2828
    %v2830 = vtanh.pop %v2814
    %v2831 = vxor.u32 %v2816, 2147483648
    %v2832 = vmul.f32 %v2831, 1.442695
    %v2833 = vpow.pop %v2832
    %v2834 = vadd.f32 %v2833, 1.0
    %v2835 = vrcp.pop %v2834
    %v2836 = vmul.f32 1.0, %v2835
    %v2837 = vmul.f32 %v2829, %v2506
    %v2838 = vmul.f32 %v2823, %v2830
    %v2839 = vadd.f32 %v2837, %v2838
    %v2840 = vtanh.pop %v2839
    %v2841 = vmul.f32 %v2836, %v2840
    %2842 = vst [vmem:[#allocation2 + $0x8] sm:$0xff] %v2841
    %2843 = vst [vmem:[%s23 + $0x18] sm:$0xff] %v2841
    %v2844 = vld [vmem:[%s3 + $0x20] sm:$0xff]
    %vm2845 = vcmp.eq.f32.partialorder %v2844, -5.0
    %2847 = vrot.lane.b32.xlu0 %v2841, 96
    %v2848 = vpop.permute.xlu0 %2847
    %v2850 = vsel %vm2845, %v2848, %v2844
    %2851 = vst.msk [vmem:[#allocation2] sm:$0xff] %vm185, %v1514
    %2853 = vrot.lane.b32.xlu0 %v2850, 32
    %v2854 = vpop.permute.xlu0 %2853
    %2856 = vst.msk [vmem:[#allocation2] sm:$0xff] %vm1523, %v2854
    %v2857 = vld [vmem:[#allocation2] sm:$0xff]
    %v2858 = vld [vmem:[#allocation2 + $0x8] sm:$0xff]
    %v2859 = vld [vmem:[#allocation15] sm:$0xff]
    %v2860 = vld [vmem:[#allocation15 + $0x8] sm:$0xff]
    %v2861 = vld [vmem:[#allocation15 + $0x10] sm:$0xff]
    %v2862 = vld [vmem:[#allocation15 + $0x18] sm:$0xff]
    %v2863 = vld [vmem:[#allocation15 + $0x20] sm:$0xff]
    %v2864 = vld [vmem:[#allocation15 + $0x28] sm:$0xff]
    %v2865 = vld [vmem:[#allocation15 + $0x30] sm:$0xff]
    %v2866 = vld [vmem:[#allocation15 + $0x38] sm:$0xff]
    %v2867 = vld [vmem:[#allocation15 + $0x40] sm:$0xff]
    %v2868 = vld [vmem:[#allocation15 + $0x48] sm:$0xff]
    %v2869 = vld [vmem:[#allocation15 + $0x50] sm:$0xff]
    %v2870 = vld [vmem:[#allocation15 + $0x58] sm:$0xff]
    %v2871 = vld [vmem:[#allocation15 + $0x60] sm:$0xff]
    %v2872 = vld [vmem:[#allocation15 + $0x68] sm:$0xff]
    %v2873 = vld [vmem:[#allocation15 + $0x70] sm:$0xff]
    %v2874 = vld [vmem:[#allocation15 + $0x78] sm:$0xff]
    %v2875 = vld [vmem:[#allocation15 + $0x80] sm:$0xff]
    %v2876 = vld [vmem:[#allocation15 + $0x88] sm:$0xff]
    %v2877 = vld [vmem:[#allocation15 + $0x90] sm:$0xff]
    %v2878 = vld [vmem:[#allocation15 + $0x98] sm:$0xff]
    %v2879 = vld [vmem:[#allocation15 + $0xa0] sm:$0xff]
    %v2880 = vld [vmem:[#allocation15 + $0xa8] sm:$0xff]
    %v2881 = vld [vmem:[#allocation15 + $0xb0] sm:$0xff]
    %v2882 = vld [vmem:[#allocation15 + $0xb8] sm:$0xff]
    %v2883 = vld [vmem:[#allocation15 + $0xc0] sm:$0xff]
    %v2884 = vld [vmem:[#allocation15 + $0xc8] sm:$0xff]
    %v2885 = vld [vmem:[#allocation15 + $0xd0] sm:$0xff]
    %v2886 = vld [vmem:[#allocation15 + $0xd8] sm:$0xff]
    %v2887 = vld [vmem:[#allocation15 + $0xe0] sm:$0xff]
    %v2888 = vld [vmem:[#allocation15 + $0xe8] sm:$0xff]
    %v2889 = vld [vmem:[#allocation15 + $0xf0] sm:$0xff]
    %v2890 = vld [vmem:[#allocation15 + $0xf8] sm:$0xff]
    %v2891 = vld [vmem:[#allocation15 + $0x100] sm:$0xff]
    %v2892 = vld [vmem:[#allocation15 + $0x108] sm:$0xff]
    %v2893 = vld [vmem:[#allocation15 + $0x110] sm:$0xff]
    %v2894 = vld [vmem:[#allocation15 + $0x118] sm:$0xff]
    %v2895 = vld [vmem:[#allocation15 + $0x120] sm:$0xff]
    %v2896 = vld [vmem:[#allocation15 + $0x128] sm:$0xff]
    %v2897 = vld [vmem:[#allocation15 + $0x130] sm:$0xff]
    %v2898 = vld [vmem:[#allocation15 + $0x138] sm:$0xff]
    %v2899 = vld [vmem:[#allocation15 + $0x140] sm:$0xff]
    %v2900 = vld [vmem:[#allocation15 + $0x148] sm:$0xff]
    %v2901 = vld [vmem:[#allocation15 + $0x150] sm:$0xff]
    %v2902 = vld [vmem:[#allocation15 + $0x158] sm:$0xff]
    %v2903 = vld [vmem:[#allocation15 + $0x160] sm:$0xff]
    %v2904 = vld [vmem:[#allocation15 + $0x168] sm:$0xff]
    %v2905 = vld [vmem:[#allocation15 + $0x170] sm:$0xff]
    %v2906 = vld [vmem:[#allocation15 + $0x178] sm:$0xff]
    %v2907 = vld [vmem:[#allocation15 + $0x180] sm:$0xff]
    %v2908 = vld [vmem:[#allocation15 + $0x188] sm:$0xff]
    %v2909 = vld [vmem:[#allocation15 + $0x190] sm:$0xff]
    %v2910 = vld [vmem:[#allocation15 + $0x198] sm:$0xff]
    %v2911 = vld [vmem:[#allocation15 + $0x1a0] sm:$0xff]
    %v2912 = vld [vmem:[#allocation15 + $0x1a8] sm:$0xff]
    %v2913 = vld [vmem:[#allocation15 + $0x1b0] sm:$0xff]
    %v2914 = vld [vmem:[#allocation15 + $0x1b8] sm:$0xff]
    %v2915 = vld [vmem:[#allocation15 + $0x1c0] sm:$0xff]
    %v2916 = vld [vmem:[#allocation15 + $0x1c8] sm:$0xff]
    %v2917 = vld [vmem:[#allocation15 + $0x1d0] sm:$0xff]
    %v2918 = vld [vmem:[#allocation15 + $0x1d8] sm:$0xff]
    %v2919 = vld [vmem:[#allocation15 + $0x1e0] sm:$0xff]
    %v2920 = vld [vmem:[#allocation15 + $0x1e8] sm:$0xff]
    %v2921 = vld [vmem:[#allocation15 + $0x1f0] sm:$0xff]
    %v2922 = vld [vmem:[#allocation15 + $0x1f8] sm:$0xff]
    %v2923 = vld [vmem:[#allocation15 + $0x200] sm:$0xff]
    %v2924 = vld [vmem:[#allocation15 + $0x208] sm:$0xff]
    %v2925 = vld [vmem:[#allocation15 + $0x210] sm:$0xff]
    %v2926 = vld [vmem:[#allocation15 + $0x218] sm:$0xff]
    %v2927 = vld [vmem:[#allocation15 + $0x220] sm:$0xff]
    %v2928 = vld [vmem:[#allocation15 + $0x228] sm:$0xff]
    %v2929 = vld [vmem:[#allocation15 + $0x230] sm:$0xff]
    %v2930 = vld [vmem:[#allocation15 + $0x238] sm:$0xff]
    %v2931 = vld [vmem:[#allocation15 + $0x240] sm:$0xff]
    %v2932 = vld [vmem:[#allocation15 + $0x248] sm:$0xff]
    %v2933 = vld [vmem:[#allocation15 + $0x250] sm:$0xff]
    %v2934 = vld [vmem:[#allocation15 + $0x258] sm:$0xff]
    %v2935 = vld [vmem:[#allocation15 + $0x260] sm:$0xff]
    %v2936 = vld [vmem:[#allocation15 + $0x268] sm:$0xff]
    %v2937 = vld [vmem:[#allocation15 + $0x270] sm:$0xff]
    %v2938 = vld [vmem:[#allocation15 + $0x278] sm:$0xff]
    %v2939 = vld [vmem:[#allocation15 + $0x280] sm:$0xff]
    %v2940 = vld [vmem:[#allocation15 + $0x288] sm:$0xff]
    %v2941 = vld [vmem:[#allocation15 + $0x290] sm:$0xff]
    %v2942 = vld [vmem:[#allocation15 + $0x298] sm:$0xff]
    %v2943 = vld [vmem:[#allocation15 + $0x2a0] sm:$0xff]
    %v2944 = vld [vmem:[#allocation15 + $0x2a8] sm:$0xff]
    %v2945 = vld [vmem:[#allocation15 + $0x2b0] sm:$0xff]
    %v2946 = vld [vmem:[#allocation15 + $0x2b8] sm:$0xff]
    %v2947 = vld [vmem:[#allocation15 + $0x2c0] sm:$0xff]
    %v2948 = vld [vmem:[#allocation15 + $0x2c8] sm:$0xff]
    %v2949 = vld [vmem:[#allocation15 + $0x2d0] sm:$0xff]
    %v2950 = vld [vmem:[#allocation15 + $0x2d8] sm:$0xff]
    %v2951 = vld [vmem:[#allocation15 + $0x2e0] sm:$0xff]
    %v2952 = vld [vmem:[#allocation15 + $0x2e8] sm:$0xff]
    %v2953 = vld [vmem:[#allocation15 + $0x2f0] sm:$0xff]
    %v2954 = vld [vmem:[#allocation15 + $0x2f8] sm:$0xff]
    %v2955 = vld [vmem:[#allocation15 + $0x300] sm:$0xff]
    %v2956 = vld [vmem:[#allocation15 + $0x308] sm:$0xff]
    %v2957 = vld [vmem:[#allocation15 + $0x310] sm:$0xff]
    %v2958 = vld [vmem:[#allocation15 + $0x318] sm:$0xff]
    %v2959 = vld [vmem:[#allocation15 + $0x320] sm:$0xff]
    %v2960 = vld [vmem:[#allocation15 + $0x328] sm:$0xff]
    %v2961 = vld [vmem:[#allocation15 + $0x330] sm:$0xff]
    %v2962 = vld [vmem:[#allocation15 + $0x338] sm:$0xff]
    %v2963 = vld [vmem:[#allocation15 + $0x340] sm:$0xff]
    %v2964 = vld [vmem:[#allocation15 + $0x348] sm:$0xff]
    %v2965 = vld [vmem:[#allocation15 + $0x350] sm:$0xff]
    %v2966 = vld [vmem:[#allocation15 + $0x358] sm:$0xff]
    %v2967 = vld [vmem:[#allocation15 + $0x360] sm:$0xff]
    %v2968 = vld [vmem:[#allocation15 + $0x368] sm:$0xff]
    %v2969 = vld [vmem:[#allocation15 + $0x370] sm:$0xff]
    %v2970 = vld [vmem:[#allocation15 + $0x378] sm:$0xff]
    %v2971 = vld [vmem:[#allocation15 + $0x380] sm:$0xff]
    %v2972 = vld [vmem:[#allocation15 + $0x388] sm:$0xff]
    %v2973 = vld [vmem:[#allocation15 + $0x390] sm:$0xff]
    %v2974 = vld [vmem:[#allocation15 + $0x398] sm:$0xff]
    %v2975 = vld [vmem:[#allocation15 + $0x3a0] sm:$0xff]
    %v2976 = vld [vmem:[#allocation15 + $0x3a8] sm:$0xff]
    %v2977 = vld [vmem:[#allocation15 + $0x3b0] sm:$0xff]
    %v2978 = vld [vmem:[#allocation15 + $0x3b8] sm:$0xff]
    %v2979 = vld [vmem:[#allocation15 + $0x3c0] sm:$0xff]
    %v2980 = vld [vmem:[#allocation15 + $0x3c8] sm:$0xff]
    %v2981 = vld [vmem:[#allocation15 + $0x3d0] sm:$0xff]
    %v2982 = vld [vmem:[#allocation15 + $0x3d8] sm:$0xff]
    %v2983 = vld [vmem:[#allocation15 + $0x3e0] sm:$0xff]
    %v2984 = vld [vmem:[#allocation15 + $0x3e8] sm:$0xff]
    %v2985 = vld [vmem:[#allocation15 + $0x3f0] sm:$0xff]
    %v2986 = vld [vmem:[#allocation15 + $0x3f8] sm:$0xff]
    %v2987 = vld [vmem:[%s18] sm:$0xf]
    %v2989 = vlaneseq
    %v2990 = vshrl.u32 %v2989, 7
    %v2991 = vsub.s32 0, %v2990
    %v2992 = vrot.slane %v2987, %v2991
    %v2993 = vlaneseq
    %v2994 = vshrl.u32 %v2993, 7
    %v2995 = vsub.s32 1, %v2994
    %v2996 = vrot.slane %v2987, %v2995
    %v2997 = vlaneseq
    %v2998 = vshrl.u32 %v2997, 7
    %v2999 = vsub.s32 2, %v2998
    %v3000 = vrot.slane %v2987, %v2999
    %v3001 = vlaneseq
    %v3002 = vshrl.u32 %v3001, 7
    %v3003 = vsub.s32 3, %v3002
    %v3004 = vrot.slane %v2987, %v3003
    %3009 = vmatprep.subr.mxu0 %v2860
    %3010 = vmatpush1.msra.mxu0 %v2859
    %3011 = vmatprep.subr.mxu0 %v2864
    %3012 = vmatpush1.msra.mxu0 %v2863
    %3013 = vmatprep.subr.mxu0 %v2868
    %3014 = vmatpush1.msra.mxu0 %v2867
    %3015 = vmatprep.subr.mxu0 %v2872
    %3016 = vmatpush1.msra.mxu0 %v2871
    %3017 = vmatprep.subr.mxu0 %v2876
    %3018 = vmatpush1.msra.mxu0 %v2875
    %3019 = vmatprep.subr.mxu0 %v2880
    %3020 = vmatpush1.msra.mxu0 %v2879
    %3021 = vmatprep.subr.mxu0 %v2884
    %3022 = vmatpush1.msra.mxu0 %v2883
    %3023 = vmatprep.subr.mxu0 %v2888
    %3024 = vmatpush1.msra.mxu0 %v2887
    %3025 = vmatprep.subr.mxu0 %v2892
    %3026 = vmatpush1.msra.mxu0 %v2891
    %3027 = vmatprep.subr.mxu0 %v2896
    %3028 = vmatpush1.msra.mxu0 %v2895
    %3029 = vmatprep.subr.mxu0 %v2900
    %3030 = vmatpush1.msra.mxu0 %v2899
    %3031 = vmatprep.subr.mxu0 %v2904
    %3032 = vmatpush1.msra.mxu0 %v2903
    %3033 = vmatprep.subr.mxu0 %v2908
    %3034 = vmatpush1.msra.mxu0 %v2907
    %3035 = vmatprep.subr.mxu0 %v2912
    %3036 = vmatpush1.msra.mxu0 %v2911
    %3037 = vmatprep.subr.mxu0 %v2916
    %3038 = vmatpush1.msra.mxu0 %v2915
    %3039 = vmatprep.subr.mxu0 %v2920
    %3040 = vmatpush1.msra.mxu0 %v2919
    %3041 = vmatprep.subr.mxu0 %v2924
    %3042 = vmatpush1.msra.mxu0 %v2923
    %3043 = vmatprep.subr.mxu0 %v2928
    %3044 = vmatpush1.msra.mxu0 %v2927
    %3045 = vmatprep.subr.mxu0 %v2932
    %3046 = vmatpush1.msra.mxu0 %v2931
    %3047 = vmatprep.subr.mxu0 %v2936
    %3048 = vmatpush1.msra.mxu0 %v2935
    %3049 = vmatprep.subr.mxu0 %v2940
    %3050 = vmatpush1.msra.mxu0 %v2939
    %3051 = vmatprep.subr.mxu0 %v2944
    %3052 = vmatpush1.msra.mxu0 %v2943
    %3053 = vmatprep.subr.mxu0 %v2948
    %3054 = vmatpush1.msra.mxu0 %v2947
    %3055 = vmatprep.subr.mxu0 %v2952
    %3056 = vmatpush1.msra.mxu0 %v2951
    %3057 = vmatprep.subr.mxu0 %v2956
    %3058 = vmatpush1.msra.mxu0 %v2955
    %3059 = vmatprep.subr.mxu0 %v2960
    %3060 = vmatpush1.msra.mxu0 %v2959
    %3061 = vmatprep.subr.mxu0 %v2964
    %3062 = vmatpush1.msra.mxu0 %v2963
    %3063 = vmatprep.subr.mxu0 %v2968
    %3064 = vmatpush1.msra.mxu0 %v2967
    %3065 = vmatprep.subr.mxu0 %v2972
    %3066 = vmatpush1.msra.mxu0 %v2971
    %3067 = vmatprep.subr.mxu0 %v2976
    %3068 = vmatpush1.msra.mxu0 %v2975
    %3069 = vmatprep.subr.mxu0 %v2980
    %3070 = vmatpush1.msra.mxu0 %v2979
    %3071 = vmatprep.subr.mxu0 %v2984
    %3072 = vmatpush1.msra.mxu0 %v2983
    %3073 = vmatprep.mubr.f32.mxu0 %v2858
    %3074 = vmatmul.mubr.f32.gmra.mrb[0].mxu0 %v2857
    %v3075 = vpop.f32.mrb[0].mxu0
    %v3076 = vadd.f32 %v2992, %v3075
    %v3077 = vpop.f32.mrb[0].mxu0
    %v3078 = vadd.f32 %v2996, %v3077
    %3079 = vdwg.mxu0
    %3080 = vmatprep.subr.mxu0 %v2862
    %3081 = vmatpush1.msra.mxu0 %v2861
    %3082 = vmatprep.subr.mxu0 %v2866
    %3083 = vmatpush1.msra.mxu0 %v2865
    %3084 = vmatprep.subr.mxu0 %v2870
    %3085 = vmatpush1.msra.mxu0 %v2869
    %3086 = vmatprep.subr.mxu0 %v2874
    %3087 = vmatpush1.msra.mxu0 %v2873
    %3088 = vmatprep.subr.mxu0 %v2878
    %3089 = vmatpush1.msra.mxu0 %v2877
    %3090 = vmatprep.subr.mxu0 %v2882
    %3091 = vmatpush1.msra.mxu0 %v2881
    %3092 = vmatprep.subr.mxu0 %v2886
    %3093 = vmatpush1.msra.mxu0 %v2885
    %3094 = vmatprep.subr.mxu0 %v2890
    %3095 = vmatpush1.msra.mxu0 %v2889
    %3096 = vmatprep.subr.mxu0 %v2894
    %3097 = vmatpush1.msra.mxu0 %v2893
    %3098 = vmatprep.subr.mxu0 %v2898
    %3099 = vmatpush1.msra.mxu0 %v2897
    %3100 = vmatprep.subr.mxu0 %v2902
    %3101 = vmatpush1.msra.mxu0 %v2901
    %3102 = vmatprep.subr.mxu0 %v2906
    %3103 = vmatpush1.msra.mxu0 %v2905
    %3104 = vmatprep.subr.mxu0 %v2910
    %3105 = vmatpush1.msra.mxu0 %v2909
    %3106 = vmatprep.subr.mxu0 %v2914
    %3107 = vmatpush1.msra.mxu0 %v2913
    %3108 = vmatprep.subr.mxu0 %v2918
    %3109 = vmatpush1.msra.mxu0 %v2917
    %3110 = vmatprep.subr.mxu0 %v2922
    %3111 = vmatpush1.msra.mxu0 %v2921
    %3112 = vmatprep.subr.mxu0 %v2926
    %3113 = vmatpush1.msra.mxu0 %v2925
    %3114 = vmatprep.subr.mxu0 %v2930
    %3115 = vmatpush1.msra.mxu0 %v2929
    %3116 = vmatprep.subr.mxu0 %v2934
    %3117 = vmatpush1.msra.mxu0 %v2933
    %3118 = vmatprep.subr.mxu0 %v2938
    %3119 = vmatpush1.msra.mxu0 %v2937
    %3120 = vmatprep.subr.mxu0 %v2942
    %3121 = vmatpush1.msra.mxu0 %v2941
    %3122 = vmatprep.subr.mxu0 %v2946
    %3123 = vmatpush1.msra.mxu0 %v2945
    %3124 = vmatprep.subr.mxu0 %v2950
    %3125 = vmatpush1.msra.mxu0 %v2949
    %3126 = vmatprep.subr.mxu0 %v2954
    %3127 = vmatpush1.msra.mxu0 %v2953
    %3128 = vmatprep.subr.mxu0 %v2958
    %3129 = vmatpush1.msra.mxu0 %v2957
    %3130 = vmatprep.subr.mxu0 %v2962
    %3131 = vmatpush1.msra.mxu0 %v2961
    %3132 = vmatprep.subr.mxu0 %v2966
    %3133 = vmatpush1.msra.mxu0 %v2965
    %3134 = vmatprep.subr.mxu0 %v2970
    %3135 = vmatpush1.msra.mxu0 %v2969
    %3136 = vmatprep.subr.mxu0 %v2974
    %3137 = vmatpush1.msra.mxu0 %v2973
    %3138 = vmatprep.subr.mxu0 %v2978
    %3139 = vmatpush1.msra.mxu0 %v2977
    %3140 = vmatprep.subr.mxu0 %v2982
    %3141 = vmatpush1.msra.mxu0 %v2981
    %3142 = vmatprep.subr.mxu0 %v2986
    %3143 = vmatpush1.msra.mxu0 %v2985
    %3144 = vmatprep.mubr.f32.mxu0 %v2858
    %3145 = vmatmul.mubr.f32.gmra.mrb[0].mxu0 %v2857
    %v3146 = vpop.f32.mrb[0].mxu0
    %v3147 = vadd.f32 %v3000, %v3146
    %v3148 = vpop.f32.mrb[0].mxu0
    %v3149 = vadd.f32 %v3004, %v3148
    %3150 = vdwg.mxu0
    %v3151 = vxor.u32 %v3076, 2147483648
    %v3152 = vmul.f32 %v3151, 1.442695
    %v3153 = vpow.pop %v3152
    %v3154 = vadd.f32 %v3153, 1.0
    %v3155 = vrcp.pop %v3154
    %v3156 = vmul.f32 1.0, %v3155
    %v3157 = vxor.u32 %v3078, 2147483648
    %v3158 = vmul.f32 %v3157, 1.442695
    %v3159 = vpow.pop %v3158
    %v3160 = vadd.f32 %v3159, 1.0
    %v3161 = vrcp.pop %v3160
    %v3162 = vmul.f32 1.0, %v3161
    %v3163 = vtanh.pop %v3147
    %v3164 = vxor.u32 %v3149, 2147483648
    %v3165 = vmul.f32 %v3164, 1.442695
    %v3166 = vpow.pop %v3165
    %v3167 = vadd.f32 %v3166, 1.0
    %v3168 = vrcp.pop %v3167
    %v3169 = vmul.f32 1.0, %v3168
    %v3170 = vmul.f32 %v3162, %v2839
    %v3171 = vmul.f32 %v3156, %v3163
    %v3172 = vadd.f32 %v3170, %v3171
    %v3173 = vtanh.pop %v3172
    %v3174 = vmul.f32 %v3169, %v3173
    %3175 = vst [vmem:[#allocation2 + $0x8] sm:$0xff] %v3174
    %3176 = vst [vmem:[#allocation2] sm:$0xff] %v3174
    %3177 = vst [vmem:[#allocation2 + $0x8] sm:$0xff] %v3174
    %v3178 = vld [vmem:[#allocation2] sm:$0xff]
    %v3179 = vld [vmem:[#allocation2 + $0x8] sm:$0xff]
    %v3180 = vld [vmem:[#allocation15] sm:$0xff]
    %v3181 = vld [vmem:[#allocation15 + $0x8] sm:$0xff]
    %v3182 = vld [vmem:[#allocation15 + $0x10] sm:$0xff]
    %v3183 = vld [vmem:[#allocation15 + $0x18] sm:$0xff]
    %v3184 = vld [vmem:[#allocation15 + $0x20] sm:$0xff]
    %v3185 = vld [vmem:[#allocation15 + $0x28] sm:$0xff]
    %v3186 = vld [vmem:[#allocation15 + $0x30] sm:$0xff]
    %v3187 = vld [vmem:[#allocation15 + $0x38] sm:$0xff]
    %v3188 = vld [vmem:[#allocation15 + $0x40] sm:$0xff]
    %v3189 = vld [vmem:[#allocation15 + $0x48] sm:$0xff]
    %v3190 = vld [vmem:[#allocation15 + $0x50] sm:$0xff]
    %v3191 = vld [vmem:[#allocation15 + $0x58] sm:$0xff]
    %v3192 = vld [vmem:[#allocation15 + $0x60] sm:$0xff]
    %v3193 = vld [vmem:[#allocation15 + $0x68] sm:$0xff]
    %v3194 = vld [vmem:[#allocation15 + $0x70] sm:$0xff]
    %v3195 = vld [vmem:[#allocation15 + $0x78] sm:$0xff]
    %v3196 = vld [vmem:[#allocation15 + $0x80] sm:$0xff]
    %v3197 = vld [vmem:[#allocation15 + $0x88] sm:$0xff]
    %v3198 = vld [vmem:[#allocation15 + $0x90] sm:$0xff]
    %v3199 = vld [vmem:[#allocation15 + $0x98] sm:$0xff]
    %v3200 = vld [vmem:[#allocation15 + $0xa0] sm:$0xff]
    %v3201 = vld [vmem:[#allocation15 + $0xa8] sm:$0xff]
    %v3202 = vld [vmem:[#allocation15 + $0xb0] sm:$0xff]
    %v3203 = vld [vmem:[#allocation15 + $0xb8] sm:$0xff]
    %v3204 = vld [vmem:[#allocation15 + $0xc0] sm:$0xff]
    %v3205 = vld [vmem:[#allocation15 + $0xc8] sm:$0xff]
    %v3206 = vld [vmem:[#allocation15 + $0xd0] sm:$0xff]
    %v3207 = vld [vmem:[#allocation15 + $0xd8] sm:$0xff]
    %v3208 = vld [vmem:[#allocation15 + $0xe0] sm:$0xff]
    %v3209 = vld [vmem:[#allocation15 + $0xe8] sm:$0xff]
    %v3210 = vld [vmem:[#allocation15 + $0xf0] sm:$0xff]
    %v3211 = vld [vmem:[#allocation15 + $0xf8] sm:$0xff]
    %v3212 = vld [vmem:[#allocation15 + $0x100] sm:$0xff]
    %v3213 = vld [vmem:[#allocation15 + $0x108] sm:$0xff]
    %v3214 = vld [vmem:[#allocation15 + $0x110] sm:$0xff]
    %v3215 = vld [vmem:[#allocation15 + $0x118] sm:$0xff]
    %v3216 = vld [vmem:[#allocation15 + $0x120] sm:$0xff]
    %v3217 = vld [vmem:[#allocation15 + $0x128] sm:$0xff]
    %v3218 = vld [vmem:[#allocation15 + $0x130] sm:$0xff]
    %v3219 = vld [vmem:[#allocation15 + $0x138] sm:$0xff]
    %v3220 = vld [vmem:[#allocation15 + $0x140] sm:$0xff]
    %v3221 = vld [vmem:[#allocation15 + $0x148] sm:$0xff]
    %v3222 = vld [vmem:[#allocation15 + $0x150] sm:$0xff]
    %v3223 = vld [vmem:[#allocation15 + $0x158] sm:$0xff]
    %v3224 = vld [vmem:[#allocation15 + $0x160] sm:$0xff]
    %v3225 = vld [vmem:[#allocation15 + $0x168] sm:$0xff]
    %v3226 = vld [vmem:[#allocation15 + $0x170] sm:$0xff]
    %v3227 = vld [vmem:[#allocation15 + $0x178] sm:$0xff]
    %v3228 = vld [vmem:[#allocation15 + $0x180] sm:$0xff]
    %v3229 = vld [vmem:[#allocation15 + $0x188] sm:$0xff]
    %v3230 = vld [vmem:[#allocation15 + $0x190] sm:$0xff]
    %v3231 = vld [vmem:[#allocation15 + $0x198] sm:$0xff]
    %v3232 = vld [vmem:[#allocation15 + $0x1a0] sm:$0xff]
    %v3233 = vld [vmem:[#allocation15 + $0x1a8] sm:$0xff]
    %v3234 = vld [vmem:[#allocation15 + $0x1b0] sm:$0xff]
    %v3235 = vld [vmem:[#allocation15 + $0x1b8] sm:$0xff]
    %v3236 = vld [vmem:[#allocation15 + $0x1c0] sm:$0xff]
    %v3237 = vld [vmem:[#allocation15 + $0x1c8] sm:$0xff]
    %v3238 = vld [vmem:[#allocation15 + $0x1d0] sm:$0xff]
    %v3239 = vld [vmem:[#allocation15 + $0x1d8] sm:$0xff]
    %v3240 = vld [vmem:[#allocation15 + $0x1e0] sm:$0xff]
    %v3241 = vld [vmem:[#allocation15 + $0x1e8] sm:$0xff]
    %v3242 = vld [vmem:[#allocation15 + $0x1f0] sm:$0xff]
    %v3243 = vld [vmem:[#allocation15 + $0x1f8] sm:$0xff]
    %v3244 = vld [vmem:[#allocation15 + $0x200] sm:$0xff]
    %v3245 = vld [vmem:[#allocation15 + $0x208] sm:$0xff]
    %v3246 = vld [vmem:[#allocation15 + $0x210] sm:$0xff]
    %v3247 = vld [vmem:[#allocation15 + $0x218] sm:$0xff]
    %v3248 = vld [vmem:[#allocation15 + $0x220] sm:$0xff]
    %v3249 = vld [vmem:[#allocation15 + $0x228] sm:$0xff]
    %v3250 = vld [vmem:[#allocation15 + $0x230] sm:$0xff]
    %v3251 = vld [vmem:[#allocation15 + $0x238] sm:$0xff]
    %v3252 = vld [vmem:[#allocation15 + $0x240] sm:$0xff]
    %v3253 = vld [vmem:[#allocation15 + $0x248] sm:$0xff]
    %v3254 = vld [vmem:[#allocation15 + $0x250] sm:$0xff]
    %v3255 = vld [vmem:[#allocation15 + $0x258] sm:$0xff]
    %v3256 = vld [vmem:[#allocation15 + $0x260] sm:$0xff]
    %v3257 = vld [vmem:[#allocation15 + $0x268] sm:$0xff]
    %v3258 = vld [vmem:[#allocation15 + $0x270] sm:$0xff]
    %v3259 = vld [vmem:[#allocation15 + $0x278] sm:$0xff]
    %v3260 = vld [vmem:[#allocation15 + $0x280] sm:$0xff]
    %v3261 = vld [vmem:[#allocation15 + $0x288] sm:$0xff]
    %v3262 = vld [vmem:[#allocation15 + $0x290] sm:$0xff]
    %v3263 = vld [vmem:[#allocation15 + $0x298] sm:$0xff]
    %v3264 = vld [vmem:[#allocation15 + $0x2a0] sm:$0xff]
    %v3265 = vld [vmem:[#allocation15 + $0x2a8] sm:$0xff]
    %v3266 = vld [vmem:[#allocation15 + $0x2b0] sm:$0xff]
    %v3267 = vld [vmem:[#allocation15 + $0x2b8] sm:$0xff]
    %v3268 = vld [vmem:[#allocation15 + $0x2c0] sm:$0xff]
    %v3269 = vld [vmem:[#allocation15 + $0x2c8] sm:$0xff]
    %v3270 = vld [vmem:[#allocation15 + $0x2d0] sm:$0xff]
    %v3271 = vld [vmem:[#allocation15 + $0x2d8] sm:$0xff]
    %v3272 = vld [vmem:[#allocation15 + $0x2e0] sm:$0xff]
    %v3273 = vld [vmem:[#allocation15 + $0x2e8] sm:$0xff]
    %v3274 = vld [vmem:[#allocation15 + $0x2f0] sm:$0xff]
    %v3275 = vld [vmem:[#allocation15 + $0x2f8] sm:$0xff]
    %v3276 = vld [vmem:[#allocation15 + $0x300] sm:$0xff]
    %v3277 = vld [vmem:[#allocation15 + $0x308] sm:$0xff]
    %v3278 = vld [vmem:[#allocation15 + $0x310] sm:$0xff]
    %v3279 = vld [vmem:[#allocation15 + $0x318] sm:$0xff]
    %v3280 = vld [vmem:[#allocation15 + $0x320] sm:$0xff]
    %v3281 = vld [vmem:[#allocation15 + $0x328] sm:$0xff]
    %v3282 = vld [vmem:[#allocation15 + $0x330] sm:$0xff]
    %v3283 = vld [vmem:[#allocation15 + $0x338] sm:$0xff]
    %v3284 = vld [vmem:[#allocation15 + $0x340] sm:$0xff]
    %v3285 = vld [vmem:[#allocation15 + $0x348] sm:$0xff]
    %v3286 = vld [vmem:[#allocation15 + $0x350] sm:$0xff]
    %v3287 = vld [vmem:[#allocation15 + $0x358] sm:$0xff]
    %v3288 = vld [vmem:[#allocation15 + $0x360] sm:$0xff]
    %v3289 = vld [vmem:[#allocation15 + $0x368] sm:$0xff]
    %v3290 = vld [vmem:[#allocation15 + $0x370] sm:$0xff]
    %v3291 = vld [vmem:[#allocation15 + $0x378] sm:$0xff]
    %v3292 = vld [vmem:[#allocation15 + $0x380] sm:$0xff]
    %v3293 = vld [vmem:[#allocation15 + $0x388] sm:$0xff]
    %v3294 = vld [vmem:[#allocation15 + $0x390] sm:$0xff]
    %v3295 = vld [vmem:[#allocation15 + $0x398] sm:$0xff]
    %v3296 = vld [vmem:[#allocation15 + $0x3a0] sm:$0xff]
    %v3297 = vld [vmem:[#allocation15 + $0x3a8] sm:$0xff]
    %v3298 = vld [vmem:[#allocation15 + $0x3b0] sm:$0xff]
    %v3299 = vld [vmem:[#allocation15 + $0x3b8] sm:$0xff]
    %v3300 = vld [vmem:[#allocation15 + $0x3c0] sm:$0xff]
    %v3301 = vld [vmem:[#allocation15 + $0x3c8] sm:$0xff]
    %v3302 = vld [vmem:[#allocation15 + $0x3d0] sm:$0xff]
    %v3303 = vld [vmem:[#allocation15 + $0x3d8] sm:$0xff]
    %v3304 = vld [vmem:[#allocation15 + $0x3e0] sm:$0xff]
    %v3305 = vld [vmem:[#allocation15 + $0x3e8] sm:$0xff]
    %v3306 = vld [vmem:[#allocation15 + $0x3f0] sm:$0xff]
    %v3307 = vld [vmem:[#allocation15 + $0x3f8] sm:$0xff]
    %v3308 = vld [vmem:[%s18] sm:$0xf]
    %v3310 = vlaneseq
    %v3311 = vshrl.u32 %v3310, 7
    %v3312 = vsub.s32 0, %v3311
    %v3313 = vrot.slane %v3308, %v3312
    %v3314 = vlaneseq
    %v3315 = vshrl.u32 %v3314, 7
    %v3316 = vsub.s32 1, %v3315
    %v3317 = vrot.slane %v3308, %v3316
    %v3318 = vlaneseq
    %v3319 = vshrl.u32 %v3318, 7
    %v3320 = vsub.s32 2, %v3319
    %v3321 = vrot.slane %v3308, %v3320
    %v3322 = vlaneseq
    %v3323 = vshrl.u32 %v3322, 7
    %v3324 = vsub.s32 3, %v3323
    %v3325 = vrot.slane %v3308, %v3324
    %3330 = vmatprep.subr.mxu0 %v3181
    %3331 = vmatpush1.msra.mxu0 %v3180
    %3332 = vmatprep.subr.mxu0 %v3185
    %3333 = vmatpush1.msra.mxu0 %v3184
    %3334 = vmatprep.subr.mxu0 %v3189
    %3335 = vmatpush1.msra.mxu0 %v3188
    %3336 = vmatprep.subr.mxu0 %v3193
    %3337 = vmatpush1.msra.mxu0 %v3192
    %3338 = vmatprep.subr.mxu0 %v3197
    %3339 = vmatpush1.msra.mxu0 %v3196
    %3340 = vmatprep.subr.mxu0 %v3201
    %3341 = vmatpush1.msra.mxu0 %v3200
    %3342 = vmatprep.subr.mxu0 %v3205
    %3343 = vmatpush1.msra.mxu0 %v3204
    %3344 = vmatprep.subr.mxu0 %v3209
    %3345 = vmatpush1.msra.mxu0 %v3208
    %3346 = vmatprep.subr.mxu0 %v3213
    %3347 = vmatpush1.msra.mxu0 %v3212
    %3348 = vmatprep.subr.mxu0 %v3217
    %3349 = vmatpush1.msra.mxu0 %v3216
    %3350 = vmatprep.subr.mxu0 %v3221
    %3351 = vmatpush1.msra.mxu0 %v3220
    %3352 = vmatprep.subr.mxu0 %v3225
    %3353 = vmatpush1.msra.mxu0 %v3224
    %3354 = vmatprep.subr.mxu0 %v3229
    %3355 = vmatpush1.msra.mxu0 %v3228
    %3356 = vmatprep.subr.mxu0 %v3233
    %3357 = vmatpush1.msra.mxu0 %v3232
    %3358 = vmatprep.subr.mxu0 %v3237
    %3359 = vmatpush1.msra.mxu0 %v3236
    %3360 = vmatprep.subr.mxu0 %v3241
    %3361 = vmatpush1.msra.mxu0 %v3240
    %3362 = vmatprep.subr.mxu0 %v3245
    %3363 = vmatpush1.msra.mxu0 %v3244
    %3364 = vmatprep.subr.mxu0 %v3249
    %3365 = vmatpush1.msra.mxu0 %v3248
    %3366 = vmatprep.subr.mxu0 %v3253
    %3367 = vmatpush1.msra.mxu0 %v3252
    %3368 = vmatprep.subr.mxu0 %v3257
    %3369 = vmatpush1.msra.mxu0 %v3256
    %3370 = vmatprep.subr.mxu0 %v3261
    %3371 = vmatpush1.msra.mxu0 %v3260
    %3372 = vmatprep.subr.mxu0 %v3265
    %3373 = vmatpush1.msra.mxu0 %v3264
    %3374 = vmatprep.subr.mxu0 %v3269
    %3375 = vmatpush1.msra.mxu0 %v3268
    %3376 = vmatprep.subr.mxu0 %v3273
    %3377 = vmatpush1.msra.mxu0 %v3272
    %3378 = vmatprep.subr.mxu0 %v3277
    %3379 = vmatpush1.msra.mxu0 %v3276
    %3380 = vmatprep.subr.mxu0 %v3281
    %3381 = vmatpush1.msra.mxu0 %v3280
    %3382 = vmatprep.subr.mxu0 %v3285
    %3383 = vmatpush1.msra.mxu0 %v3284
    %3384 = vmatprep.subr.mxu0 %v3289
    %3385 = vmatpush1.msra.mxu0 %v3288
    %3386 = vmatprep.subr.mxu0 %v3293
    %3387 = vmatpush1.msra.mxu0 %v3292
    %3388 = vmatprep.subr.mxu0 %v3297
    %3389 = vmatpush1.msra.mxu0 %v3296
    %3390 = vmatprep.subr.mxu0 %v3301
    %3391 = vmatpush1.msra.mxu0 %v3300
    %3392 = vmatprep.subr.mxu0 %v3305
    %3393 = vmatpush1.msra.mxu0 %v3304
    %3394 = vmatprep.mubr.f32.mxu0 %v3179
    %3395 = vmatmul.mubr.f32.gmra.mrb[0].mxu0 %v3178
    %v3396 = vpop.f32.mrb[0].mxu0
    %v3397 = vadd.f32 %v3313, %v3396
    %v3398 = vpop.f32.mrb[0].mxu0
    %v3399 = vadd.f32 %v3317, %v3398
    %3400 = vdwg.mxu0
    %3401 = vmatprep.subr.mxu0 %v3183
    %3402 = vmatpush1.msra.mxu0 %v3182
    %3403 = vmatprep.subr.mxu0 %v3187
    %3404 = vmatpush1.msra.mxu0 %v3186
    %3405 = vmatprep.subr.mxu0 %v3191
    %3406 = vmatpush1.msra.mxu0 %v3190
    %3407 = vmatprep.subr.mxu0 %v3195
    %3408 = vmatpush1.msra.mxu0 %v3194
    %3409 = vmatprep.subr.mxu0 %v3199
    %3410 = vmatpush1.msra.mxu0 %v3198
    %3411 = vmatprep.subr.mxu0 %v3203
    %3412 = vmatpush1.msra.mxu0 %v3202
    %3413 = vmatprep.subr.mxu0 %v3207
    %3414 = vmatpush1.msra.mxu0 %v3206
    %3415 = vmatprep.subr.mxu0 %v3211
    %3416 = vmatpush1.msra.mxu0 %v3210
    %3417 = vmatprep.subr.mxu0 %v3215
    %3418 = vmatpush1.msra.mxu0 %v3214
    %3419 = vmatprep.subr.mxu0 %v3219
    %3420 = vmatpush1.msra.mxu0 %v3218
    %3421 = vmatprep.subr.mxu0 %v3223
    %3422 = vmatpush1.msra.mxu0 %v3222
    %3423 = vmatprep.subr.mxu0 %v3227
    %3424 = vmatpush1.msra.mxu0 %v3226
    %3425 = vmatprep.subr.mxu0 %v3231
    %3426 = vmatpush1.msra.mxu0 %v3230
    %3427 = vmatprep.subr.mxu0 %v3235
    %3428 = vmatpush1.msra.mxu0 %v3234
    %3429 = vmatprep.subr.mxu0 %v3239
    %3430 = vmatpush1.msra.mxu0 %v3238
    %3431 = vmatprep.subr.mxu0 %v3243
    %3432 = vmatpush1.msra.mxu0 %v3242
    %3433 = vmatprep.subr.mxu0 %v3247
    %3434 = vmatpush1.msra.mxu0 %v3246
    %3435 = vmatprep.subr.mxu0 %v3251
    %3436 = vmatpush1.msra.mxu0 %v3250
    %3437 = vmatprep.subr.mxu0 %v3255
    %3438 = vmatpush1.msra.mxu0 %v3254
    %3439 = vmatprep.subr.mxu0 %v3259
    %3440 = vmatpush1.msra.mxu0 %v3258
    %3441 = vmatprep.subr.mxu0 %v3263
    %3442 = vmatpush1.msra.mxu0 %v3262
    %3443 = vmatprep.subr.mxu0 %v3267
    %3444 = vmatpush1.msra.mxu0 %v3266
    %3445 = vmatprep.subr.mxu0 %v3271
    %3446 = vmatpush1.msra.mxu0 %v3270
    %3447 = vmatprep.subr.mxu0 %v3275
    %3448 = vmatpush1.msra.mxu0 %v3274
    %3449 = vmatprep.subr.mxu0 %v3279
    %3450 = vmatpush1.msra.mxu0 %v3278
    %3451 = vmatprep.subr.mxu0 %v3283
    %3452 = vmatpush1.msra.mxu0 %v3282
    %3453 = vmatprep.subr.mxu0 %v3287
    %3454 = vmatpush1.msra.mxu0 %v3286
    %3455 = vmatprep.subr.mxu0 %v3291
    %3456 = vmatpush1.msra.mxu0 %v3290
    %3457 = vmatprep.subr.mxu0 %v3295
    %3458 = vmatpush1.msra.mxu0 %v3294
    %3459 = vmatprep.subr.mxu0 %v3299
    %3460 = vmatpush1.msra.mxu0 %v3298
    %3461 = vmatprep.subr.mxu0 %v3303
    %3462 = vmatpush1.msra.mxu0 %v3302
    %3463 = vmatprep.subr.mxu0 %v3307
    %3464 = vmatpush1.msra.mxu0 %v3306
    %3465 = vmatprep.mubr.f32.mxu0 %v3179
    %3466 = vmatmul.mubr.f32.gmra.mrb[0].mxu0 %v3178
    %v3467 = vpop.f32.mrb[0].mxu0
    %v3468 = vadd.f32 %v3321, %v3467
    %v3469 = vpop.f32.mrb[0].mxu0
    %v3470 = vadd.f32 %v3325, %v3469
    %3471 = vdwg.mxu0
    %v3472 = vxor.u32 %v3397, 2147483648
    %v3473 = vmul.f32 %v3472, 1.442695
    %v3474 = vpow.pop %v3473
    %v3475 = vadd.f32 %v3474, 1.0
    %v3476 = vrcp.pop %v3475
    %v3477 = vmul.f32 1.0, %v3476
    %v3478 = vxor.u32 %v3399, 2147483648
    %v3479 = vmul.f32 %v3478, 1.442695
    %v3480 = vpow.pop %v3479
    %v3481 = vadd.f32 %v3480, 1.0
    %v3482 = vrcp.pop %v3481
    %v3483 = vmul.f32 1.0, %v3482
    %v3484 = vtanh.pop %v3468
    %v3485 = vxor.u32 %v3470, 2147483648
    %v3486 = vmul.f32 %v3485, 1.442695
    %v3487 = vpow.pop %v3486
    %v3488 = vadd.f32 %v3487, 1.0
    %v3489 = vrcp.pop %v3488
    %v3490 = vmul.f32 1.0, %v3489
    %v3491 = vmul.f32 %v3483, %v3172
    %v3492 = vmul.f32 %v3477, %v3484
    %v3493 = vadd.f32 %v3491, %v3492
    %v3494 = vtanh.pop %v3493
    %v3495 = vmul.f32 %v3490, %v3494
    %3496 = vst [vmem:[%s24] sm:$0xff] %v3495
    %3497 = vst [vmem:[#allocation2] sm:$0xff] %v3495
    %3498 = vst [vmem:[#allocation2 + $0x8] sm:$0xff] %v3495
    %v3499 = vld [vmem:[#allocation2] sm:$0xff]
    %v3500 = vld [vmem:[#allocation2 + $0x8] sm:$0xff]
    %v3501 = vld [vmem:[#allocation15] sm:$0xff]
    %v3502 = vld [vmem:[#allocation15 + $0x8] sm:$0xff]
    %v3503 = vld [vmem:[#allocation15 + $0x10] sm:$0xff]
    %v3504 = vld [vmem:[#allocation15 + $0x18] sm:$0xff]
    %v3505 = vld [vmem:[#allocation15 + $0x20] sm:$0xff]
    %v3506 = vld [vmem:[#allocation15 + $0x28] sm:$0xff]
    %v3507 = vld [vmem:[#allocation15 + $0x30] sm:$0xff]
    %v3508 = vld [vmem:[#allocation15 + $0x38] sm:$0xff]
    %v3509 = vld [vmem:[#allocation15 + $0x40] sm:$0xff]
    %v3510 = vld [vmem:[#allocation15 + $0x48] sm:$0xff]
    %v3511 = vld [vmem:[#allocation15 + $0x50] sm:$0xff]
    %v3512 = vld [vmem:[#allocation15 + $0x58] sm:$0xff]
    %v3513 = vld [vmem:[#allocation15 + $0x60] sm:$0xff]
    %v3514 = vld [vmem:[#allocation15 + $0x68] sm:$0xff]
    %v3515 = vld [vmem:[#allocation15 + $0x70] sm:$0xff]
    %v3516 = vld [vmem:[#allocation15 + $0x78] sm:$0xff]
    %v3517 = vld [vmem:[#allocation15 + $0x80] sm:$0xff]
    %v3518 = vld [vmem:[#allocation15 + $0x88] sm:$0xff]
    %v3519 = vld [vmem:[#allocation15 + $0x90] sm:$0xff]
    %v3520 = vld [vmem:[#allocation15 + $0x98] sm:$0xff]
    %v3521 = vld [vmem:[#allocation15 + $0xa0] sm:$0xff]
    %v3522 = vld [vmem:[#allocation15 + $0xa8] sm:$0xff]
    %v3523 = vld [vmem:[#allocation15 + $0xb0] sm:$0xff]
    %v3524 = vld [vmem:[#allocation15 + $0xb8] sm:$0xff]
    %v3525 = vld [vmem:[#allocation15 + $0xc0] sm:$0xff]
    %v3526 = vld [vmem:[#allocation15 + $0xc8] sm:$0xff]
    %v3527 = vld [vmem:[#allocation15 + $0xd0] sm:$0xff]
    %v3528 = vld [vmem:[#allocation15 + $0xd8] sm:$0xff]
    %v3529 = vld [vmem:[#allocation15 + $0xe0] sm:$0xff]
    %v3530 = vld [vmem:[#allocation15 + $0xe8] sm:$0xff]
    %v3531 = vld [vmem:[#allocation15 + $0xf0] sm:$0xff]
    %v3532 = vld [vmem:[#allocation15 + $0xf8] sm:$0xff]
    %v3533 = vld [vmem:[#allocation15 + $0x100] sm:$0xff]
    %v3534 = vld [vmem:[#allocation15 + $0x108] sm:$0xff]
    %v3535 = vld [vmem:[#allocation15 + $0x110] sm:$0xff]
    %v3536 = vld [vmem:[#allocation15 + $0x118] sm:$0xff]
    %v3537 = vld [vmem:[#allocation15 + $0x120] sm:$0xff]
    %v3538 = vld [vmem:[#allocation15 + $0x128] sm:$0xff]
    %v3539 = vld [vmem:[#allocation15 + $0x130] sm:$0xff]
    %v3540 = vld [vmem:[#allocation15 + $0x138] sm:$0xff]
    %v3541 = vld [vmem:[#allocation15 + $0x140] sm:$0xff]
    %v3542 = vld [vmem:[#allocation15 + $0x148] sm:$0xff]
    %v3543 = vld [vmem:[#allocation15 + $0x150] sm:$0xff]
    %v3544 = vld [vmem:[#allocation15 + $0x158] sm:$0xff]
    %v3545 = vld [vmem:[#allocation15 + $0x160] sm:$0xff]
    %v3546 = vld [vmem:[#allocation15 + $0x168] sm:$0xff]
    %v3547 = vld [vmem:[#allocation15 + $0x170] sm:$0xff]
    %v3548 = vld [vmem:[#allocation15 + $0x178] sm:$0xff]
    %v3549 = vld [vmem:[#allocation15 + $0x180] sm:$0xff]
    %v3550 = vld [vmem:[#allocation15 + $0x188] sm:$0xff]
    %v3551 = vld [vmem:[#allocation15 + $0x190] sm:$0xff]
    %v3552 = vld [vmem:[#allocation15 + $0x198] sm:$0xff]
    %v3553 = vld [vmem:[#allocation15 + $0x1a0] sm:$0xff]
    %v3554 = vld [vmem:[#allocation15 + $0x1a8] sm:$0xff]
    %v3555 = vld [vmem:[#allocation15 + $0x1b0] sm:$0xff]
    %v3556 = vld [vmem:[#allocation15 + $0x1b8] sm:$0xff]
    %v3557 = vld [vmem:[#allocation15 + $0x1c0] sm:$0xff]
    %v3558 = vld [vmem:[#allocation15 + $0x1c8] sm:$0xff]
    %v3559 = vld [vmem:[#allocation15 + $0x1d0] sm:$0xff]
    %v3560 = vld [vmem:[#allocation15 + $0x1d8] sm:$0xff]
    %v3561 = vld [vmem:[#allocation15 + $0x1e0] sm:$0xff]
    %v3562 = vld [vmem:[#allocation15 + $0x1e8] sm:$0xff]
    %v3563 = vld [vmem:[#allocation15 + $0x1f0] sm:$0xff]
    %v3564 = vld [vmem:[#allocation15 + $0x1f8] sm:$0xff]
    %v3565 = vld [vmem:[#allocation15 + $0x200] sm:$0xff]
    %v3566 = vld [vmem:[#allocation15 + $0x208] sm:$0xff]
    %v3567 = vld [vmem:[#allocation15 + $0x210] sm:$0xff]
    %v3568 = vld [vmem:[#allocation15 + $0x218] sm:$0xff]
    %v3569 = vld [vmem:[#allocation15 + $0x220] sm:$0xff]
    %v3570 = vld [vmem:[#allocation15 + $0x228] sm:$0xff]
    %v3571 = vld [vmem:[#allocation15 + $0x230] sm:$0xff]
    %v3572 = vld [vmem:[#allocation15 + $0x238] sm:$0xff]
    %v3573 = vld [vmem:[#allocation15 + $0x240] sm:$0xff]
    %v3574 = vld [vmem:[#allocation15 + $0x248] sm:$0xff]
    %v3575 = vld [vmem:[#allocation15 + $0x250] sm:$0xff]
    %v3576 = vld [vmem:[#allocation15 + $0x258] sm:$0xff]
    %v3577 = vld [vmem:[#allocation15 + $0x260] sm:$0xff]
    %v3578 = vld [vmem:[#allocation15 + $0x268] sm:$0xff]
    %v3579 = vld [vmem:[#allocation15 + $0x270] sm:$0xff]
    %v3580 = vld [vmem:[#allocation15 + $0x278] sm:$0xff]
    %v3581 = vld [vmem:[#allocation15 + $0x280] sm:$0xff]
    %v3582 = vld [vmem:[#allocation15 + $0x288] sm:$0xff]
    %v3583 = vld [vmem:[#allocation15 + $0x290] sm:$0xff]
    %v3584 = vld [vmem:[#allocation15 + $0x298] sm:$0xff]
    %v3585 = vld [vmem:[#allocation15 + $0x2a0] sm:$0xff]
    %v3586 = vld [vmem:[#allocation15 + $0x2a8] sm:$0xff]
    %v3587 = vld [vmem:[#allocation15 + $0x2b0] sm:$0xff]
    %v3588 = vld [vmem:[#allocation15 + $0x2b8] sm:$0xff]
    %v3589 = vld [vmem:[#allocation15 + $0x2c0] sm:$0xff]
    %v3590 = vld [vmem:[#allocation15 + $0x2c8] sm:$0xff]
    %v3591 = vld [vmem:[#allocation15 + $0x2d0] sm:$0xff]
    %v3592 = vld [vmem:[#allocation15 + $0x2d8] sm:$0xff]
    %v3593 = vld [vmem:[#allocation15 + $0x2e0] sm:$0xff]
    %v3594 = vld [vmem:[#allocation15 + $0x2e8] sm:$0xff]
    %v3595 = vld [vmem:[#allocation15 + $0x2f0] sm:$0xff]
    %v3596 = vld [vmem:[#allocation15 + $0x2f8] sm:$0xff]
    %v3597 = vld [vmem:[#allocation15 + $0x300] sm:$0xff]
    %v3598 = vld [vmem:[#allocation15 + $0x308] sm:$0xff]
    %v3599 = vld [vmem:[#allocation15 + $0x310] sm:$0xff]
    %v3600 = vld [vmem:[#allocation15 + $0x318] sm:$0xff]
    %v3601 = vld [vmem:[#allocation15 + $0x320] sm:$0xff]
    %v3602 = vld [vmem:[#allocation15 + $0x328] sm:$0xff]
    %v3603 = vld [vmem:[#allocation15 + $0x330] sm:$0xff]
    %v3604 = vld [vmem:[#allocation15 + $0x338] sm:$0xff]
    %v3605 = vld [vmem:[#allocation15 + $0x340] sm:$0xff]
    %v3606 = vld [vmem:[#allocation15 + $0x348] sm:$0xff]
    %v3607 = vld [vmem:[#allocation15 + $0x350] sm:$0xff]
    %v3608 = vld [vmem:[#allocation15 + $0x358] sm:$0xff]
    %v3609 = vld [vmem:[#allocation15 + $0x360] sm:$0xff]
    %v3610 = vld [vmem:[#allocation15 + $0x368] sm:$0xff]
    %v3611 = vld [vmem:[#allocation15 + $0x370] sm:$0xff]
    %v3612 = vld [vmem:[#allocation15 + $0x378] sm:$0xff]
    %v3613 = vld [vmem:[#allocation15 + $0x380] sm:$0xff]
    %v3614 = vld [vmem:[#allocation15 + $0x388] sm:$0xff]
    %v3615 = vld [vmem:[#allocation15 + $0x390] sm:$0xff]
    %v3616 = vld [vmem:[#allocation15 + $0x398] sm:$0xff]
    %v3617 = vld [vmem:[#allocation15 + $0x3a0] sm:$0xff]
    %v3618 = vld [vmem:[#allocation15 + $0x3a8] sm:$0xff]
    %v3619 = vld [vmem:[#allocation15 + $0x3b0] sm:$0xff]
    %v3620 = vld [vmem:[#allocation15 + $0x3b8] sm:$0xff]
    %v3621 = vld [vmem:[#allocation15 + $0x3c0] sm:$0xff]
    %v3622 = vld [vmem:[#allocation15 + $0x3c8] sm:$0xff]
    %v3623 = vld [vmem:[#allocation15 + $0x3d0] sm:$0xff]
    %v3624 = vld [vmem:[#allocation15 + $0x3d8] sm:$0xff]
    %v3625 = vld [vmem:[#allocation15 + $0x3e0] sm:$0xff]
    %v3626 = vld [vmem:[#allocation15 + $0x3e8] sm:$0xff]
    %v3627 = vld [vmem:[#allocation15 + $0x3f0] sm:$0xff]
    %v3628 = vld [vmem:[#allocation15 + $0x3f8] sm:$0xff]
    %v3629 = vld [vmem:[%s18] sm:$0xf]
    %v3631 = vlaneseq
    %v3632 = vshrl.u32 %v3631, 7
    %v3633 = vsub.s32 0, %v3632
    %v3634 = vrot.slane %v3629, %v3633
    %v3635 = vlaneseq
    %v3636 = vshrl.u32 %v3635, 7
    %v3637 = vsub.s32 1, %v3636
    %v3638 = vrot.slane %v3629, %v3637
    %v3639 = vlaneseq
    %v3640 = vshrl.u32 %v3639, 7
    %v3641 = vsub.s32 2, %v3640
    %v3642 = vrot.slane %v3629, %v3641
    %v3643 = vlaneseq
    %v3644 = vshrl.u32 %v3643, 7
    %v3645 = vsub.s32 3, %v3644
    %v3646 = vrot.slane %v3629, %v3645
    %3651 = vmatprep.subr.mxu0 %v3502
    %3652 = vmatpush1.msra.mxu0 %v3501
    %3653 = vmatprep.subr.mxu0 %v3506
    %3654 = vmatpush1.msra.mxu0 %v3505
    %3655 = vmatprep.subr.mxu0 %v3510
    %3656 = vmatpush1.msra.mxu0 %v3509
    %3657 = vmatprep.subr.mxu0 %v3514
    %3658 = vmatpush1.msra.mxu0 %v3513
    %3659 = vmatprep.subr.mxu0 %v3518
    %3660 = vmatpush1.msra.mxu0 %v3517
    %3661 = vmatprep.subr.mxu0 %v3522
    %3662 = vmatpush1.msra.mxu0 %v3521
    %3663 = vmatprep.subr.mxu0 %v3526
    %3664 = vmatpush1.msra.mxu0 %v3525
    %3665 = vmatprep.subr.mxu0 %v3530
    %3666 = vmatpush1.msra.mxu0 %v3529
    %3667 = vmatprep.subr.mxu0 %v3534
    %3668 = vmatpush1.msra.mxu0 %v3533
    %3669 = vmatprep.subr.mxu0 %v3538
    %3670 = vmatpush1.msra.mxu0 %v3537
    %3671 = vmatprep.subr.mxu0 %v3542
    %3672 = vmatpush1.msra.mxu0 %v3541
    %3673 = vmatprep.subr.mxu0 %v3546
    %3674 = vmatpush1.msra.mxu0 %v3545
    %3675 = vmatprep.subr.mxu0 %v3550
    %3676 = vmatpush1.msra.mxu0 %v3549
    %3677 = vmatprep.subr.mxu0 %v3554
    %3678 = vmatpush1.msra.mxu0 %v3553
    %3679 = vmatprep.subr.mxu0 %v3558
    %3680 = vmatpush1.msra.mxu0 %v3557
    %3681 = vmatprep.subr.mxu0 %v3562
    %3682 = vmatpush1.msra.mxu0 %v3561
    %3683 = vmatprep.subr.mxu0 %v3566
    %3684 = vmatpush1.msra.mxu0 %v3565
    %3685 = vmatprep.subr.mxu0 %v3570
    %3686 = vmatpush1.msra.mxu0 %v3569
    %3687 = vmatprep.subr.mxu0 %v3574
    %3688 = vmatpush1.msra.mxu0 %v3573
    %3689 = vmatprep.subr.mxu0 %v3578
    %3690 = vmatpush1.msra.mxu0 %v3577
    %3691 = vmatprep.subr.mxu0 %v3582
    %3692 = vmatpush1.msra.mxu0 %v3581
    %3693 = vmatprep.subr.mxu0 %v3586
    %3694 = vmatpush1.msra.mxu0 %v3585
    %3695 = vmatprep.subr.mxu0 %v3590
    %3696 = vmatpush1.msra.mxu0 %v3589
    %3697 = vmatprep.subr.mxu0 %v3594
    %3698 = vmatpush1.msra.mxu0 %v3593
    %3699 = vmatprep.subr.mxu0 %v3598
    %3700 = vmatpush1.msra.mxu0 %v3597
    %3701 = vmatprep.subr.mxu0 %v3602
    %3702 = vmatpush1.msra.mxu0 %v3601
    %3703 = vmatprep.subr.mxu0 %v3606
    %3704 = vmatpush1.msra.mxu0 %v3605
    %3705 = vmatprep.subr.mxu0 %v3610
    %3706 = vmatpush1.msra.mxu0 %v3609
    %3707 = vmatprep.subr.mxu0 %v3614
    %3708 = vmatpush1.msra.mxu0 %v3613
    %3709 = vmatprep.subr.mxu0 %v3618
    %3710 = vmatpush1.msra.mxu0 %v3617
    %3711 = vmatprep.subr.mxu0 %v3622
    %3712 = vmatpush1.msra.mxu0 %v3621
    %3713 = vmatprep.subr.mxu0 %v3626
    %3714 = vmatpush1.msra.mxu0 %v3625
    %3715 = vmatprep.mubr.f32.mxu0 %v3500
    %3716 = vmatmul.mubr.f32.gmra.mrb[0].mxu0 %v3499
    %v3717 = vpop.f32.mrb[0].mxu0
    %v3718 = vadd.f32 %v3634, %v3717
    %v3719 = vpop.f32.mrb[0].mxu0
    %v3720 = vadd.f32 %v3638, %v3719
    %3721 = vdwg.mxu0
    %3722 = vmatprep.subr.mxu0 %v3504
    %3723 = vmatpush1.msra.mxu0 %v3503
    %3724 = vmatprep.subr.mxu0 %v3508
    %3725 = vmatpush1.msra.mxu0 %v3507
    %3726 = vmatprep.subr.mxu0 %v3512
    %3727 = vmatpush1.msra.mxu0 %v3511
    %3728 = vmatprep.subr.mxu0 %v3516
    %3729 = vmatpush1.msra.mxu0 %v3515
    %3730 = vmatprep.subr.mxu0 %v3520
    %3731 = vmatpush1.msra.mxu0 %v3519
    %3732 = vmatprep.subr.mxu0 %v3524
    %3733 = vmatpush1.msra.mxu0 %v3523
    %3734 = vmatprep.subr.mxu0 %v3528
    %3735 = vmatpush1.msra.mxu0 %v3527
    %3736 = vmatprep.subr.mxu0 %v3532
    %3737 = vmatpush1.msra.mxu0 %v3531
    %3738 = vmatprep.subr.mxu0 %v3536
    %3739 = vmatpush1.msra.mxu0 %v3535
    %3740 = vmatprep.subr.mxu0 %v3540
    %3741 = vmatpush1.msra.mxu0 %v3539
    %3742 = vmatprep.subr.mxu0 %v3544
    %3743 = vmatpush1.msra.mxu0 %v3543
    %3744 = vmatprep.subr.mxu0 %v3548
    %3745 = vmatpush1.msra.mxu0 %v3547
    %3746 = vmatprep.subr.mxu0 %v3552
    %3747 = vmatpush1.msra.mxu0 %v3551
    %3748 = vmatprep.subr.mxu0 %v3556
    %3749 = vmatpush1.msra.mxu0 %v3555
    %3750 = vmatprep.subr.mxu0 %v3560
    %3751 = vmatpush1.msra.mxu0 %v3559
    %3752 = vmatprep.subr.mxu0 %v3564
    %3753 = vmatpush1.msra.mxu0 %v3563
    %3754 = vmatprep.subr.mxu0 %v3568
    %3755 = vmatpush1.msra.mxu0 %v3567
    %3756 = vmatprep.subr.mxu0 %v3572
    %3757 = vmatpush1.msra.mxu0 %v3571
    %3758 = vmatprep.subr.mxu0 %v3576
    %3759 = vmatpush1.msra.mxu0 %v3575
    %3760 = vmatprep.subr.mxu0 %v3580
    %3761 = vmatpush1.msra.mxu0 %v3579
    %3762 = vmatprep.subr.mxu0 %v3584
    %3763 = vmatpush1.msra.mxu0 %v3583
    %3764 = vmatprep.subr.mxu0 %v3588
    %3765 = vmatpush1.msra.mxu0 %v3587
    %3766 = vmatprep.subr.mxu0 %v3592
    %3767 = vmatpush1.msra.mxu0 %v3591
    %3768 = vmatprep.subr.mxu0 %v3596
    %3769 = vmatpush1.msra.mxu0 %v3595
    %3770 = vmatprep.subr.mxu0 %v3600
    %3771 = vmatpush1.msra.mxu0 %v3599
    %3772 = vmatprep.subr.mxu0 %v3604
    %3773 = vmatpush1.msra.mxu0 %v3603
    %3774 = vmatprep.subr.mxu0 %v3608
    %3775 = vmatpush1.msra.mxu0 %v3607
    %3776 = vmatprep.subr.mxu0 %v3612
    %3777 = vmatpush1.msra.mxu0 %v3611
    %3778 = vmatprep.subr.mxu0 %v3616
    %3779 = vmatpush1.msra.mxu0 %v3615
    %3780 = vmatprep.subr.mxu0 %v3620
    %3781 = vmatpush1.msra.mxu0 %v3619
    %3782 = vmatprep.subr.mxu0 %v3624
    %3783 = vmatpush1.msra.mxu0 %v3623
    %3784 = vmatprep.subr.mxu0 %v3628
    %3785 = vmatpush1.msra.mxu0 %v3627
    %3786 = vmatprep.mubr.f32.mxu0 %v3500
    %3787 = vmatmul.mubr.f32.gmra.mrb[0].mxu0 %v3499
    %v3788 = vpop.f32.mrb[0].mxu0
    %v3789 = vadd.f32 %v3642, %v3788
    %v3790 = vpop.f32.mrb[0].mxu0
    %v3791 = vadd.f32 %v3646, %v3790
    %3792 = vdwg.mxu0
    %v3793 = vxor.u32 %v3718, 2147483648
    %v3794 = vmul.f32 %v3793, 1.442695
    %v3795 = vpow.pop %v3794
    %v3796 = vadd.f32 %v3795, 1.0
    %v3797 = vrcp.pop %v3796
    %v3798 = vmul.f32 1.0, %v3797
    %v3799 = vxor.u32 %v3720, 2147483648
    %v3800 = vmul.f32 %v3799, 1.442695
    %v3801 = vpow.pop %v3800
    %v3802 = vadd.f32 %v3801, 1.0
    %v3803 = vrcp.pop %v3802
    %v3804 = vmul.f32 1.0, %v3803
    %v3805 = vtanh.pop %v3789
    %v3806 = vxor.u32 %v3791, 2147483648
    %v3807 = vmul.f32 %v3806, 1.442695
    %v3808 = vpow.pop %v3807
    %v3809 = vadd.f32 %v3808, 1.0
    %v3810 = vrcp.pop %v3809
    %v3811 = vmul.f32 1.0, %v3810
    %v3812 = vmul.f32 %v3804, %v3493
    %v3813 = vmul.f32 %v3798, %v3805
    %v3814 = vadd.f32 %v3812, %v3813
    %v3815 = vtanh.pop %v3814
    %v3816 = vmul.f32 %v3811, %v3815
    %3817 = vst [vmem:[%s24 + $0x8] sm:$0xff] %v3816
    %3818 = vst [vmem:[#allocation2] sm:$0xff] %v3816
    %3819 = vst [vmem:[#allocation2 + $0x8] sm:$0xff] %v3816
    %v3820 = vld [vmem:[#allocation2] sm:$0xff]
    %v3821 = vld [vmem:[#allocation2 + $0x8] sm:$0xff]
    %v3822 = vld [vmem:[#allocation15] sm:$0xff]
    %v3823 = vld [vmem:[#allocation15 + $0x8] sm:$0xff]
    %v3824 = vld [vmem:[#allocation15 + $0x10] sm:$0xff]
    %v3825 = vld [vmem:[#allocation15 + $0x18] sm:$0xff]
    %v3826 = vld [vmem:[#allocation15 + $0x20] sm:$0xff]
    %v3827 = vld [vmem:[#allocation15 + $0x28] sm:$0xff]
    %v3828 = vld [vmem:[#allocation15 + $0x30] sm:$0xff]
    %v3829 = vld [vmem:[#allocation15 + $0x38] sm:$0xff]
    %v3830 = vld [vmem:[#allocation15 + $0x40] sm:$0xff]
    %v3831 = vld [vmem:[#allocation15 + $0x48] sm:$0xff]
    %v3832 = vld [vmem:[#allocation15 + $0x50] sm:$0xff]
    %v3833 = vld [vmem:[#allocation15 + $0x58] sm:$0xff]
    %v3834 = vld [vmem:[#allocation15 + $0x60] sm:$0xff]
    %v3835 = vld [vmem:[#allocation15 + $0x68] sm:$0xff]
    %v3836 = vld [vmem:[#allocation15 + $0x70] sm:$0xff]
    %v3837 = vld [vmem:[#allocation15 + $0x78] sm:$0xff]
    %v3838 = vld [vmem:[#allocation15 + $0x80] sm:$0xff]
    %v3839 = vld [vmem:[#allocation15 + $0x88] sm:$0xff]
    %v3840 = vld [vmem:[#allocation15 + $0x90] sm:$0xff]
    %v3841 = vld [vmem:[#allocation15 + $0x98] sm:$0xff]
    %v3842 = vld [vmem:[#allocation15 + $0xa0] sm:$0xff]
    %v3843 = vld [vmem:[#allocation15 + $0xa8] sm:$0xff]
    %v3844 = vld [vmem:[#allocation15 + $0xb0] sm:$0xff]
    %v3845 = vld [vmem:[#allocation15 + $0xb8] sm:$0xff]
    %v3846 = vld [vmem:[#allocation15 + $0xc0] sm:$0xff]
    %v3847 = vld [vmem:[#allocation15 + $0xc8] sm:$0xff]
    %v3848 = vld [vmem:[#allocation15 + $0xd0] sm:$0xff]
    %v3849 = vld [vmem:[#allocation15 + $0xd8] sm:$0xff]
    %v3850 = vld [vmem:[#allocation15 + $0xe0] sm:$0xff]
    %v3851 = vld [vmem:[#allocation15 + $0xe8] sm:$0xff]
    %v3852 = vld [vmem:[#allocation15 + $0xf0] sm:$0xff]
    %v3853 = vld [vmem:[#allocation15 + $0xf8] sm:$0xff]
    %v3854 = vld [vmem:[#allocation15 + $0x100] sm:$0xff]
    %v3855 = vld [vmem:[#allocation15 + $0x108] sm:$0xff]
    %v3856 = vld [vmem:[#allocation15 + $0x110] sm:$0xff]
    %v3857 = vld [vmem:[#allocation15 + $0x118] sm:$0xff]
    %v3858 = vld [vmem:[#allocation15 + $0x120] sm:$0xff]
    %v3859 = vld [vmem:[#allocation15 + $0x128] sm:$0xff]
    %v3860 = vld [vmem:[#allocation15 + $0x130] sm:$0xff]
    %v3861 = vld [vmem:[#allocation15 + $0x138] sm:$0xff]
    %v3862 = vld [vmem:[#allocation15 + $0x140] sm:$0xff]
    %v3863 = vld [vmem:[#allocation15 + $0x148] sm:$0xff]
    %v3864 = vld [vmem:[#allocation15 + $0x150] sm:$0xff]
    %v3865 = vld [vmem:[#allocation15 + $0x158] sm:$0xff]
    %v3866 = vld [vmem:[#allocation15 + $0x160] sm:$0xff]
    %v3867 = vld [vmem:[#allocation15 + $0x168] sm:$0xff]
    %v3868 = vld [vmem:[#allocation15 + $0x170] sm:$0xff]
    %v3869 = vld [vmem:[#allocation15 + $0x178] sm:$0xff]
    %v3870 = vld [vmem:[#allocation15 + $0x180] sm:$0xff]
    %v3871 = vld [vmem:[#allocation15 + $0x188] sm:$0xff]
    %v3872 = vld [vmem:[#allocation15 + $0x190] sm:$0xff]
    %v3873 = vld [vmem:[#allocation15 + $0x198] sm:$0xff]
    %v3874 = vld [vmem:[#allocation15 + $0x1a0] sm:$0xff]
    %v3875 = vld [vmem:[#allocation15 + $0x1a8] sm:$0xff]
    %v3876 = vld [vmem:[#allocation15 + $0x1b0] sm:$0xff]
    %v3877 = vld [vmem:[#allocation15 + $0x1b8] sm:$0xff]
    %v3878 = vld [vmem:[#allocation15 + $0x1c0] sm:$0xff]
    %v3879 = vld [vmem:[#allocation15 + $0x1c8] sm:$0xff]
    %v3880 = vld [vmem:[#allocation15 + $0x1d0] sm:$0xff]
    %v3881 = vld [vmem:[#allocation15 + $0x1d8] sm:$0xff]
    %v3882 = vld [vmem:[#allocation15 + $0x1e0] sm:$0xff]
    %v3883 = vld [vmem:[#allocation15 + $0x1e8] sm:$0xff]
    %v3884 = vld [vmem:[#allocation15 + $0x1f0] sm:$0xff]
    %v3885 = vld [vmem:[#allocation15 + $0x1f8] sm:$0xff]
    %v3886 = vld [vmem:[#allocation15 + $0x200] sm:$0xff]
    %v3887 = vld [vmem:[#allocation15 + $0x208] sm:$0xff]
    %v3888 = vld [vmem:[#allocation15 + $0x210] sm:$0xff]
    %v3889 = vld [vmem:[#allocation15 + $0x218] sm:$0xff]
    %v3890 = vld [vmem:[#allocation15 + $0x220] sm:$0xff]
    %v3891 = vld [vmem:[#allocation15 + $0x228] sm:$0xff]
    %v3892 = vld [vmem:[#allocation15 + $0x230] sm:$0xff]
    %v3893 = vld [vmem:[#allocation15 + $0x238] sm:$0xff]
    %v3894 = vld [vmem:[#allocation15 + $0x240] sm:$0xff]
    %v3895 = vld [vmem:[#allocation15 + $0x248] sm:$0xff]
    %v3896 = vld [vmem:[#allocation15 + $0x250] sm:$0xff]
    %v3897 = vld [vmem:[#allocation15 + $0x258] sm:$0xff]
    %v3898 = vld [vmem:[#allocation15 + $0x260] sm:$0xff]
    %v3899 = vld [vmem:[#allocation15 + $0x268] sm:$0xff]
    %v3900 = vld [vmem:[#allocation15 + $0x270] sm:$0xff]
    %v3901 = vld [vmem:[#allocation15 + $0x278] sm:$0xff]
    %v3902 = vld [vmem:[#allocation15 + $0x280] sm:$0xff]
    %v3903 = vld [vmem:[#allocation15 + $0x288] sm:$0xff]
    %v3904 = vld [vmem:[#allocation15 + $0x290] sm:$0xff]
    %v3905 = vld [vmem:[#allocation15 + $0x298] sm:$0xff]
    %v3906 = vld [vmem:[#allocation15 + $0x2a0] sm:$0xff]
    %v3907 = vld [vmem:[#allocation15 + $0x2a8] sm:$0xff]
    %v3908 = vld [vmem:[#allocation15 + $0x2b0] sm:$0xff]
    %v3909 = vld [vmem:[#allocation15 + $0x2b8] sm:$0xff]
    %v3910 = vld [vmem:[#allocation15 + $0x2c0] sm:$0xff]
    %v3911 = vld [vmem:[#allocation15 + $0x2c8] sm:$0xff]
    %v3912 = vld [vmem:[#allocation15 + $0x2d0] sm:$0xff]
    %v3913 = vld [vmem:[#allocation15 + $0x2d8] sm:$0xff]
    %v3914 = vld [vmem:[#allocation15 + $0x2e0] sm:$0xff]
    %v3915 = vld [vmem:[#allocation15 + $0x2e8] sm:$0xff]
    %v3916 = vld [vmem:[#allocation15 + $0x2f0] sm:$0xff]
    %v3917 = vld [vmem:[#allocation15 + $0x2f8] sm:$0xff]
    %v3918 = vld [vmem:[#allocation15 + $0x300] sm:$0xff]
    %v3919 = vld [vmem:[#allocation15 + $0x308] sm:$0xff]
    %v3920 = vld [vmem:[#allocation15 + $0x310] sm:$0xff]
    %v3921 = vld [vmem:[#allocation15 + $0x318] sm:$0xff]
    %v3922 = vld [vmem:[#allocation15 + $0x320] sm:$0xff]
    %v3923 = vld [vmem:[#allocation15 + $0x328] sm:$0xff]
    %v3924 = vld [vmem:[#allocation15 + $0x330] sm:$0xff]
    %v3925 = vld [vmem:[#allocation15 + $0x338] sm:$0xff]
    %v3926 = vld [vmem:[#allocation15 + $0x340] sm:$0xff]
    %v3927 = vld [vmem:[#allocation15 + $0x348] sm:$0xff]
    %v3928 = vld [vmem:[#allocation15 + $0x350] sm:$0xff]
    %v3929 = vld [vmem:[#allocation15 + $0x358] sm:$0xff]
    %v3930 = vld [vmem:[#allocation15 + $0x360] sm:$0xff]
    %v3931 = vld [vmem:[#allocation15 + $0x368] sm:$0xff]
    %v3932 = vld [vmem:[#allocation15 + $0x370] sm:$0xff]
    %v3933 = vld [vmem:[#allocation15 + $0x378] sm:$0xff]
    %v3934 = vld [vmem:[#allocation15 + $0x380] sm:$0xff]
    %v3935 = vld [vmem:[#allocation15 + $0x388] sm:$0xff]
    %v3936 = vld [vmem:[#allocation15 + $0x390] sm:$0xff]
    %v3937 = vld [vmem:[#allocation15 + $0x398] sm:$0xff]
    %v3938 = vld [vmem:[#allocation15 + $0x3a0] sm:$0xff]
    %v3939 = vld [vmem:[#allocation15 + $0x3a8] sm:$0xff]
    %v3940 = vld [vmem:[#allocation15 + $0x3b0] sm:$0xff]
    %v3941 = vld [vmem:[#allocation15 + $0x3b8] sm:$0xff]
    %v3942 = vld [vmem:[#allocation15 + $0x3c0] sm:$0xff]
    %v3943 = vld [vmem:[#allocation15 + $0x3c8] sm:$0xff]
    %v3944 = vld [vmem:[#allocation15 + $0x3d0] sm:$0xff]
    %v3945 = vld [vmem:[#allocation15 + $0x3d8] sm:$0xff]
    %v3946 = vld [vmem:[#allocation15 + $0x3e0] sm:$0xff]
    %v3947 = vld [vmem:[#allocation15 + $0x3e8] sm:$0xff]
    %v3948 = vld [vmem:[#allocation15 + $0x3f0] sm:$0xff]
    %v3949 = vld [vmem:[#allocation15 + $0x3f8] sm:$0xff]
    %v3950 = vld [vmem:[%s18] sm:$0xf]
    %v3952 = vlaneseq
    %v3953 = vshrl.u32 %v3952, 7
    %v3954 = vsub.s32 0, %v3953
    %v3955 = vrot.slane %v3950, %v3954
    %v3956 = vlaneseq
    %v3957 = vshrl.u32 %v3956, 7
    %v3958 = vsub.s32 1, %v3957
    %v3959 = vrot.slane %v3950, %v3958
    %v3960 = vlaneseq
    %v3961 = vshrl.u32 %v3960, 7
    %v3962 = vsub.s32 2, %v3961
    %v3963 = vrot.slane %v3950, %v3962
    %v3964 = vlaneseq
    %v3965 = vshrl.u32 %v3964, 7
    %v3966 = vsub.s32 3, %v3965
    %v3967 = vrot.slane %v3950, %v3966
    %3972 = vmatprep.subr.mxu0 %v3823
    %3973 = vmatpush1.msra.mxu0 %v3822
    %3974 = vmatprep.subr.mxu0 %v3827
    %3975 = vmatpush1.msra.mxu0 %v3826
    %3976 = vmatprep.subr.mxu0 %v3831
    %3977 = vmatpush1.msra.mxu0 %v3830
    %3978 = vmatprep.subr.mxu0 %v3835
    %3979 = vmatpush1.msra.mxu0 %v3834
    %3980 = vmatprep.subr.mxu0 %v3839
    %3981 = vmatpush1.msra.mxu0 %v3838
    %3982 = vmatprep.subr.mxu0 %v3843
    %3983 = vmatpush1.msra.mxu0 %v3842
    %3984 = vmatprep.subr.mxu0 %v3847
    %3985 = vmatpush1.msra.mxu0 %v3846
    %3986 = vmatprep.subr.mxu0 %v3851
    %3987 = vmatpush1.msra.mxu0 %v3850
    %3988 = vmatprep.subr.mxu0 %v3855
    %3989 = vmatpush1.msra.mxu0 %v3854
    %3990 = vmatprep.subr.mxu0 %v3859
    %3991 = vmatpush1.msra.mxu0 %v3858
    %3992 = vmatprep.subr.mxu0 %v3863
    %3993 = vmatpush1.msra.mxu0 %v3862
    %3994 = vmatprep.subr.mxu0 %v3867
    %3995 = vmatpush1.msra.mxu0 %v3866
    %3996 = vmatprep.subr.mxu0 %v3871
    %3997 = vmatpush1.msra.mxu0 %v3870
    %3998 = vmatprep.subr.mxu0 %v3875
    %3999 = vmatpush1.msra.mxu0 %v3874
    %4000 = vmatprep.subr.mxu0 %v3879
    %4001 = vmatpush1.msra.mxu0 %v3878
    %4002 = vmatprep.subr.mxu0 %v3883
    %4003 = vmatpush1.msra.mxu0 %v3882
    %4004 = vmatprep.subr.mxu0 %v3887
    %4005 = vmatpush1.msra.mxu0 %v3886
    %4006 = vmatprep.subr.mxu0 %v3891
    %4007 = vmatpush1.msra.mxu0 %v3890
    %4008 = vmatprep.subr.mxu0 %v3895
    %4009 = vmatpush1.msra.mxu0 %v3894
    %4010 = vmatprep.subr.mxu0 %v3899
    %4011 = vmatpush1.msra.mxu0 %v3898
    %4012 = vmatprep.subr.mxu0 %v3903
    %4013 = vmatpush1.msra.mxu0 %v3902
    %4014 = vmatprep.subr.mxu0 %v3907
    %4015 = vmatpush1.msra.mxu0 %v3906
    %4016 = vmatprep.subr.mxu0 %v3911
    %4017 = vmatpush1.msra.mxu0 %v3910
    %4018 = vmatprep.subr.mxu0 %v3915
    %4019 = vmatpush1.msra.mxu0 %v3914
    %4020 = vmatprep.subr.mxu0 %v3919
    %4021 = vmatpush1.msra.mxu0 %v3918
    %4022 = vmatprep.subr.mxu0 %v3923
    %4023 = vmatpush1.msra.mxu0 %v3922
    %4024 = vmatprep.subr.mxu0 %v3927
    %4025 = vmatpush1.msra.mxu0 %v3926
    %4026 = vmatprep.subr.mxu0 %v3931
    %4027 = vmatpush1.msra.mxu0 %v3930
    %4028 = vmatprep.subr.mxu0 %v3935
    %4029 = vmatpush1.msra.mxu0 %v3934
    %4030 = vmatprep.subr.mxu0 %v3939
    %4031 = vmatpush1.msra.mxu0 %v3938
    %4032 = vmatprep.subr.mxu0 %v3943
    %4033 = vmatpush1.msra.mxu0 %v3942
    %4034 = vmatprep.subr.mxu0 %v3947
    %4035 = vmatpush1.msra.mxu0 %v3946
    %4036 = vmatprep.mubr.f32.mxu0 %v3821
    %4037 = vmatmul.mubr.f32.gmra.mrb[0].mxu0 %v3820
    %v4038 = vpop.f32.mrb[0].mxu0
    %v4039 = vadd.f32 %v3955, %v4038
    %v4040 = vpop.f32.mrb[0].mxu0
    %v4041 = vadd.f32 %v3959, %v4040
    %4042 = vdwg.mxu0
    %4043 = vmatprep.subr.mxu0 %v3825
    %4044 = vmatpush1.msra.mxu0 %v3824
    %4045 = vmatprep.subr.mxu0 %v3829
    %4046 = vmatpush1.msra.mxu0 %v3828
    %4047 = vmatprep.subr.mxu0 %v3833
    %4048 = vmatpush1.msra.mxu0 %v3832
    %4049 = vmatprep.subr.mxu0 %v3837
    %4050 = vmatpush1.msra.mxu0 %v3836
    %4051 = vmatprep.subr.mxu0 %v3841
    %4052 = vmatpush1.msra.mxu0 %v3840
    %4053 = vmatprep.subr.mxu0 %v3845
    %4054 = vmatpush1.msra.mxu0 %v3844
    %4055 = vmatprep.subr.mxu0 %v3849
    %4056 = vmatpush1.msra.mxu0 %v3848
    %4057 = vmatprep.subr.mxu0 %v3853
    %4058 = vmatpush1.msra.mxu0 %v3852
    %4059 = vmatprep.subr.mxu0 %v3857
    %4060 = vmatpush1.msra.mxu0 %v3856
    %4061 = vmatprep.subr.mxu0 %v3861
    %4062 = vmatpush1.msra.mxu0 %v3860
    %4063 = vmatprep.subr.mxu0 %v3865
    %4064 = vmatpush1.msra.mxu0 %v3864
    %4065 = vmatprep.subr.mxu0 %v3869
    %4066 = vmatpush1.msra.mxu0 %v3868
    %4067 = vmatprep.subr.mxu0 %v3873
    %4068 = vmatpush1.msra.mxu0 %v3872
    %4069 = vmatprep.subr.mxu0 %v3877
    %4070 = vmatpush1.msra.mxu0 %v3876
    %4071 = vmatprep.subr.mxu0 %v3881
    %4072 = vmatpush1.msra.mxu0 %v3880
    %4073 = vmatprep.subr.mxu0 %v3885
    %4074 = vmatpush1.msra.mxu0 %v3884
    %4075 = vmatprep.subr.mxu0 %v3889
    %4076 = vmatpush1.msra.mxu0 %v3888
    %4077 = vmatprep.subr.mxu0 %v3893
    %4078 = vmatpush1.msra.mxu0 %v3892
    %4079 = vmatprep.subr.mxu0 %v3897
    %4080 = vmatpush1.msra.mxu0 %v3896
    %4081 = vmatprep.subr.mxu0 %v3901
    %4082 = vmatpush1.msra.mxu0 %v3900
    %4083 = vmatprep.subr.mxu0 %v3905
    %4084 = vmatpush1.msra.mxu0 %v3904
    %4085 = vmatprep.subr.mxu0 %v3909
    %4086 = vmatpush1.msra.mxu0 %v3908
    %4087 = vmatprep.subr.mxu0 %v3913
    %4088 = vmatpush1.msra.mxu0 %v3912
    %4089 = vmatprep.subr.mxu0 %v3917
    %4090 = vmatpush1.msra.mxu0 %v3916
    %4091 = vmatprep.subr.mxu0 %v3921
    %4092 = vmatpush1.msra.mxu0 %v3920
    %4093 = vmatprep.subr.mxu0 %v3925
    %4094 = vmatpush1.msra.mxu0 %v3924
    %4095 = vmatprep.subr.mxu0 %v3929
    %4096 = vmatpush1.msra.mxu0 %v3928
    %4097 = vmatprep.subr.mxu0 %v3933
    %4098 = vmatpush1.msra.mxu0 %v3932
    %4099 = vmatprep.subr.mxu0 %v3937
    %4100 = vmatpush1.msra.mxu0 %v3936
    %4101 = vmatprep.subr.mxu0 %v3941
    %4102 = vmatpush1.msra.mxu0 %v3940
    %4103 = vmatprep.subr.mxu0 %v3945
    %4104 = vmatpush1.msra.mxu0 %v3944
    %4105 = vmatprep.subr.mxu0 %v3949
    %4106 = vmatpush1.msra.mxu0 %v3948
    %4107 = vmatprep.mubr.f32.mxu0 %v3821
    %4108 = vmatmul.mubr.f32.gmra.mrb[0].mxu0 %v3820
    %v4109 = vpop.f32.mrb[0].mxu0
    %v4110 = vadd.f32 %v3963, %v4109
    %v4111 = vpop.f32.mrb[0].mxu0
    %v4112 = vadd.f32 %v3967, %v4111
    %4113 = vdwg.mxu0
    %v4114 = vxor.u32 %v4039, 2147483648
    %v4115 = vmul.f32 %v4114, 1.442695
    %v4116 = vpow.pop %v4115
    %v4117 = vadd.f32 %v4116, 1.0
    %v4118 = vrcp.pop %v4117
    %v4119 = vmul.f32 1.0, %v4118
    %v4120 = vxor.u32 %v4041, 2147483648
    %v4121 = vmul.f32 %v4120, 1.442695
    %v4122 = vpow.pop %v4121
    %v4123 = vadd.f32 %v4122, 1.0
    %v4124 = vrcp.pop %v4123
    %v4125 = vmul.f32 1.0, %v4124
    %v4126 = vtanh.pop %v4110
    %v4127 = vxor.u32 %v4112, 2147483648
    %v4128 = vmul.f32 %v4127, 1.442695
    %v4129 = vpow.pop %v4128
    %v4130 = vadd.f32 %v4129, 1.0
    %v4131 = vrcp.pop %v4130
    %v4132 = vmul.f32 1.0, %v4131
    %v4133 = vmul.f32 %v4125, %v3814
    %v4134 = vmul.f32 %v4119, %v4126
    %v4135 = vadd.f32 %v4133, %v4134
    %v4136 = vtanh.pop %v4135
    %v4137 = vmul.f32 %v4132, %v4136
    %4138 = vst [vmem:[%s24 + $0x10] sm:$0xff] %v4137
    %v4139 = vld [vmem:[%s19] sm:$0xff]
    %v4140 = vld [vmem:[%s19 + $0x8] sm:$0xff]
    %v4141 = vld [vmem:[%s19 + $0x10] sm:$0xff]
    %v4142 = vld [vmem:[%s19 + $0x18] sm:$0xff]
    %v4143 = vld [vmem:[%s19 + $0x20] sm:$0xff]
    %v4144 = vld [vmem:[%s19 + $0x28] sm:$0xff]
    %v4145 = vld [vmem:[%s19 + $0x30] sm:$0xff]
    %v4146 = vld [vmem:[%s19 + $0x38] sm:$0xff]
    %v4147 = vld [vmem:[%s19 + $0x40] sm:$0xff]
    %v4148 = vld [vmem:[%s19 + $0x48] sm:$0xff]
    %v4149 = vld [vmem:[%s19 + $0x50] sm:$0xff]
    %v4150 = vld [vmem:[%s19 + $0x58] sm:$0xff]
    %v4151 = vld [vmem:[%s19 + $0x60] sm:$0xff]
    %v4152 = vld [vmem:[%s19 + $0x68] sm:$0xff]
    %v4153 = vld [vmem:[%s19 + $0x70] sm:$0xff]
    %v4154 = vld [vmem:[%s19 + $0x78] sm:$0xff]
    %v4155 = vld [vmem:[%s20] sm:$0x1]
    %v4157 = vlaneseq
    %v4158 = vshrl.u32 %v4157, 7
    %v4159 = vsub.s32 0, %v4158
    %v4160 = vrot.slane %v4155, %v4159
    %4162 = vmatprep.subr.mxu0 0.0
    %4163 = vmatpush1.msra.mxu0 %v4139
    %4164 = vmatprep.subr.mxu0 0.0
    %4165 = vmatpush1.msra.mxu0 %v4140
    %4166 = vmatprep.subr.mxu0 0.0
    %4167 = vmatpush1.msra.mxu0 %v4141
    %4168 = vmatprep.subr.mxu0 0.0
    %4169 = vmatpush1.msra.mxu0 %v4142
    %4170 = vmatprep.subr.mxu0 0.0
    %4171 = vmatpush1.msra.mxu0 %v4143
    %4172 = vmatprep.subr.mxu0 0.0
    %4173 = vmatpush1.msra.mxu0 %v4144
    %4174 = vmatprep.subr.mxu0 0.0
    %4175 = vmatpush1.msra.mxu0 %v4145
    %4176 = vmatprep.subr.mxu0 0.0
    %4177 = vmatpush1.msra.mxu0 %v4146
    %4178 = vmatprep.subr.mxu0 0.0
    %4179 = vmatpush1.msra.mxu0 %v4147
    %4180 = vmatprep.subr.mxu0 0.0
    %4181 = vmatpush1.msra.mxu0 %v4148
    %4182 = vmatprep.subr.mxu0 0.0
    %4183 = vmatpush1.msra.mxu0 %v4149
    %4184 = vmatprep.subr.mxu0 0.0
    %4185 = vmatpush1.msra.mxu0 %v4150
    %4186 = vmatprep.subr.mxu0 0.0
    %4187 = vmatpush1.msra.mxu0 %v4151
    %4188 = vmatprep.subr.mxu0 0.0
    %4189 = vmatpush1.msra.mxu0 %v4152
    %4190 = vmatprep.subr.mxu0 0.0
    %4191 = vmatpush1.msra.mxu0 %v4153
    %4192 = vmatprep.subr.mxu0 0.0
    %4193 = vmatpush1.msra.mxu0 %v4154
    %4194 = vmatprep.subr.mxu0 0.0
    %4195 = vmatpush1.msra.mxu0 0.0
    %4196 = vmatprep.subr.mxu0 0.0
    %4197 = vmatpush1.msra.mxu0 0.0
    %4198 = vmatprep.subr.mxu0 0.0
    %4199 = vmatpush1.msra.mxu0 0.0
    %4200 = vmatprep.subr.mxu0 0.0
    %4201 = vmatpush1.msra.mxu0 0.0
    %4202 = vmatprep.subr.mxu0 0.0
    %4203 = vmatpush1.msra.mxu0 0.0
    %4204 = vmatprep.subr.mxu0 0.0
    %4205 = vmatpush1.msra.mxu0 0.0
    %4206 = vmatprep.subr.mxu0 0.0
    %4207 = vmatpush1.msra.mxu0 0.0
    %4208 = vmatprep.subr.mxu0 0.0
    %4209 = vmatpush1.msra.mxu0 0.0
    %4210 = vmatprep.subr.mxu0 0.0
    %4211 = vmatpush1.msra.mxu0 0.0
    %4212 = vmatprep.subr.mxu0 0.0
    %4213 = vmatpush1.msra.mxu0 0.0
    %4214 = vmatprep.subr.mxu0 0.0
    %4215 = vmatpush1.msra.mxu0 0.0
    %4216 = vmatprep.subr.mxu0 0.0
    %4217 = vmatpush1.msra.mxu0 0.0
    %4218 = vmatprep.subr.mxu0 0.0
    %4219 = vmatpush1.msra.mxu0 0.0
    %4220 = vmatprep.subr.mxu0 0.0
    %4221 = vmatpush1.msra.mxu0 0.0
    %4222 = vmatprep.subr.mxu0 0.0
    %4223 = vmatpush1.msra.mxu0 0.0
    %4224 = vmatprep.subr.mxu0 0.0
    %4225 = vmatpush1.msra.mxu0 0.0
    %4226 = vmatprep.mubr.f32.mxu0 0.0
    %4227 = vmatmul.mubr.f32.gmra.mrb[0].mxu0 %v4137
    %v4228 = vpop.f32.mrb[0].mxu0
    %v4229 = vadd.f32 %v4160, %v4228
    %v4230 = vpop.f32.mrb[0].mxu0
    %4231 = vdwg.mxu0
    %vm4232 = vcmask 23552
    %4233 = vst.msk [vmem:[%s25] sm:$0xff] %vm4232, %v4229
    // Predicated region
    $region114: #{generator_forward.1} parent=1 // pred_check
      _
    $region115: #{generator_forward.1} parent=1 // pred_check_branch
      %4235 = sbr.rel (0) target = $region117
    $region116: #{generator_forward.1} parent=1 // pred_region
      %s4237 = ssub.s32 640, 640
      %4238 = vsyncadd [#allocation6], %s4237
      %s4239 = sshll.u32 [#allocation16], 4
      %s4240 = int_to_ptr.vmem [resolvable:$true] %s4239
      %4245 = dma.vmem_to_hbm [thread:$0]  %s4240, 640, %s21, [#allocation6], 128, 128, 8
    $region117: #{generator_forward.1} parent=1 // pred_fallthru
      _
    // Predicated region
    $region118: #{generator_forward.1} parent=1 // pred_check
      _
    $region119: #{generator_forward.1} parent=1 // pred_check_branch
      %4247 = sbr.rel (0) target = $region121
    $region120: #{generator_forward.1} parent=1 // pred_region
      _
    $region121: #{generator_forward.1} parent=1 // pred_fallthru
      _
    // Predicated region
    $region122: #{generator_forward.1} parent=1 // pred_check
      _
    $region123: #{generator_forward.1} parent=1 // pred_check_branch
      %4249 = sbr.rel (0) target = $region125
    $region124: #{generator_forward.1} parent=1 // pred_region
      _
    $region125: #{generator_forward.1} parent=1 // pred_fallthru
      _
    // Predicated region
    $region126: #{generator_forward.1} parent=1 // pred_check
      _
    $region127: #{generator_forward.1} parent=1 // pred_check_branch
      %4251 = sbr.rel (0) target = $region129
    $region128: #{generator_forward.1} parent=1 // pred_region
      _
    $region129: #{generator_forward.1} parent=1 // pred_fallthru
      _
    // Predicated region
    $region130: #{generator_forward.1} parent=1 // pred_check
      _
    $region131: #{generator_forward.1} parent=1 // pred_check_branch
      %4253 = sbr.rel (0) target = $region133
    $region132: #{generator_forward.1} parent=1 // pred_region
      _
    $region133: #{generator_forward.1} parent=1 // pred_fallthru
      _
    // Predicated region
    $region134: #{generator_forward.1} parent=1 // pred_check
      _
    $region135: #{generator_forward.1} parent=1 // pred_check_branch
      %4255 = sbr.rel (0) target = $region137
    $region136: #{generator_forward.1} parent=1 // pred_region
      %4256 = dma.done [#allocation6], 640
    $region137: #{generator_forward.1} parent=1 // pred_fallthru
      _
    // Predicated region
    $region138: #{generator_forward.1} parent=1 // pred_check
      _
    $region139: #{generator_forward.1} parent=1 // pred_check_branch
      %4258 = sbr.rel (0) target = $region141
    $region140: #{generator_forward.1} parent=1 // pred_region
      _
    $region141: #{generator_forward.1} parent=1 // pred_fallthru
      _
    // Predicated region
    $region142: #{generator_forward.1} parent=1 // pred_check
      _
    $region143: #{generator_forward.1} parent=1 // pred_check_branch
      %4260 = sbr.rel (0) target = $region145
    $region144: #{generator_forward.1} parent=1 // pred_region
      _
    $region145: #{generator_forward.1} parent=1 // pred_fallthru
      _
    // Predicated region
    $region146: #{generator_forward.1} parent=1 // pred_check
      _
    $region147: #{generator_forward.1} parent=1 // pred_check_branch
      %4262 = sbr.rel (0) target = $region149
    $region148: #{generator_forward.1} parent=1 // pred_region
      _
    $region149: #{generator_forward.1} parent=1 // pred_fallthru
      _
    // Predicated region
    $region150: #{generator_forward.1} parent=1 // pred_check
      _
    $region151: #{generator_forward.1} parent=1 // pred_check_branch
      %4264 = sbr.rel (0) target = $region153
    $region152: #{generator_forward.1} parent=1 // pred_region
      _
    $region153: #{generator_forward.1} parent=1 // pred_fallthru
      _
    %4265 = vsyncpa [#allocation5], 1
    %4266 = vsyncpa [#allocation8], 1
    %4267 = vsyncpa [#allocation11], 1
    %4268 = vsyncpa [#allocation14], 1
    %4269 = vsyncpa [#allocation6], 1

</llo_original>
